<compile_context>
chip_gen: v7x
topology: tpu7x:2x2x1
jax: 0.10.0
libtpu: 0.0.40
codegen_flags: <defaults>
</compile_context>

<pallas_src>
import functools
import math

import jax
import jax.numpy as jnp
from jax import lax
from jax.experimental import pallas as pl
from jax.experimental.pallas import tpu as pltpu

LN_EPS = 1e-5
# bf16 operands + f32 accumulation on the MXU (v6e/v7x are bf16 MXUs).
MATMUL_DTYPE = jnp.bfloat16


def _layer_norm(z, g, b, eps):
    mean = jnp.mean(z, axis=-1, keepdims=True)
    var = jnp.mean(jnp.square(z - mean), axis=-1, keepdims=True)
    return (z - mean) * lax.rsqrt(var + eps) * g + b


# ----------------------------------------------------------------------------
# Fused transformer stack kernel.
#
# grid = (B, L):  batch axis 'parallel', layer axis 'arbitrary'.
# Per program (b, l):
#   l == 0      : (optionally) project raw tokens into model dim -> act scratch
#   every l     : post-norm TransformerEncoderLayer (MHA + add&LN, FFN + add&LN)
#                 on the VMEM-resident activation
#   l == L - 1  : fused output projection (enc_to_dec or head) -> o_ref
# ----------------------------------------------------------------------------
def _stack_kernel(x_ref, inw_ref, inb_ref,
                  qkvw_ref, qkvb_ref, aow_ref, aob_ref, g1_ref, b1_ref,
                  f1w_ref, f1b_ref, f2w_ref, f2b_ref, g2_ref, b2_ref,
                  projw_ref, projb_ref,
                  o_ref, act_ref,
                  *, num_heads, eps, use_in_proj):
    l = pl.program_id(1)
    n_layers = pl.num_programs(1)

    # --- layer-0 prologue: bring tokens into model dim (fused patch embed). --
    @pl.when(l == 0)
    def _init():
        xin = x_ref[0]
        if use_in_proj:
            act_ref[...] = (
                jnp.dot(xin.astype(MATMUL_DTYPE), inw_ref[...],
                        preferred_element_type=jnp.float32) + inb_ref[...])
        else:
            act_ref[...] = xin.astype(jnp.float32)

    x = act_ref[...]                              # (S, E) fp32, VMEM-resident
    S, E = x.shape
    hd = E // num_heads
    scale = 1.0 / math.sqrt(hd)

    # ---- multi-head self-attention -----------------------------------------
    x_bf = x.astype(MATMUL_DTYPE)
    qkv = (jnp.dot(x_bf, qkvw_ref[0], preferred_element_type=jnp.float32)
           + qkvb_ref[0])                         # (S, 3E) fp32
    qkv_bf = qkv.astype(MATMUL_DTYPE)             # single hoisted cast
    aow = aow_ref[0]                              # (E, E) bf16

    attn = jnp.zeros((S, E), jnp.float32)
    # Output projection folded into the head loop (no lane concatenate).
    for h in range(num_heads):
        q = qkv_bf[:, h * hd:(h + 1) * hd]
        k = qkv_bf[:, E + h * hd:E + (h + 1) * hd]
        v = qkv_bf[:, 2 * E + h * hd:2 * E + (h + 1) * hd]
        # q @ k^T without materializing a transpose.
        s = lax.dot_general(q, k, (((1,), (1,)), ((), ())),
                            preferred_element_type=jnp.float32) * scale
        s = s - jnp.max(s, axis=-1, keepdims=True)
        p = jnp.exp(s)
        p = p * pl.reciprocal(jnp.sum(p, axis=-1, keepdims=True), approx=True)
        ah = jnp.dot(p.astype(MATMUL_DTYPE), v,
                     preferred_element_type=jnp.float32)        # (S, hd)
        attn = attn + jnp.dot(ah.astype(MATMUL_DTYPE),
                              aow[h * hd:(h + 1) * hd, :],
                              preferred_element_type=jnp.float32)
    attn = attn + aob_ref[0]

    # Residual + LayerNorm (post-norm), fp32.
    z = _layer_norm(x + attn, g1_ref[0], b1_ref[0], eps)

    # ---- feed-forward (relu) ------------------------------------------------
    z_bf = z.astype(MATMUL_DTYPE)
    h1 = jnp.maximum(
        jnp.dot(z_bf, f1w_ref[0], preferred_element_type=jnp.float32)
        + f1b_ref[0], 0.0)
    y = (jnp.dot(h1.astype(MATMUL_DTYPE), f2w_ref[0],
                 preferred_element_type=jnp.float32) + f2b_ref[0])
    out = _layer_norm(z + y, g2_ref[0], b2_ref[0], eps)

    act_ref[...] = out                            # carry to next layer

    # --- last-layer epilogue: fused output projection (enc_to_dec / head). --
    @pl.when(l == n_layers - 1)
    def _final():
        o_ref[0] = (jnp.dot(out.astype(MATMUL_DTYPE), projw_ref[...],
                            preferred_element_type=jnp.float32)
                    + projb_ref[...]).astype(o_ref.dtype)


def transformer_stack(x, lp, in_w, in_b, proj_w, proj_b, *, num_heads,
                      use_in_proj):
    """x: (B, S, Pin) fp32.  lp: dict of layer-stacked weights (leading L axis).

    Returns proj(stack(x)) of shape (B, S, Pout), computed in one pallas_call.
    """
    B, S, Pin = x.shape
    L, E, _ = lp["qkv_w"].shape
    Pout = proj_w.shape[1]

    def layer_spec(a):   # per-layer weight: stream over the 'arbitrary' l axis
        return pl.BlockSpec((1,) + a.shape[1:], lambda b, l: (l, 0, 0))

    def const_spec(a):   # shared weight: fetched once
        return pl.BlockSpec(a.shape, lambda b, l: (0, 0))

    kernel = functools.partial(_stack_kernel, num_heads=num_heads, eps=LN_EPS,
                               use_in_proj=use_in_proj)
    return pl.pallas_call(
        kernel,
        out_shape=jax.ShapeDtypeStruct((B, S, Pout), jnp.float32),
        grid=(B, L),
        in_specs=[
            pl.BlockSpec((1, S, Pin), lambda b, l: (b, 0, 0)),
            const_spec(in_w), const_spec(in_b),
            layer_spec(lp["qkv_w"]), layer_spec(lp["qkv_b"]),
            layer_spec(lp["out_w"]), layer_spec(lp["out_b"]),
            layer_spec(lp["ln1_g"]), layer_spec(lp["ln1_b"]),
            layer_spec(lp["ff1_w"]), layer_spec(lp["ff1_b"]),
            layer_spec(lp["ff2_w"]), layer_spec(lp["ff2_b"]),
            layer_spec(lp["ln2_g"]), layer_spec(lp["ln2_b"]),
            const_spec(proj_w), const_spec(proj_b),
        ],
        out_specs=pl.BlockSpec((1, S, Pout), lambda b, l: (b, 0, 0)),
        scratch_shapes=[pltpu.VMEM((S, E), jnp.float32)],
        compiler_params=pltpu.CompilerParams(
            dimension_semantics=("parallel", "arbitrary")),
    )(x, in_w, in_b,
      lp["qkv_w"], lp["qkv_b"], lp["out_w"], lp["out_b"],
      lp["ln1_g"], lp["ln1_b"],
      lp["ff1_w"], lp["ff1_b"], lp["ff2_w"], lp["ff2_b"],
      lp["ln2_g"], lp["ln2_b"],
      proj_w, proj_b)


# ----------------------------------------------------------------------------
# MAEViT forward
# ----------------------------------------------------------------------------
def mae_vit_forward(pp, x, rng_key, *, mask_ratio, patch_size, num_heads):
    B, C, D, H, W = x.shape
    p0, p1, p2 = patch_size
    gd, gh, gw = D // p0, H // p1, W // p2
    N = gd * gh * gw
    patch_vol = C * p0 * p1 * p2

    # Conv3d(1, E, kernel=patch, stride=patch) == patchify + per-token linear;
    # the linear itself is fused into the encoder stack kernel (layer-0 prologue).
    # TODO(synk): at production shapes fold this patchify transpose into the
    # encoder kernel via an index_map over (gd, gh, gw) blocks of the NCDHW volume.
    patches = x.reshape(B, C, gd, p0, gh, p1, gw, p2)
    patches = patches.transpose(0, 2, 4, 6, 1, 3, 5, 7).reshape(B, N, patch_vol)

    # Random masking: perm = argsort(rand(B, N)) -> random permutation per batch.
    num_mask = int(mask_ratio * N)
    noise = jax.random.uniform(rng_key, (B, N))
    perm = jnp.argsort(noise, axis=1)
    mask_idx = perm[:, :num_mask]
    keep_idx = perm[:, num_mask:]

    # Gather the *raw* kept patches; embed-then-gather == gather-then-embed
    # because the patch embedding is a per-token linear.
    patches_keep = jnp.take_along_axis(patches, keep_idx[:, :, None], axis=1)

    # Fused: patch-embed -> encoder layers -> enc_to_dec, one pallas_call.
    dec_tokens = transformer_stack(
        patches_keep, pp["encoder"],
        in_w=pp["patch_w"], in_b=pp["patch_b"],
        proj_w=pp["enc_to_dec_w"], proj_b=pp["enc_to_dec_b"],
        num_heads=num_heads, use_in_proj=True)
    dec_dim = dec_tokens.shape[-1]

    # Decoder input: mask tokens everywhere, kept tokens scattered in.
    # (Equivalent to the reference zeros + two scatters since keep|mask = all.)
    bidx = jnp.arange(B)[:, None]
    dec_input = jnp.broadcast_to(pp["mask_token"],
                                 (B, N, dec_dim)).astype(jnp.float32)
    dec_input = dec_input.at[bidx, keep_idx].set(dec_tokens)

    # Fused: decoder layers -> prediction head, one pallas_call.
    pred = transformer_stack(
        dec_input, pp["decoder"],
        in_w=pp["patch_w"], in_b=pp["patch_b"],   # ignored (use_in_proj=False)
        proj_w=pp["head_w"], proj_b=pp["head_b"],
        num_heads=num_heads, use_in_proj=False)

    return pred, mask_idx


# ----------------------------------------------------------------------------
# Parameter initialization (shapes follow the module's __init__, scaled down
# for a small synthetic config).  Weights are stored as (in, out) -- transposed
# relative to PyTorch's (out, in) convention.
# ----------------------------------------------------------------------------
def init_layer_params(key, d_model, d_ff, scale=0.02):
    ks = jax.random.split(key, 4)
    f32 = jnp.float32
    return dict(
        qkv_w=jax.random.normal(ks[0], (d_model, 3 * d_model), f32) * scale,
        qkv_b=jnp.zeros((3 * d_model,), f32),
        out_w=jax.random.normal(ks[1], (d_model, d_model), f32) * scale,
        out_b=jnp.zeros((d_model,), f32),
        ln1_g=jnp.ones((d_model,), f32),
        ln1_b=jnp.zeros((d_model,), f32),
        ff1_w=jax.random.normal(ks[2], (d_model, d_ff), f32) * scale,
        ff1_b=jnp.zeros((d_ff,), f32),
        ff2_w=jax.random.normal(ks[3], (d_ff, d_model), f32) * scale,
        ff2_b=jnp.zeros((d_model,), f32),
        ln2_g=jnp.ones((d_model,), f32),
        ln2_b=jnp.zeros((d_model,), f32),
    )


def init_params(key, *, patch_size, embed_dim, enc_depth, dec_dim, dec_depth,
                ffn_dim, scale=0.02):
    f32 = jnp.float32
    patch_vol = int(patch_size[0] * patch_size[1] * patch_size[2])
    keys = jax.random.split(key, 4 + enc_depth + dec_depth)
    return dict(
        patch_w=jax.random.normal(keys[0], (patch_vol, embed_dim), f32) * scale,
        patch_b=jnp.zeros((embed_dim,), f32),
        enc_to_dec_w=jax.random.normal(keys[1], (embed_dim, dec_dim), f32) * scale,
        mask_token=jnp.zeros((1, 1, dec_dim), f32),   # nn.Parameter(torch.zeros)
        head_w=jax.random.normal(keys[2], (dec_dim, patch_vol), f32) * scale,
        head_b=jnp.zeros((patch_vol,), f32),
        encoder=[init_layer_params(keys[4 + i], embed_dim, ffn_dim, scale)
                 for i in range(enc_depth)],
        decoder=[init_layer_params(keys[4 + enc_depth + i], dec_dim, ffn_dim, scale)
                 for i in range(dec_depth)],
    )


def prepare_params(params):
    """Stack per-layer weights along a leading L axis; pre-cast matmul weights
    to bf16 in HBM (halves weight DMA bytes + VMEM).  Called once, outside jit."""
    def stack(layers):
        def s(name):
            return jnp.stack([lp[name] for lp in layers])
        return dict(
            qkv_w=s("qkv_w").astype(MATMUL_DTYPE),
            qkv_b=s("qkv_b")[:, None, :],
            out_w=s("out_w").astype(MATMUL_DTYPE),
            out_b=s("out_b")[:, None, :],
            ln1_g=s("ln1_g")[:, None, :],
            ln1_b=s("ln1_b")[:, None, :],
            ff1_w=s("ff1_w").astype(MATMUL_DTYPE),
            ff1_b=s("ff1_b")[:, None, :],
            ff2_w=s("ff2_w").astype(MATMUL_DTYPE),
            ff2_b=s("ff2_b")[:, None, :],
            ln2_g=s("ln2_g")[:, None, :],
            ln2_b=s("ln2_b")[:, None, :],
        )
    dec_dim = params["enc_to_dec_w"].shape[1]
    return dict(
        patch_w=params["patch_w"].astype(MATMUL_DTYPE),
        patch_b=params["patch_b"].reshape(1, -1),
        enc_to_dec_w=params["enc_to_dec_w"].astype(MATMUL_DTYPE),
        enc_to_dec_b=jnp.zeros((1, dec_dim), jnp.float32),   # bias=False
        head_w=params["head_w"].astype(MATMUL_DTYPE),
        head_b=params["head_b"].reshape(1, -1),
        mask_token=params["mask_token"],
        encoder=stack(params["encoder"]),
        decoder=stack(params["decoder"]),
    )


# ----------------------------------------------------------------------------
if __name__ == "__main__":
    # Small config consistent with the module (scaled-down hyperparameters).
    PATCH = (2, 2, 2)      # patch_size
    EMBED = 32             # embed_dim
    ENC_DEPTH = 2          # encoder_depth
    DEC_DIM = 16           # decoder_dim
    DEC_DEPTH = 1          # decoder_depth
    HEADS = 4              # num_heads
    MASK_RATIO = 0.75
    FFN = 64               # dim_feedforward (PyTorch default is 2048; scaled)
    B, D, H, W = 2, 8, 8, 8

    root = jax.random.PRNGKey(0)
    k_param, k_x, k_mask = jax.random.split(root, 3)

    raw_params = init_params(k_param, patch_size=PATCH, embed_dim=EMBED,
                             enc_depth=ENC_DEPTH, dec_dim=DEC_DIM,
                             dec_depth=DEC_DEPTH, ffn_dim=FFN)
    params = prepare_params(raw_params)

    # Input: NCDHW, single channel (matches nn.Conv3d(1, embed_dim, ...)).
    x = jax.random.normal(k_x, (B, 1, D, H, W), jnp.float32)

    forward = jax.jit(functools.partial(
        mae_vit_forward, mask_ratio=MASK_RATIO, patch_size=PATCH,
        num_heads=HEADS))

    pred, mask_idx = forward(params, x, k_mask)
    jax.block_until_ready((pred, mask_idx))

    N = (D // PATCH[0]) * (H // PATCH[1]) * (W // PATCH[2])
    num_mask = int(MASK_RATIO * N)
    patch_vol = PATCH[0] * PATCH[1] * PATCH[2]
    assert pred.shape == (B, N, patch_vol), pred.shape
    assert mask_idx.shape == (B, num_mask), mask_idx.shape
    assert bool(jnp.all(jnp.isfinite(pred)))

    print("KERNEL_OK")
</pallas_src>

<mosaic_0001>
module attributes {stable_mosaic.version = 11 : i64} {
  func.func @_stack_kernel(%arg0: i32, %arg1: i32, %arg2: memref<1x16x8xf32, #tpu.memory_space<vmem>>, %arg3: memref<8x32xbf16, #tpu.memory_space<vmem>>, %arg4: memref<1x32xf32, #tpu.memory_space<vmem>>, %arg5: memref<1x32x96xbf16, #tpu.memory_space<vmem>>, %arg6: memref<1x1x96xf32, #tpu.memory_space<vmem>>, %arg7: memref<1x32x32xbf16, #tpu.memory_space<vmem>>, %arg8: memref<1x1x32xf32, #tpu.memory_space<vmem>>, %arg9: memref<1x1x32xf32, #tpu.memory_space<vmem>>, %arg10: memref<1x1x32xf32, #tpu.memory_space<vmem>>, %arg11: memref<1x32x64xbf16, #tpu.memory_space<vmem>>, %arg12: memref<1x1x64xf32, #tpu.memory_space<vmem>>, %arg13: memref<1x64x32xbf16, #tpu.memory_space<vmem>>, %arg14: memref<1x1x32xf32, #tpu.memory_space<vmem>>, %arg15: memref<1x1x32xf32, #tpu.memory_space<vmem>>, %arg16: memref<1x1x32xf32, #tpu.memory_space<vmem>>, %arg17: memref<32x16xbf16, #tpu.memory_space<vmem>>, %arg18: memref<1x16xf32, #tpu.memory_space<vmem>>, %arg19: memref<1x16x16xf32, #tpu.memory_space<vmem>>, %arg20: memref<16x32xf32, #tpu.memory_space<vmem>>) attributes {dimension_semantics = [#tpu.dimension_semantics<parallel>, #tpu.dimension_semantics<arbitrary>], iteration_bounds = array<i64: 2, 2>, scalar_prefetch = 0 : i64, scratch_operands = 1 : i64, tpu.core_type = #tpu.core_type<tc>, window_params = [{transform_indices = @transform_0, window_bounds = array<i64: 1, 16, 8>}, {pipeline_mode = #tpu.pipeline_mode<synchronous>, transform_indices = @transform_1, window_bounds = array<i64: 8, 32>}, {pipeline_mode = #tpu.pipeline_mode<synchronous>, transform_indices = @transform_2, window_bounds = array<i64: 1, 32>}, {transform_indices = @transform_3, window_bounds = array<i64: 1, 32, 96>}, {transform_indices = @transform_4, window_bounds = array<i64: 1, 1, 96>}, {transform_indices = @transform_5, window_bounds = array<i64: 1, 32, 32>}, {transform_indices = @transform_6, window_bounds = array<i64: 1, 1, 32>}, {transform_indices = @transform_7, window_bounds = array<i64: 1, 1, 32>}, {transform_indices = @transform_8, window_bounds = array<i64: 1, 1, 32>}, {transform_indices = @transform_9, window_bounds = array<i64: 1, 32, 64>}, {transform_indices = @transform_10, window_bounds = array<i64: 1, 1, 64>}, {transform_indices = @transform_11, window_bounds = array<i64: 1, 64, 32>}, {transform_indices = @transform_12, window_bounds = array<i64: 1, 1, 32>}, {transform_indices = @transform_13, window_bounds = array<i64: 1, 1, 32>}, {transform_indices = @transform_14, window_bounds = array<i64: 1, 1, 32>}, {pipeline_mode = #tpu.pipeline_mode<synchronous>, transform_indices = @transform_15, window_bounds = array<i64: 32, 16>}, {pipeline_mode = #tpu.pipeline_mode<synchronous>, transform_indices = @transform_16, window_bounds = array<i64: 1, 16>}, {transform_indices = @transform_17, window_bounds = array<i64: 1, 16, 16>}]} {
    %c0_i32 = arith.constant 0 : i32
    %0 = arith.cmpi eq, %arg1, %c0_i32 : i32
    %1 = arith.extui %0 : i1 to i32
    %c0_i32_0 = arith.constant 0 : i32
    %2 = arith.cmpi ne, %1, %c0_i32_0 : i32
    scf.if %2 {
      %c0_79 = arith.constant 0 : index
      %c0_80 = arith.constant 0 : index
      %c0_81 = arith.constant 0 : index
      %184 = vector.load %arg2[%c0_79, %c0_80, %c0_81] : memref<1x16x8xf32, #tpu.memory_space<vmem>>, vector<1x16x8xf32>
      %185 = vector.shape_cast %184 : vector<1x16x8xf32> to vector<16x8xf32>
      %186 = arith.truncf %185 : vector<16x8xf32> to vector<16x8xbf16>
      %c0_82 = arith.constant 0 : index
      %c0_83 = arith.constant 0 : index
      %187 = vector.load %arg3[%c0_82, %c0_83] : memref<8x32xbf16, #tpu.memory_space<vmem>>, vector<8x32xbf16>
      %cst_84 = arith.constant dense<0.000000e+00> : vector<16x32xf32>
      %188 = tpu.matmul %186, %187, %cst_84 {dimension_numbers = #tpu.dot_dimension_numbers<[1], [0], [0], [1], [0, 0, 1, 1], [], []>} : vector<16x8xbf16>, vector<8x32xbf16>, vector<16x32xf32> -> vector<16x32xf32>
      %c0_85 = arith.constant 0 : index
      %c0_86 = arith.constant 0 : index
      %189 = vector.load %arg4[%c0_85, %c0_86] : memref<1x32xf32, #tpu.memory_space<vmem>>, vector<1x32xf32>
      %190 = vector.broadcast %189 : vector<1x32xf32> to vector<16x32xf32>
      %191 = arith.addf %188, %190 : vector<16x32xf32>
      %c0_87 = arith.constant 0 : index
      %c0_88 = arith.constant 0 : index
      %192 = vector.load %arg20[%c0_87, %c0_88] : memref<16x32xf32, #tpu.memory_space<vmem>>, vector<16x32xf32>
      tpu.vector_store %arg20[%c0_87, %c0_88], %191 {strides = array<i32>} : memref<16x32xf32, #tpu.memory_space<vmem>>, vector<16x32xf32>,
    } else {
    }
    %c0 = arith.constant 0 : index
    %c0_1 = arith.constant 0 : index
    %3 = vector.load %arg20[%c0, %c0_1] : memref<16x32xf32, #tpu.memory_space<vmem>>, vector<16x32xf32>
    %4 = arith.truncf %3 : vector<16x32xf32> to vector<16x32xbf16>
    %c0_2 = arith.constant 0 : index
    %c0_3 = arith.constant 0 : index
    %c0_4 = arith.constant 0 : index
    %5 = vector.load %arg5[%c0_2, %c0_3, %c0_4] : memref<1x32x96xbf16, #tpu.memory_space<vmem>>, vector<1x32x96xbf16>
    %6 = vector.shape_cast %5 : vector<1x32x96xbf16> to vector<32x96xbf16>
    %cst = arith.constant dense<0.000000e+00> : vector<16x96xf32>
    %7 = tpu.matmul %4, %6, %cst {dimension_numbers = #tpu.dot_dimension_numbers<[1], [0], [0], [1], [0, 0, 1, 1], [], []>} : vector<16x32xbf16>, vector<32x96xbf16>, vector<16x96xf32> -> vector<16x96xf32>
    %c0_5 = arith.constant 0 : index
    %c0_6 = arith.constant 0 : index
    %c0_7 = arith.constant 0 : index
    %8 = vector.load %arg6[%c0_5, %c0_6, %c0_7] : memref<1x1x96xf32, #tpu.memory_space<vmem>>, vector<1x1x96xf32>
    %9 = vector.shape_cast %8 : vector<1x1x96xf32> to vector<1x96xf32>
    %10 = vector.broadcast %9 : vector<1x96xf32> to vector<16x96xf32>
    %11 = arith.addf %7, %10 : vector<16x96xf32>
    %12 = arith.truncf %11 : vector<16x96xf32> to vector<16x96xbf16>
    %c0_8 = arith.constant 0 : index
    %c0_9 = arith.constant 0 : index
    %c0_10 = arith.constant 0 : index
    %13 = vector.load %arg7[%c0_8, %c0_9, %c0_10] : memref<1x32x32xbf16, #tpu.memory_space<vmem>>, vector<1x32x32xbf16>
    %14 = vector.shape_cast %13 : vector<1x32x32xbf16> to vector<32x32xbf16>
    %cst_11 = arith.constant 0.000000e+00 : f32
    %15 = vector.broadcast %cst_11 : f32 to vector<16x32xf32>
    %16 = vector.extract_strided_slice %12 {offsets = [0, 0], sizes = [16, 8], strides = [1, 1]} : vector<16x96xbf16> to vector<16x8xbf16>
    %17 = vector.extract_strided_slice %12 {offsets = [0, 32], sizes = [16, 8], strides = [1, 1]} : vector<16x96xbf16> to vector<16x8xbf16>
    %18 = vector.extract_strided_slice %12 {offsets = [0, 64], sizes = [16, 8], strides = [1, 1]} : vector<16x96xbf16> to vector<16x8xbf16>
    %cst_12 = arith.constant dense<0.000000e+00> : vector<16x16xf32>
    %19 = tpu.matmul %16, %17, %cst_12 {dimension_numbers = #tpu.dot_dimension_numbers<[1], [1], [0], [0], [0, 0, 1, 0], [], []>} : vector<16x8xbf16>, vector<16x8xbf16>, vector<16x16xf32> -> vector<16x16xf32>
    %cst_13 = arith.constant 0.353553385 : f32
    %20 = vector.broadcast %cst_13 : f32 to vector<16x16xf32>
    %21 = arith.mulf %19, %20 : vector<16x16xf32>
    %cst_14 = arith.constant dense<0xFF800000> : vector<16xf32>
    %22 = vector.multi_reduction <maximumf>, %21, %cst_14 [1] : vector<16x16xf32> to vector<16xf32>
    %23 = vector.shape_cast %22 : vector<16xf32> to vector<16x1xf32>
    %24 = vector.broadcast %23 : vector<16x1xf32> to vector<16x16xf32>
    %25 = arith.subf %21, %24 : vector<16x16xf32>
    %26 = math.exp %25 : vector<16x16xf32>
    %cst_15 = arith.constant dense<0.000000e+00> : vector<16xf32>
    %27 = vector.multi_reduction <add>, %26, %cst_15 [1] : vector<16x16xf32> to vector<16xf32>
    %28 = vector.shape_cast %27 : vector<16xf32> to vector<16x1xf32>
    %29 = tpu.reciprocal %28 {approx = true} : vector<16x1xf32> -> vector<16x1xf32>
    %30 = vector.broadcast %29 : vector<16x1xf32> to vector<16x16xf32>
    %31 = arith.mulf %26, %30 : vector<16x16xf32>
    %32 = arith.truncf %31 : vector<16x16xf32> to vector<16x16xbf16>
    %cst_16 = arith.constant dense<0.000000e+00> : vector<16x8xf32>
    %33 = tpu.matmul %32, %18, %cst_16 {dimension_numbers = #tpu.dot_dimension_numbers<[1], [0], [0], [1], [0, 0, 1, 1], [], []>} : vector<16x16xbf16>, vector<16x8xbf16>, vector<16x8xf32> -> vector<16x8xf32>
    %34 = arith.truncf %33 : vector<16x8xf32> to vector<16x8xbf16>
    %35 = vector.extract_strided_slice %14 {offsets = [0, 0], sizes = [8, 32], strides = [1, 1]} : vector<32x32xbf16> to vector<8x32xbf16>
    %cst_17 = arith.constant dense<0.000000e+00> : vector<16x32xf32>
    %36 = tpu.matmul %34, %35, %cst_17 {dimension_numbers = #tpu.dot_dimension_numbers<[1], [0], [0], [1], [0, 0, 1, 1], [], []>} : vector<16x8xbf16>, vector<8x32xbf16>, vector<16x32xf32> -> vector<16x32xf32>
    %37 = arith.addf %15, %36 : vector<16x32xf32>
    %38 = vector.extract_strided_slice %12 {offsets = [0, 8], sizes = [16, 8], strides = [1, 1]} : vector<16x96xbf16> to vector<16x8xbf16>
    %39 = vector.extract_strided_slice %12 {offsets = [0, 40], sizes = [16, 8], strides = [1, 1]} : vector<16x96xbf16> to vector<16x8xbf16>
    %40 = vector.extract_strided_slice %12 {offsets = [0, 72], sizes = [16, 8], strides = [1, 1]} : vector<16x96xbf16> to vector<16x8xbf16>
    %cst_18 = arith.constant dense<0.000000e+00> : vector<16x16xf32>
    %41 = tpu.matmul %38, %39, %cst_18 {dimension_numbers = #tpu.dot_dimension_numbers<[1], [1], [0], [0], [0, 0, 1, 0], [], []>} : vector<16x8xbf16>, vector<16x8xbf16>, vector<16x16xf32> -> vector<16x16xf32>
    %cst_19 = arith.constant 0.353553385 : f32
    %42 = vector.broadcast %cst_19 : f32 to vector<16x16xf32>
    %43 = arith.mulf %41, %42 : vector<16x16xf32>
    %cst_20 = arith.constant dense<0xFF800000> : vector<16xf32>
    %44 = vector.multi_reduction <maximumf>, %43, %cst_20 [1] : vector<16x16xf32> to vector<16xf32>
    %45 = vector.shape_cast %44 : vector<16xf32> to vector<16x1xf32>
    %46 = vector.broadcast %45 : vector<16x1xf32> to vector<16x16xf32>
    %47 = arith.subf %43, %46 : vector<16x16xf32>
    %48 = math.exp %47 : vector<16x16xf32>
    %cst_21 = arith.constant dense<0.000000e+00> : vector<16xf32>
    %49 = vector.multi_reduction <add>, %48, %cst_21 [1] : vector<16x16xf32> to vector<16xf32>
    %50 = vector.shape_cast %49 : vector<16xf32> to vector<16x1xf32>
    %51 = tpu.reciprocal %50 {approx = true} : vector<16x1xf32> -> vector<16x1xf32>
    %52 = vector.broadcast %51 : vector<16x1xf32> to vector<16x16xf32>
    %53 = arith.mulf %48, %52 : vector<16x16xf32>
    %54 = arith.truncf %53 : vector<16x16xf32> to vector<16x16xbf16>
    %cst_22 = arith.constant dense<0.000000e+00> : vector<16x8xf32>
    %55 = tpu.matmul %54, %40, %cst_22 {dimension_numbers = #tpu.dot_dimension_numbers<[1], [0], [0], [1], [0, 0, 1, 1], [], []>} : vector<16x16xbf16>, vector<16x8xbf16>, vector<16x8xf32> -> vector<16x8xf32>
    %56 = arith.truncf %55 : vector<16x8xf32> to vector<16x8xbf16>
    %57 = vector.extract_strided_slice %14 {offsets = [8, 0], sizes = [8, 32], strides = [1, 1]} : vector<32x32xbf16> to vector<8x32xbf16>
    %cst_23 = arith.constant dense<0.000000e+00> : vector<16x32xf32>
    %58 = tpu.matmul %56, %57, %cst_23 {dimension_numbers = #tpu.dot_dimension_numbers<[1], [0], [0], [1], [0, 0, 1, 1], [], []>} : vector<16x8xbf16>, vector<8x32xbf16>, vector<16x32xf32> -> vector<16x32xf32>
    %59 = arith.addf %37, %58 : vector<16x32xf32>
    %60 = vector.extract_strided_slice %12 {offsets = [0, 16], sizes = [16, 8], strides = [1, 1]} : vector<16x96xbf16> to vector<16x8xbf16>
    %61 = vector.extract_strided_slice %12 {offsets = [0, 48], sizes = [16, 8], strides = [1, 1]} : vector<16x96xbf16> to vector<16x8xbf16>
    %62 = vector.extract_strided_slice %12 {offsets = [0, 80], sizes = [16, 8], strides = [1, 1]} : vector<16x96xbf16> to vector<16x8xbf16>
    %cst_24 = arith.constant dense<0.000000e+00> : vector<16x16xf32>
    %63 = tpu.matmul %60, %61, %cst_24 {dimension_numbers = #tpu.dot_dimension_numbers<[1], [1], [0], [0], [0, 0, 1, 0], [], []>} : vector<16x8xbf16>, vector<16x8xbf16>, vector<16x16xf32> -> vector<16x16xf32>
    %cst_25 = arith.constant 0.353553385 : f32
    %64 = vector.broadcast %cst_25 : f32 to vector<16x16xf32>
    %65 = arith.mulf %63, %64 : vector<16x16xf32>
    %cst_26 = arith.constant dense<0xFF800000> : vector<16xf32>
    %66 = vector.multi_reduction <maximumf>, %65, %cst_26 [1] : vector<16x16xf32> to vector<16xf32>
    %67 = vector.shape_cast %66 : vector<16xf32> to vector<16x1xf32>
    %68 = vector.broadcast %67 : vector<16x1xf32> to vector<16x16xf32>
    %69 = arith.subf %65, %68 : vector<16x16xf32>
    %70 = math.exp %69 : vector<16x16xf32>
    %cst_27 = arith.constant dense<0.000000e+00> : vector<16xf32>
    %71 = vector.multi_reduction <add>, %70, %cst_27 [1] : vector<16x16xf32> to vector<16xf32>
    %72 = vector.shape_cast %71 : vector<16xf32> to vector<16x1xf32>
    %73 = tpu.reciprocal %72 {approx = true} : vector<16x1xf32> -> vector<16x1xf32>
    %74 = vector.broadcast %73 : vector<16x1xf32> to vector<16x16xf32>
    %75 = arith.mulf %70, %74 : vector<16x16xf32>
    %76 = arith.truncf %75 : vector<16x16xf32> to vector<16x16xbf16>
    %cst_28 = arith.constant dense<0.000000e+00> : vector<16x8xf32>
    %77 = tpu.matmul %76, %62, %cst_28 {dimension_numbers = #tpu.dot_dimension_numbers<[1], [0], [0], [1], [0, 0, 1, 1], [], []>} : vector<16x16xbf16>, vector<16x8xbf16>, vector<16x8xf32> -> vector<16x8xf32>
    %78 = arith.truncf %77 : vector<16x8xf32> to vector<16x8xbf16>
    %79 = vector.extract_strided_slice %14 {offsets = [16, 0], sizes = [8, 32], strides = [1, 1]} : vector<32x32xbf16> to vector<8x32xbf16>
    %cst_29 = arith.constant dense<0.000000e+00> : vector<16x32xf32>
    %80 = tpu.matmul %78, %79, %cst_29 {dimension_numbers = #tpu.dot_dimension_numbers<[1], [0], [0], [1], [0, 0, 1, 1], [], []>} : vector<16x8xbf16>, vector<8x32xbf16>, vector<16x32xf32> -> vector<16x32xf32>
    %81 = arith.addf %59, %80 : vector<16x32xf32>
    %82 = vector.extract_strided_slice %12 {offsets = [0, 24], sizes = [16, 8], strides = [1, 1]} : vector<16x96xbf16> to vector<16x8xbf16>
    %83 = vector.extract_strided_slice %12 {offsets = [0, 56], sizes = [16, 8], strides = [1, 1]} : vector<16x96xbf16> to vector<16x8xbf16>
    %84 = vector.extract_strided_slice %12 {offsets = [0, 88], sizes = [16, 8], strides = [1, 1]} : vector<16x96xbf16> to vector<16x8xbf16>
    %cst_30 = arith.constant dense<0.000000e+00> : vector<16x16xf32>
    %85 = tpu.matmul %82, %83, %cst_30 {dimension_numbers = #tpu.dot_dimension_numbers<[1], [1], [0], [0], [0, 0, 1, 0], [], []>} : vector<16x8xbf16>, vector<16x8xbf16>, vector<16x16xf32> -> vector<16x16xf32>
    %cst_31 = arith.constant 0.353553385 : f32
    %86 = vector.broadcast %cst_31 : f32 to vector<16x16xf32>
    %87 = arith.mulf %85, %86 : vector<16x16xf32>
    %cst_32 = arith.constant dense<0xFF800000> : vector<16xf32>
    %88 = vector.multi_reduction <maximumf>, %87, %cst_32 [1] : vector<16x16xf32> to vector<16xf32>
    %89 = vector.shape_cast %88 : vector<16xf32> to vector<16x1xf32>
    %90 = vector.broadcast %89 : vector<16x1xf32> to vector<16x16xf32>
    %91 = arith.subf %87, %90 : vector<16x16xf32>
    %92 = math.exp %91 : vector<16x16xf32>
    %cst_33 = arith.constant dense<0.000000e+00> : vector<16xf32>
    %93 = vector.multi_reduction <add>, %92, %cst_33 [1] : vector<16x16xf32> to vector<16xf32>
    %94 = vector.shape_cast %93 : vector<16xf32> to vector<16x1xf32>
    %95 = tpu.reciprocal %94 {approx = true} : vector<16x1xf32> -> vector<16x1xf32>
    %96 = vector.broadcast %95 : vector<16x1xf32> to vector<16x16xf32>
    %97 = arith.mulf %92, %96 : vector<16x16xf32>
    %98 = arith.truncf %97 : vector<16x16xf32> to vector<16x16xbf16>
    %cst_34 = arith.constant dense<0.000000e+00> : vector<16x8xf32>
    %99 = tpu.matmul %98, %84, %cst_34 {dimension_numbers = #tpu.dot_dimension_numbers<[1], [0], [0], [1], [0, 0, 1, 1], [], []>} : vector<16x16xbf16>, vector<16x8xbf16>, vector<16x8xf32> -> vector<16x8xf32>
    %100 = arith.truncf %99 : vector<16x8xf32> to vector<16x8xbf16>
    %101 = vector.extract_strided_slice %14 {offsets = [24, 0], sizes = [8, 32], strides = [1, 1]} : vector<32x32xbf16> to vector<8x32xbf16>
    %cst_35 = arith.constant dense<0.000000e+00> : vector<16x32xf32>
    %102 = tpu.matmul %100, %101, %cst_35 {dimension_numbers = #tpu.dot_dimension_numbers<[1], [0], [0], [1], [0, 0, 1, 1], [], []>} : vector<16x8xbf16>, vector<8x32xbf16>, vector<16x32xf32> -> vector<16x32xf32>
    %103 = arith.addf %81, %102 : vector<16x32xf32>
    %c0_36 = arith.constant 0 : index
    %c0_37 = arith.constant 0 : index
    %c0_38 = arith.constant 0 : index
    %104 = vector.load %arg8[%c0_36, %c0_37, %c0_38] : memref<1x1x32xf32, #tpu.memory_space<vmem>>, vector<1x1x32xf32>
    %105 = vector.shape_cast %104 : vector<1x1x32xf32> to vector<1x32xf32>
    %106 = vector.broadcast %105 : vector<1x32xf32> to vector<16x32xf32>
    %107 = arith.addf %103, %106 : vector<16x32xf32>
    %108 = arith.addf %3, %107 : vector<16x32xf32>
    %c0_39 = arith.constant 0 : index
    %c0_40 = arith.constant 0 : index
    %c0_41 = arith.constant 0 : index
    %109 = vector.load %arg9[%c0_39, %c0_40, %c0_41] : memref<1x1x32xf32, #tpu.memory_space<vmem>>, vector<1x1x32xf32>
    %110 = vector.shape_cast %109 : vector<1x1x32xf32> to vector<1x32xf32>
    %c0_42 = arith.constant 0 : index
    %c0_43 = arith.constant 0 : index
    %c0_44 = arith.constant 0 : index
    %111 = vector.load %arg10[%c0_42, %c0_43, %c0_44] : memref<1x1x32xf32, #tpu.memory_space<vmem>>, vector<1x1x32xf32>
    %112 = vector.shape_cast %111 : vector<1x1x32xf32> to vector<1x32xf32>
    %cst_45 = arith.constant dense<0.000000e+00> : vector<16xf32>
    %113 = vector.multi_reduction <add>, %108, %cst_45 [1] : vector<16x32xf32> to vector<16xf32>
    %114 = vector.shape_cast %113 : vector<16xf32> to vector<16x1xf32>
    %cst_46 = arith.constant 3.200000e+01 : f32
    %115 = vector.broadcast %cst_46 : f32 to vector<16x1xf32>
    %116 = arith.divf %114, %115 : vector<16x1xf32>
    %117 = vector.broadcast %116 : vector<16x1xf32> to vector<16x32xf32>
    %118 = arith.subf %108, %117 : vector<16x32xf32>
    %119 = arith.mulf %118, %118 : vector<16x32xf32>
    %cst_47 = arith.constant dense<0.000000e+00> : vector<16xf32>
    %120 = vector.multi_reduction <add>, %119, %cst_47 [1] : vector<16x32xf32> to vector<16xf32>
    %121 = vector.shape_cast %120 : vector<16xf32> to vector<16x1xf32>
    %cst_48 = arith.constant 3.200000e+01 : f32
    %122 = vector.broadcast %cst_48 : f32 to vector<16x1xf32>
    %123 = arith.divf %121, %122 : vector<16x1xf32>
    %124 = vector.broadcast %116 : vector<16x1xf32> to vector<16x32xf32>
    %125 = arith.subf %108, %124 : vector<16x32xf32>
    %cst_49 = arith.constant 9.99999974E-6 : f32
    %126 = vector.broadcast %cst_49 : f32 to vector<16x1xf32>
    %127 = arith.addf %123, %126 : vector<16x1xf32>
    %128 = math.rsqrt %127 : vector<16x1xf32>
    %129 = vector.broadcast %128 : vector<16x1xf32> to vector<16x32xf32>
    %130 = arith.mulf %125, %129 : vector<16x32xf32>
    %131 = vector.broadcast %110 : vector<1x32xf32> to vector<16x32xf32>
    %132 = arith.mulf %130, %131 : vector<16x32xf32>
    %133 = vector.broadcast %112 : vector<1x32xf32> to vector<16x32xf32>
    %134 = arith.addf %132, %133 : vector<16x32xf32>
    %135 = arith.truncf %134 : vector<16x32xf32> to vector<16x32xbf16>
    %c0_50 = arith.constant 0 : index
    %c0_51 = arith.constant 0 : index
    %c0_52 = arith.constant 0 : index
    %136 = vector.load %arg11[%c0_50, %c0_51, %c0_52] : memref<1x32x64xbf16, #tpu.memory_space<vmem>>, vector<1x32x64xbf16>
    %137 = vector.shape_cast %136 : vector<1x32x64xbf16> to vector<32x64xbf16>
    %cst_53 = arith.constant dense<0.000000e+00> : vector<16x64xf32>
    %138 = tpu.matmul %135, %137, %cst_53 {dimension_numbers = #tpu.dot_dimension_numbers<[1], [0], [0], [1], [0, 0, 1, 1], [], []>} : vector<16x32xbf16>, vector<32x64xbf16>, vector<16x64xf32> -> vector<16x64xf32>
    %c0_54 = arith.constant 0 : index
    %c0_55 = arith.constant 0 : index
    %c0_56 = arith.constant 0 : index
    %139 = vector.load %arg12[%c0_54, %c0_55, %c0_56] : memref<1x1x64xf32, #tpu.memory_space<vmem>>, vector<1x1x64xf32>
    %140 = vector.shape_cast %139 : vector<1x1x64xf32> to vector<1x64xf32>
    %141 = vector.broadcast %140 : vector<1x64xf32> to vector<16x64xf32>
    %142 = arith.addf %138, %141 : vector<16x64xf32>
    %cst_57 = arith.constant 0.000000e+00 : f32
    %143 = vector.broadcast %cst_57 : f32 to vector<16x64xf32>
    %144 = arith.maximumf %142, %143 : vector<16x64xf32>
    %145 = arith.truncf %144 : vector<16x64xf32> to vector<16x64xbf16>
    %c0_58 = arith.constant 0 : index
    %c0_59 = arith.constant 0 : index
    %c0_60 = arith.constant 0 : index
    %146 = vector.load %arg13[%c0_58, %c0_59, %c0_60] : memref<1x64x32xbf16, #tpu.memory_space<vmem>>, vector<1x64x32xbf16>
    %147 = vector.shape_cast %146 : vector<1x64x32xbf16> to vector<64x32xbf16>
    %cst_61 = arith.constant dense<0.000000e+00> : vector<16x32xf32>
    %148 = tpu.matmul %145, %147, %cst_61 {dimension_numbers = #tpu.dot_dimension_numbers<[1], [0], [0], [1], [0, 0, 1, 1], [], []>} : vector<16x64xbf16>, vector<64x32xbf16>, vector<16x32xf32> -> vector<16x32xf32>
    %c0_62 = arith.constant 0 : index
    %c0_63 = arith.constant 0 : index
    %c0_64 = arith.constant 0 : index
    %149 = vector.load %arg14[%c0_62, %c0_63, %c0_64] : memref<1x1x32xf32, #tpu.memory_space<vmem>>, vector<1x1x32xf32>
    %150 = vector.shape_cast %149 : vector<1x1x32xf32> to vector<1x32xf32>
    %151 = vector.broadcast %150 : vector<1x32xf32> to vector<16x32xf32>
    %152 = arith.addf %148, %151 : vector<16x32xf32>
    %153 = arith.addf %134, %152 : vector<16x32xf32>
    %c0_65 = arith.constant 0 : index
    %c0_66 = arith.constant 0 : index
    %c0_67 = arith.constant 0 : index
    %154 = vector.load %arg15[%c0_65, %c0_66, %c0_67] : memref<1x1x32xf32, #tpu.memory_space<vmem>>, vector<1x1x32xf32>
    %155 = vector.shape_cast %154 : vector<1x1x32xf32> to vector<1x32xf32>
    %c0_68 = arith.constant 0 : index
    %c0_69 = arith.constant 0 : index
    %c0_70 = arith.constant 0 : index
    %156 = vector.load %arg16[%c0_68, %c0_69, %c0_70] : memref<1x1x32xf32, #tpu.memory_space<vmem>>, vector<1x1x32xf32>
    %157 = vector.shape_cast %156 : vector<1x1x32xf32> to vector<1x32xf32>
    %cst_71 = arith.constant dense<0.000000e+00> : vector<16xf32>
    %158 = vector.multi_reduction <add>, %153, %cst_71 [1] : vector<16x32xf32> to vector<16xf32>
    %159 = vector.shape_cast %158 : vector<16xf32> to vector<16x1xf32>
    %cst_72 = arith.constant 3.200000e+01 : f32
    %160 = vector.broadcast %cst_72 : f32 to vector<16x1xf32>
    %161 = arith.divf %159, %160 : vector<16x1xf32>
    %162 = vector.broadcast %161 : vector<16x1xf32> to vector<16x32xf32>
    %163 = arith.subf %153, %162 : vector<16x32xf32>
    %164 = arith.mulf %163, %163 : vector<16x32xf32>
    %cst_73 = arith.constant dense<0.000000e+00> : vector<16xf32>
    %165 = vector.multi_reduction <add>, %164, %cst_73 [1] : vector<16x32xf32> to vector<16xf32>
    %166 = vector.shape_cast %165 : vector<16xf32> to vector<16x1xf32>
    %cst_74 = arith.constant 3.200000e+01 : f32
    %167 = vector.broadcast %cst_74 : f32 to vector<16x1xf32>
    %168 = arith.divf %166, %167 : vector<16x1xf32>
    %169 = vector.broadcast %161 : vector<16x1xf32> to vector<16x32xf32>
    %170 = arith.subf %153, %169 : vector<16x32xf32>
    %cst_75 = arith.constant 9.99999974E-6 : f32
    %171 = vector.broadcast %cst_75 : f32 to vector<16x1xf32>
    %172 = arith.addf %168, %171 : vector<16x1xf32>
    %173 = math.rsqrt %172 : vector<16x1xf32>
    %174 = vector.broadcast %173 : vector<16x1xf32> to vector<16x32xf32>
    %175 = arith.mulf %170, %174 : vector<16x32xf32>
    %176 = vector.broadcast %155 : vector<1x32xf32> to vector<16x32xf32>
    %177 = arith.mulf %175, %176 : vector<16x32xf32>
    %178 = vector.broadcast %157 : vector<1x32xf32> to vector<16x32xf32>
    %179 = arith.addf %177, %178 : vector<16x32xf32>
    %c0_76 = arith.constant 0 : index
    %c0_77 = arith.constant 0 : index
    %180 = vector.load %arg20[%c0_76, %c0_77] : memref<16x32xf32, #tpu.memory_space<vmem>>, vector<16x32xf32>
    tpu.vector_store %arg20[%c0_76, %c0_77], %179 {strides = array<i32>} : memref<16x32xf32, #tpu.memory_space<vmem>>, vector<16x32xf32>,
    %c1_i32 = arith.constant 1 : i32
    %181 = arith.cmpi eq, %arg1, %c1_i32 : i32
    %182 = arith.extui %181 : i1 to i32
    %c0_i32_78 = arith.constant 0 : i32
    %183 = arith.cmpi ne, %182, %c0_i32_78 : i32
    scf.if %183 {
      %184 = arith.truncf %179 : vector<16x32xf32> to vector<16x32xbf16>
      %c0_79 = arith.constant 0 : index
      %c0_80 = arith.constant 0 : index
      %185 = vector.load %arg17[%c0_79, %c0_80] : memref<32x16xbf16, #tpu.memory_space<vmem>>, vector<32x16xbf16>
      %cst_81 = arith.constant dense<0.000000e+00> : vector<16x16xf32>
      %186 = tpu.matmul %184, %185, %cst_81 {dimension_numbers = #tpu.dot_dimension_numbers<[1], [0], [0], [1], [0, 0, 1, 1], [], []>} : vector<16x32xbf16>, vector<32x16xbf16>, vector<16x16xf32> -> vector<16x16xf32>
      %c0_82 = arith.constant 0 : index
      %c0_83 = arith.constant 0 : index
      %187 = vector.load %arg18[%c0_82, %c0_83] : memref<1x16xf32, #tpu.memory_space<vmem>>, vector<1x16xf32>
      %188 = vector.broadcast %187 : vector<1x16xf32> to vector<16x16xf32>
      %189 = arith.addf %186, %188 : vector<16x16xf32>
      %c0_84 = arith.constant 0 : index
      %c0_85 = arith.constant 0 : index
      %c0_86 = arith.constant 0 : index
      %190 = vector.load %arg19[%c0_84, %c0_85, %c0_86] : memref<1x16x16xf32, #tpu.memory_space<vmem>>, vector<1x16x16xf32>
      %191 = vector.shape_cast %190 : vector<1x16x16xf32> to vector<16x16xf32>
      %192 = vector.shape_cast %189 : vector<16x16xf32> to vector<1x16x16xf32>
      tpu.vector_store %arg19[%c0_84, %c0_85, %c0_86], %192 {strides = array<i32>} : memref<1x16x16xf32, #tpu.memory_space<vmem>>, vector<1x16x16xf32>,
    } else {
    }
    return
  }
  func.func @transform_0(%arg0: i32, %arg1: i32) -> (i32, i32, i32) {
    %c0_i32 = arith.constant 0 : i32
    %c0_i32_0 = arith.constant 0 : i32
    %c0_i32_1 = arith.constant 0 : i32
    return %arg0, %c0_i32, %c0_i32_0 : i32, i32, i32
  }
  func.func @transform_1(%arg0: i32, %arg1: i32) -> (i32, i32) {
    %c0_i32 = arith.constant 0 : i32
    %c0_i32_0 = arith.constant 0 : i32
    %c0_i32_1 = arith.constant 0 : i32
    return %c0_i32, %c0_i32_0 : i32, i32
  }
  func.func @transform_2(%arg0: i32, %arg1: i32) -> (i32, i32) {
    %c0_i32 = arith.constant 0 : i32
    %c0_i32_0 = arith.constant 0 : i32
    %c0_i32_1 = arith.constant 0 : i32
    return %c0_i32, %c0_i32_0 : i32, i32
  }
  func.func @transform_3(%arg0: i32, %arg1: i32) -> (i32, i32, i32) {
    %c0_i32 = arith.constant 0 : i32
    %c0_i32_0 = arith.constant 0 : i32
    %c0_i32_1 = arith.constant 0 : i32
    return %arg1, %c0_i32, %c0_i32_0 : i32, i32, i32
  }
  func.func @transform_4(%arg0: i32, %arg1: i32) -> (i32, i32, i32) {
    %c0_i32 = arith.constant 0 : i32
    %c0_i32_0 = arith.constant 0 : i32
    %c0_i32_1 = arith.constant 0 : i32
    return %arg1, %c0_i32, %c0_i32_0 : i32, i32, i32
  }
  func.func @transform_5(%arg0: i32, %arg1: i32) -> (i32, i32, i32) {
    %c0_i32 = arith.constant 0 : i32
    %c0_i32_0 = arith.constant 0 : i32
    %c0_i32_1 = arith.constant 0 : i32
    return %arg1, %c0_i32, %c0_i32_0 : i32, i32, i32
  }
  func.func @transform_6(%arg0: i32, %arg1: i32) -> (i32, i32, i32) {
    %c0_i32 = arith.constant 0 : i32
    %c0_i32_0 = arith.constant 0 : i32
    %c0_i32_1 = arith.constant 0 : i32
    return %arg1, %c0_i32, %c0_i32_0 : i32, i32, i32
  }
  func.func @transform_7(%arg0: i32, %arg1: i32) -> (i32, i32, i32) {
    %c0_i32 = arith.constant 0 : i32
    %c0_i32_0 = arith.constant 0 : i32
    %c0_i32_1 = arith.constant 0 : i32
    return %arg1, %c0_i32, %c0_i32_0 : i32, i32, i32
  }
  func.func @transform_8(%arg0: i32, %arg1: i32) -> (i32, i32, i32) {
    %c0_i32 = arith.constant 0 : i32
    %c0_i32_0 = arith.constant 0 : i32
    %c0_i32_1 = arith.constant 0 : i32
    return %arg1, %c0_i32, %c0_i32_0 : i32, i32, i32
  }
  func.func @transform_9(%arg0: i32, %arg1: i32) -> (i32, i32, i32) {
    %c0_i32 = arith.constant 0 : i32
    %c0_i32_0 = arith.constant 0 : i32
    %c0_i32_1 = arith.constant 0 : i32
    return %arg1, %c0_i32, %c0_i32_0 : i32, i32, i32
  }
  func.func @transform_10(%arg0: i32, %arg1: i32) -> (i32, i32, i32) {
    %c0_i32 = arith.constant 0 : i32
    %c0_i32_0 = arith.constant 0 : i32
    %c0_i32_1 = arith.constant 0 : i32
    return %arg1, %c0_i32, %c0_i32_0 : i32, i32, i32
  }
  func.func @transform_11(%arg0: i32, %arg1: i32) -> (i32, i32, i32) {
    %c0_i32 = arith.constant 0 : i32
    %c0_i32_0 = arith.constant 0 : i32
    %c0_i32_1 = arith.constant 0 : i32
    return %arg1, %c0_i32, %c0_i32_0 : i32, i32, i32
  }
  func.func @transform_12(%arg0: i32, %arg1: i32) -> (i32, i32, i32) {
    %c0_i32 = arith.constant 0 : i32
    %c0_i32_0 = arith.constant 0 : i32
    %c0_i32_1 = arith.constant 0 : i32
    return %arg1, %c0_i32, %c0_i32_0 : i32, i32, i32
  }
  func.func @transform_13(%arg0: i32, %arg1: i32) -> (i32, i32, i32) {
    %c0_i32 = arith.constant 0 : i32
    %c0_i32_0 = arith.constant 0 : i32
    %c0_i32_1 = arith.constant 0 : i32
    return %arg1, %c0_i32, %c0_i32_0 : i32, i32, i32
  }
  func.func @transform_14(%arg0: i32, %arg1: i32) -> (i32, i32, i32) {
    %c0_i32 = arith.constant 0 : i32
    %c0_i32_0 = arith.constant 0 : i32
    %c0_i32_1 = arith.constant 0 : i32
    return %arg1, %c0_i32, %c0_i32_0 : i32, i32, i32
  }
  func.func @transform_15(%arg0: i32, %arg1: i32) -> (i32, i32) {
    %c0_i32 = arith.constant 0 : i32
    %c0_i32_0 = arith.constant 0 : i32
    %c0_i32_1 = arith.constant 0 : i32
    return %c0_i32, %c0_i32_0 : i32, i32
  }
  func.func @transform_16(%arg0: i32, %arg1: i32) -> (i32, i32) {
    %c0_i32 = arith.constant 0 : i32
    %c0_i32_0 = arith.constant 0 : i32
    %c0_i32_1 = arith.constant 0 : i32
    return %c0_i32, %c0_i32_0 : i32, i32
  }
  func.func @transform_17(%arg0: i32, %arg1: i32) -> (i32, i32, i32) {
    %c0_i32 = arith.constant 0 : i32
    %c0_i32_0 = arith.constant 0 : i32
    %c0_i32_1 = arith.constant 0 : i32
    return %arg0, %c0_i32, %c0_i32_0 : i32, i32, i32
  }
}

module attributes {stable_mosaic.version = 11 : i64} {
  func.func @_stack_kernel(%arg0: i32, %arg1: i32, %arg2: memref<1x64x16xf32, #tpu.memory_space<vmem>>, %arg3: memref<8x32xbf16, #tpu.memory_space<vmem>>, %arg4: memref<1x32xf32, #tpu.memory_space<vmem>>, %arg5: memref<1x16x48xbf16, #tpu.memory_space<vmem>>, %arg6: memref<1x1x48xf32, #tpu.memory_space<vmem>>, %arg7: memref<1x16x16xbf16, #tpu.memory_space<vmem>>, %arg8: memref<1x1x16xf32, #tpu.memory_space<vmem>>, %arg9: memref<1x1x16xf32, #tpu.memory_space<vmem>>, %arg10: memref<1x1x16xf32, #tpu.memory_space<vmem>>, %arg11: memref<1x16x64xbf16, #tpu.memory_space<vmem>>, %arg12: memref<1x1x64xf32, #tpu.memory_space<vmem>>, %arg13: memref<1x64x16xbf16, #tpu.memory_space<vmem>>, %arg14: memref<1x1x16xf32, #tpu.memory_space<vmem>>, %arg15: memref<1x1x16xf32, #tpu.memory_space<vmem>>, %arg16: memref<1x1x16xf32, #tpu.memory_space<vmem>>, %arg17: memref<16x8xbf16, #tpu.memory_space<vmem>>, %arg18: memref<1x8xf32, #tpu.memory_space<vmem>>, %arg19: memref<1x64x8xf32, #tpu.memory_space<vmem>>, %arg20: memref<64x16xf32, #tpu.memory_space<vmem>>) attributes {dimension_semantics = [#tpu.dimension_semantics<parallel>, #tpu.dimension_semantics<arbitrary>], iteration_bounds = array<i64: 2, 1>, scalar_prefetch = 0 : i64, scratch_operands = 1 : i64, tpu.core_type = #tpu.core_type<tc>, window_params = [{transform_indices = @transform_0, window_bounds = array<i64: 1, 64, 16>}, {pipeline_mode = #tpu.pipeline_mode<synchronous>, transform_indices = @transform_1, window_bounds = array<i64: 8, 32>}, {pipeline_mode = #tpu.pipeline_mode<synchronous>, transform_indices = @transform_2, window_bounds = array<i64: 1, 32>}, {transform_indices = @transform_3, window_bounds = array<i64: 1, 16, 48>}, {transform_indices = @transform_4, window_bounds = array<i64: 1, 1, 48>}, {transform_indices = @transform_5, window_bounds = array<i64: 1, 16, 16>}, {transform_indices = @transform_6, window_bounds = array<i64: 1, 1, 16>}, {transform_indices = @transform_7, window_bounds = array<i64: 1, 1, 16>}, {transform_indices = @transform_8, window_bounds = array<i64: 1, 1, 16>}, {transform_indices = @transform_9, window_bounds = array<i64: 1, 16, 64>}, {transform_indices = @transform_10, window_bounds = array<i64: 1, 1, 64>}, {transform_indices = @transform_11, window_bounds = array<i64: 1, 64, 16>}, {transform_indices = @transform_12, window_bounds = array<i64: 1, 1, 16>}, {transform_indices = @transform_13, window_bounds = array<i64: 1, 1, 16>}, {transform_indices = @transform_14, window_bounds = array<i64: 1, 1, 16>}, {pipeline_mode = #tpu.pipeline_mode<synchronous>, transform_indices = @transform_15, window_bounds = array<i64: 16, 8>}, {pipeline_mode = #tpu.pipeline_mode<synchronous>, transform_indices = @transform_16, window_bounds = array<i64: 1, 8>}, {transform_indices = @transform_17, window_bounds = array<i64: 1, 64, 8>}]} {
    %c0_i32 = arith.constant 0 : i32
    %0 = arith.cmpi eq, %arg1, %c0_i32 : i32
    %1 = arith.extui %0 : i1 to i32
    %c0_i32_0 = arith.constant 0 : i32
    %2 = arith.cmpi ne, %1, %c0_i32_0 : i32
    scf.if %2 {
      %c0_80 = arith.constant 0 : index
      %c0_81 = arith.constant 0 : index
      %c0_82 = arith.constant 0 : index
      %184 = vector.load %arg2[%c0_80, %c0_81, %c0_82] : memref<1x64x16xf32, #tpu.memory_space<vmem>>, vector<1x64x16xf32>
      %185 = vector.shape_cast %184 : vector<1x64x16xf32> to vector<64x16xf32>
      %c0_83 = arith.constant 0 : index
      %c0_84 = arith.constant 0 : index
      %186 = vector.load %arg20[%c0_83, %c0_84] : memref<64x16xf32, #tpu.memory_space<vmem>>, vector<64x16xf32>
      tpu.vector_store %arg20[%c0_83, %c0_84], %185 {strides = array<i32>} : memref<64x16xf32, #tpu.memory_space<vmem>>, vector<64x16xf32>,
    } else {
    }
    %c0 = arith.constant 0 : index
    %c0_1 = arith.constant 0 : index
    %3 = vector.load %arg20[%c0, %c0_1] : memref<64x16xf32, #tpu.memory_space<vmem>>, vector<64x16xf32>
    %4 = arith.truncf %3 : vector<64x16xf32> to vector<64x16xbf16>
    %c0_2 = arith.constant 0 : index
    %c0_3 = arith.constant 0 : index
    %c0_4 = arith.constant 0 : index
    %5 = vector.load %arg5[%c0_2, %c0_3, %c0_4] : memref<1x16x48xbf16, #tpu.memory_space<vmem>>, vector<1x16x48xbf16>
    %6 = vector.shape_cast %5 : vector<1x16x48xbf16> to vector<16x48xbf16>
    %cst = arith.constant dense<0.000000e+00> : vector<64x48xf32>
    %7 = tpu.matmul %4, %6, %cst {dimension_numbers = #tpu.dot_dimension_numbers<[1], [0], [0], [1], [0, 0, 1, 1], [], []>} : vector<64x16xbf16>, vector<16x48xbf16>, vector<64x48xf32> -> vector<64x48xf32>
    %c0_5 = arith.constant 0 : index
    %c0_6 = arith.constant 0 : index
    %c0_7 = arith.constant 0 : index
    %8 = vector.load %arg6[%c0_5, %c0_6, %c0_7] : memref<1x1x48xf32, #tpu.memory_space<vmem>>, vector<1x1x48xf32>
    %9 = vector.shape_cast %8 : vector<1x1x48xf32> to vector<1x48xf32>
    %10 = vector.broadcast %9 : vector<1x48xf32> to vector<64x48xf32>
    %11 = arith.addf %7, %10 : vector<64x48xf32>
    %12 = arith.truncf %11 : vector<64x48xf32> to vector<64x48xbf16>
    %c0_8 = arith.constant 0 : index
    %c0_9 = arith.constant 0 : index
    %c0_10 = arith.constant 0 : index
    %13 = vector.load %arg7[%c0_8, %c0_9, %c0_10] : memref<1x16x16xbf16, #tpu.memory_space<vmem>>, vector<1x16x16xbf16>
    %14 = vector.shape_cast %13 : vector<1x16x16xbf16> to vector<16x16xbf16>
    %cst_11 = arith.constant 0.000000e+00 : f32
    %15 = vector.broadcast %cst_11 : f32 to vector<64x16xf32>
    %16 = vector.extract_strided_slice %12 {offsets = [0, 0], sizes = [64, 4], strides = [1, 1]} : vector<64x48xbf16> to vector<64x4xbf16>
    %17 = vector.extract_strided_slice %12 {offsets = [0, 16], sizes = [64, 4], strides = [1, 1]} : vector<64x48xbf16> to vector<64x4xbf16>
    %18 = vector.extract_strided_slice %12 {offsets = [0, 32], sizes = [64, 4], strides = [1, 1]} : vector<64x48xbf16> to vector<64x4xbf16>
    %cst_12 = arith.constant dense<0.000000e+00> : vector<64x64xf32>
    %19 = tpu.matmul %16, %17, %cst_12 {dimension_numbers = #tpu.dot_dimension_numbers<[1], [1], [0], [0], [0, 0, 1, 0], [], []>} : vector<64x4xbf16>, vector<64x4xbf16>, vector<64x64xf32> -> vector<64x64xf32>
    %cst_13 = arith.constant 5.000000e-01 : f32
    %20 = vector.broadcast %cst_13 : f32 to vector<64x64xf32>
    %21 = arith.mulf %19, %20 : vector<64x64xf32>
    %cst_14 = arith.constant dense<0xFF800000> : vector<64xf32>
    %22 = vector.multi_reduction <maximumf>, %21, %cst_14 [1] : vector<64x64xf32> to vector<64xf32>
    %23 = vector.shape_cast %22 : vector<64xf32> to vector<64x1xf32>
    %24 = vector.broadcast %23 : vector<64x1xf32> to vector<64x64xf32>
    %25 = arith.subf %21, %24 : vector<64x64xf32>
    %26 = math.exp %25 : vector<64x64xf32>
    %cst_15 = arith.constant dense<0.000000e+00> : vector<64xf32>
    %27 = vector.multi_reduction <add>, %26, %cst_15 [1] : vector<64x64xf32> to vector<64xf32>
    %28 = vector.shape_cast %27 : vector<64xf32> to vector<64x1xf32>
    %29 = tpu.reciprocal %28 {approx = true} : vector<64x1xf32> -> vector<64x1xf32>
    %30 = vector.broadcast %29 : vector<64x1xf32> to vector<64x64xf32>
    %31 = arith.mulf %26, %30 : vector<64x64xf32>
    %32 = arith.truncf %31 : vector<64x64xf32> to vector<64x64xbf16>
    %cst_16 = arith.constant dense<0.000000e+00> : vector<64x4xf32>
    %33 = tpu.matmul %32, %18, %cst_16 {dimension_numbers = #tpu.dot_dimension_numbers<[1], [0], [0], [1], [0, 0, 1, 1], [], []>} : vector<64x64xbf16>, vector<64x4xbf16>, vector<64x4xf32> -> vector<64x4xf32>
    %34 = arith.truncf %33 : vector<64x4xf32> to vector<64x4xbf16>
    %35 = vector.extract_strided_slice %14 {offsets = [0, 0], sizes = [4, 16], strides = [1, 1]} : vector<16x16xbf16> to vector<4x16xbf16>
    %cst_17 = arith.constant dense<0.000000e+00> : vector<64x16xf32>
    %36 = tpu.matmul %34, %35, %cst_17 {dimension_numbers = #tpu.dot_dimension_numbers<[1], [0], [0], [1], [0, 0, 1, 1], [], []>} : vector<64x4xbf16>, vector<4x16xbf16>, vector<64x16xf32> -> vector<64x16xf32>
    %37 = arith.addf %15, %36 : vector<64x16xf32>
    %38 = vector.extract_strided_slice %12 {offsets = [0, 4], sizes = [64, 4], strides = [1, 1]} : vector<64x48xbf16> to vector<64x4xbf16>
    %39 = vector.extract_strided_slice %12 {offsets = [0, 20], sizes = [64, 4], strides = [1, 1]} : vector<64x48xbf16> to vector<64x4xbf16>
    %40 = vector.extract_strided_slice %12 {offsets = [0, 36], sizes = [64, 4], strides = [1, 1]} : vector<64x48xbf16> to vector<64x4xbf16>
    %cst_18 = arith.constant dense<0.000000e+00> : vector<64x64xf32>
    %41 = tpu.matmul %38, %39, %cst_18 {dimension_numbers = #tpu.dot_dimension_numbers<[1], [1], [0], [0], [0, 0, 1, 0], [], []>} : vector<64x4xbf16>, vector<64x4xbf16>, vector<64x64xf32> -> vector<64x64xf32>
    %cst_19 = arith.constant 5.000000e-01 : f32
    %42 = vector.broadcast %cst_19 : f32 to vector<64x64xf32>
    %43 = arith.mulf %41, %42 : vector<64x64xf32>
    %cst_20 = arith.constant dense<0xFF800000> : vector<64xf32>
    %44 = vector.multi_reduction <maximumf>, %43, %cst_20 [1] : vector<64x64xf32> to vector<64xf32>
    %45 = vector.shape_cast %44 : vector<64xf32> to vector<64x1xf32>
    %46 = vector.broadcast %45 : vector<64x1xf32> to vector<64x64xf32>
    %47 = arith.subf %43, %46 : vector<64x64xf32>
    %48 = math.exp %47 : vector<64x64xf32>
    %cst_21 = arith.constant dense<0.000000e+00> : vector<64xf32>
    %49 = vector.multi_reduction <add>, %48, %cst_21 [1] : vector<64x64xf32> to vector<64xf32>
    %50 = vector.shape_cast %49 : vector<64xf32> to vector<64x1xf32>
    %51 = tpu.reciprocal %50 {approx = true} : vector<64x1xf32> -> vector<64x1xf32>
    %52 = vector.broadcast %51 : vector<64x1xf32> to vector<64x64xf32>
    %53 = arith.mulf %48, %52 : vector<64x64xf32>
    %54 = arith.truncf %53 : vector<64x64xf32> to vector<64x64xbf16>
    %cst_22 = arith.constant dense<0.000000e+00> : vector<64x4xf32>
    %55 = tpu.matmul %54, %40, %cst_22 {dimension_numbers = #tpu.dot_dimension_numbers<[1], [0], [0], [1], [0, 0, 1, 1], [], []>} : vector<64x64xbf16>, vector<64x4xbf16>, vector<64x4xf32> -> vector<64x4xf32>
    %56 = arith.truncf %55 : vector<64x4xf32> to vector<64x4xbf16>
    %57 = vector.extract_strided_slice %14 {offsets = [4, 0], sizes = [4, 16], strides = [1, 1]} : vector<16x16xbf16> to vector<4x16xbf16>
    %cst_23 = arith.constant dense<0.000000e+00> : vector<64x16xf32>
    %58 = tpu.matmul %56, %57, %cst_23 {dimension_numbers = #tpu.dot_dimension_numbers<[1], [0], [0], [1], [0, 0, 1, 1], [], []>} : vector<64x4xbf16>, vector<4x16xbf16>, vector<64x16xf32> -> vector<64x16xf32>
    %59 = arith.addf %37, %58 : vector<64x16xf32>
    %60 = vector.extract_strided_slice %12 {offsets = [0, 8], sizes = [64, 4], strides = [1, 1]} : vector<64x48xbf16> to vector<64x4xbf16>
    %61 = vector.extract_strided_slice %12 {offsets = [0, 24], sizes = [64, 4], strides = [1, 1]} : vector<64x48xbf16> to vector<64x4xbf16>
    %62 = vector.extract_strided_slice %12 {offsets = [0, 40], sizes = [64, 4], strides = [1, 1]} : vector<64x48xbf16> to vector<64x4xbf16>
    %cst_24 = arith.constant dense<0.000000e+00> : vector<64x64xf32>
    %63 = tpu.matmul %60, %61, %cst_24 {dimension_numbers = #tpu.dot_dimension_numbers<[1], [1], [0], [0], [0, 0, 1, 0], [], []>} : vector<64x4xbf16>, vector<64x4xbf16>, vector<64x64xf32> -> vector<64x64xf32>
    %cst_25 = arith.constant 5.000000e-01 : f32
    %64 = vector.broadcast %cst_25 : f32 to vector<64x64xf32>
    %65 = arith.mulf %63, %64 : vector<64x64xf32>
    %cst_26 = arith.constant dense<0xFF800000> : vector<64xf32>
    %66 = vector.multi_reduction <maximumf>, %65, %cst_26 [1] : vector<64x64xf32> to vector<64xf32>
    %67 = vector.shape_cast %66 : vector<64xf32> to vector<64x1xf32>
    %68 = vector.broadcast %67 : vector<64x1xf32> to vector<64x64xf32>
    %69 = arith.subf %65, %68 : vector<64x64xf32>
    %70 = math.exp %69 : vector<64x64xf32>
    %cst_27 = arith.constant dense<0.000000e+00> : vector<64xf32>
    %71 = vector.multi_reduction <add>, %70, %cst_27 [1] : vector<64x64xf32> to vector<64xf32>
    %72 = vector.shape_cast %71 : vector<64xf32> to vector<64x1xf32>
    %73 = tpu.reciprocal %72 {approx = true} : vector<64x1xf32> -> vector<64x1xf32>
    %74 = vector.broadcast %73 : vector<64x1xf32> to vector<64x64xf32>
    %75 = arith.mulf %70, %74 : vector<64x64xf32>
    %76 = arith.truncf %75 : vector<64x64xf32> to vector<64x64xbf16>
    %cst_28 = arith.constant dense<0.000000e+00> : vector<64x4xf32>
    %77 = tpu.matmul %76, %62, %cst_28 {dimension_numbers = #tpu.dot_dimension_numbers<[1], [0], [0], [1], [0, 0, 1, 1], [], []>} : vector<64x64xbf16>, vector<64x4xbf16>, vector<64x4xf32> -> vector<64x4xf32>
    %78 = arith.truncf %77 : vector<64x4xf32> to vector<64x4xbf16>
    %79 = vector.extract_strided_slice %14 {offsets = [8, 0], sizes = [4, 16], strides = [1, 1]} : vector<16x16xbf16> to vector<4x16xbf16>
    %cst_29 = arith.constant dense<0.000000e+00> : vector<64x16xf32>
    %80 = tpu.matmul %78, %79, %cst_29 {dimension_numbers = #tpu.dot_dimension_numbers<[1], [0], [0], [1], [0, 0, 1, 1], [], []>} : vector<64x4xbf16>, vector<4x16xbf16>, vector<64x16xf32> -> vector<64x16xf32>
    %81 = arith.addf %59, %80 : vector<64x16xf32>
    %82 = vector.extract_strided_slice %12 {offsets = [0, 12], sizes = [64, 4], strides = [1, 1]} : vector<64x48xbf16> to vector<64x4xbf16>
    %83 = vector.extract_strided_slice %12 {offsets = [0, 28], sizes = [64, 4], strides = [1, 1]} : vector<64x48xbf16> to vector<64x4xbf16>
    %84 = vector.extract_strided_slice %12 {offsets = [0, 44], sizes = [64, 4], strides = [1, 1]} : vector<64x48xbf16> to vector<64x4xbf16>
    %cst_30 = arith.constant dense<0.000000e+00> : vector<64x64xf32>
    %85 = tpu.matmul %82, %83, %cst_30 {dimension_numbers = #tpu.dot_dimension_numbers<[1], [1], [0], [0], [0, 0, 1, 0], [], []>} : vector<64x4xbf16>, vector<64x4xbf16>, vector<64x64xf32> -> vector<64x64xf32>
    %cst_31 = arith.constant 5.000000e-01 : f32
    %86 = vector.broadcast %cst_31 : f32 to vector<64x64xf32>
    %87 = arith.mulf %85, %86 : vector<64x64xf32>
    %cst_32 = arith.constant dense<0xFF800000> : vector<64xf32>
    %88 = vector.multi_reduction <maximumf>, %87, %cst_32 [1] : vector<64x64xf32> to vector<64xf32>
    %89 = vector.shape_cast %88 : vector<64xf32> to vector<64x1xf32>
    %90 = vector.broadcast %89 : vector<64x1xf32> to vector<64x64xf32>
    %91 = arith.subf %87, %90 : vector<64x64xf32>
    %92 = math.exp %91 : vector<64x64xf32>
    %cst_33 = arith.constant dense<0.000000e+00> : vector<64xf32>
    %93 = vector.multi_reduction <add>, %92, %cst_33 [1] : vector<64x64xf32> to vector<64xf32>
    %94 = vector.shape_cast %93 : vector<64xf32> to vector<64x1xf32>
    %95 = tpu.reciprocal %94 {approx = true} : vector<64x1xf32> -> vector<64x1xf32>
    %96 = vector.broadcast %95 : vector<64x1xf32> to vector<64x64xf32>
    %97 = arith.mulf %92, %96 : vector<64x64xf32>
    %98 = arith.truncf %97 : vector<64x64xf32> to vector<64x64xbf16>
    %cst_34 = arith.constant dense<0.000000e+00> : vector<64x4xf32>
    %99 = tpu.matmul %98, %84, %cst_34 {dimension_numbers = #tpu.dot_dimension_numbers<[1], [0], [0], [1], [0, 0, 1, 1], [], []>} : vector<64x64xbf16>, vector<64x4xbf16>, vector<64x4xf32> -> vector<64x4xf32>
    %100 = arith.truncf %99 : vector<64x4xf32> to vector<64x4xbf16>
    %101 = vector.extract_strided_slice %14 {offsets = [12, 0], sizes = [4, 16], strides = [1, 1]} : vector<16x16xbf16> to vector<4x16xbf16>
    %cst_35 = arith.constant dense<0.000000e+00> : vector<64x16xf32>
    %102 = tpu.matmul %100, %101, %cst_35 {dimension_numbers = #tpu.dot_dimension_numbers<[1], [0], [0], [1], [0, 0, 1, 1], [], []>} : vector<64x4xbf16>, vector<4x16xbf16>, vector<64x16xf32> -> vector<64x16xf32>
    %103 = arith.addf %81, %102 : vector<64x16xf32>
    %c0_36 = arith.constant 0 : index
    %c0_37 = arith.constant 0 : index
    %c0_38 = arith.constant 0 : index
    %104 = vector.load %arg8[%c0_36, %c0_37, %c0_38] : memref<1x1x16xf32, #tpu.memory_space<vmem>>, vector<1x1x16xf32>
    %105 = vector.shape_cast %104 : vector<1x1x16xf32> to vector<1x16xf32>
    %106 = vector.broadcast %105 : vector<1x16xf32> to vector<64x16xf32>
    %107 = arith.addf %103, %106 : vector<64x16xf32>
    %108 = arith.addf %3, %107 : vector<64x16xf32>
    %c0_39 = arith.constant 0 : index
    %c0_40 = arith.constant 0 : index
    %c0_41 = arith.constant 0 : index
    %109 = vector.load %arg9[%c0_39, %c0_40, %c0_41] : memref<1x1x16xf32, #tpu.memory_space<vmem>>, vector<1x1x16xf32>
    %110 = vector.shape_cast %109 : vector<1x1x16xf32> to vector<1x16xf32>
    %c0_42 = arith.constant 0 : index
    %c0_43 = arith.constant 0 : index
    %c0_44 = arith.constant 0 : index
    %111 = vector.load %arg10[%c0_42, %c0_43, %c0_44] : memref<1x1x16xf32, #tpu.memory_space<vmem>>, vector<1x1x16xf32>
    %112 = vector.shape_cast %111 : vector<1x1x16xf32> to vector<1x16xf32>
    %cst_45 = arith.constant dense<0.000000e+00> : vector<64xf32>
    %113 = vector.multi_reduction <add>, %108, %cst_45 [1] : vector<64x16xf32> to vector<64xf32>
    %114 = vector.shape_cast %113 : vector<64xf32> to vector<64x1xf32>
    %cst_46 = arith.constant 1.600000e+01 : f32
    %115 = vector.broadcast %cst_46 : f32 to vector<64x1xf32>
    %116 = arith.divf %114, %115 : vector<64x1xf32>
    %117 = vector.broadcast %116 : vector<64x1xf32> to vector<64x16xf32>
    %118 = arith.subf %108, %117 : vector<64x16xf32>
    %119 = arith.mulf %118, %118 : vector<64x16xf32>
    %cst_47 = arith.constant dense<0.000000e+00> : vector<64xf32>
    %120 = vector.multi_reduction <add>, %119, %cst_47 [1] : vector<64x16xf32> to vector<64xf32>
    %121 = vector.shape_cast %120 : vector<64xf32> to vector<64x1xf32>
    %cst_48 = arith.constant 1.600000e+01 : f32
    %122 = vector.broadcast %cst_48 : f32 to vector<64x1xf32>
    %123 = arith.divf %121, %122 : vector<64x1xf32>
    %124 = vector.broadcast %116 : vector<64x1xf32> to vector<64x16xf32>
    %125 = arith.subf %108, %124 : vector<64x16xf32>
    %cst_49 = arith.constant 9.99999974E-6 : f32
    %126 = vector.broadcast %cst_49 : f32 to vector<64x1xf32>
    %127 = arith.addf %123, %126 : vector<64x1xf32>
    %128 = math.rsqrt %127 : vector<64x1xf32>
    %129 = vector.broadcast %128 : vector<64x1xf32> to vector<64x16xf32>
    %130 = arith.mulf %125, %129 : vector<64x16xf32>
    %131 = vector.broadcast %110 : vector<1x16xf32> to vector<64x16xf32>
    %132 = arith.mulf %130, %131 : vector<64x16xf32>
    %133 = vector.broadcast %112 : vector<1x16xf32> to vector<64x16xf32>
    %134 = arith.addf %132, %133 : vector<64x16xf32>
    %135 = arith.truncf %134 : vector<64x16xf32> to vector<64x16xbf16>
    %c0_50 = arith.constant 0 : index
    %c0_51 = arith.constant 0 : index
    %c0_52 = arith.constant 0 : index
    %136 = vector.load %arg11[%c0_50, %c0_51, %c0_52] : memref<1x16x64xbf16, #tpu.memory_space<vmem>>, vector<1x16x64xbf16>
    %137 = vector.shape_cast %136 : vector<1x16x64xbf16> to vector<16x64xbf16>
    %cst_53 = arith.constant dense<0.000000e+00> : vector<64x64xf32>
    %138 = tpu.matmul %135, %137, %cst_53 {dimension_numbers = #tpu.dot_dimension_numbers<[1], [0], [0], [1], [0, 0, 1, 1], [], []>} : vector<64x16xbf16>, vector<16x64xbf16>, vector<64x64xf32> -> vector<64x64xf32>
    %c0_54 = arith.constant 0 : index
    %c0_55 = arith.constant 0 : index
    %c0_56 = arith.constant 0 : index
    %139 = vector.load %arg12[%c0_54, %c0_55, %c0_56] : memref<1x1x64xf32, #tpu.memory_space<vmem>>, vector<1x1x64xf32>
    %140 = vector.shape_cast %139 : vector<1x1x64xf32> to vector<1x64xf32>
    %141 = vector.broadcast %140 : vector<1x64xf32> to vector<64x64xf32>
    %142 = arith.addf %138, %141 : vector<64x64xf32>
    %cst_57 = arith.constant 0.000000e+00 : f32
    %143 = vector.broadcast %cst_57 : f32 to vector<64x64xf32>
    %144 = arith.maximumf %142, %143 : vector<64x64xf32>
    %145 = arith.truncf %144 : vector<64x64xf32> to vector<64x64xbf16>
    %c0_58 = arith.constant 0 : index
    %c0_59 = arith.constant 0 : index
    %c0_60 = arith.constant 0 : index
    %146 = vector.load %arg13[%c0_58, %c0_59, %c0_60] : memref<1x64x16xbf16, #tpu.memory_space<vmem>>, vector<1x64x16xbf16>
    %147 = vector.shape_cast %146 : vector<1x64x16xbf16> to vector<64x16xbf16>
    %cst_61 = arith.constant dense<0.000000e+00> : vector<64x16xf32>
    %148 = tpu.matmul %145, %147, %cst_61 {dimension_numbers = #tpu.dot_dimension_numbers<[1], [0], [0], [1], [0, 0, 1, 1], [], []>} : vector<64x64xbf16>, vector<64x16xbf16>, vector<64x16xf32> -> vector<64x16xf32>
    %c0_62 = arith.constant 0 : index
    %c0_63 = arith.constant 0 : index
    %c0_64 = arith.constant 0 : index
    %149 = vector.load %arg14[%c0_62, %c0_63, %c0_64] : memref<1x1x16xf32, #tpu.memory_space<vmem>>, vector<1x1x16xf32>
    %150 = vector.shape_cast %149 : vector<1x1x16xf32> to vector<1x16xf32>
    %151 = vector.broadcast %150 : vector<1x16xf32> to vector<64x16xf32>
    %152 = arith.addf %148, %151 : vector<64x16xf32>
    %153 = arith.addf %134, %152 : vector<64x16xf32>
    %c0_65 = arith.constant 0 : index
    %c0_66 = arith.constant 0 : index
    %c0_67 = arith.constant 0 : index
    %154 = vector.load %arg15[%c0_65, %c0_66, %c0_67] : memref<1x1x16xf32, #tpu.memory_space<vmem>>, vector<1x1x16xf32>
    %155 = vector.shape_cast %154 : vector<1x1x16xf32> to vector<1x16xf32>
    %c0_68 = arith.constant 0 : index
    %c0_69 = arith.constant 0 : index
    %c0_70 = arith.constant 0 : index
    %156 = vector.load %arg16[%c0_68, %c0_69, %c0_70] : memref<1x1x16xf32, #tpu.memory_space<vmem>>, vector<1x1x16xf32>
    %157 = vector.shape_cast %156 : vector<1x1x16xf32> to vector<1x16xf32>
    %cst_71 = arith.constant dense<0.000000e+00> : vector<64xf32>
    %158 = vector.multi_reduction <add>, %153, %cst_71 [1] : vector<64x16xf32> to vector<64xf32>
    %159 = vector.shape_cast %158 : vector<64xf32> to vector<64x1xf32>
    %cst_72 = arith.constant 1.600000e+01 : f32
    %160 = vector.broadcast %cst_72 : f32 to vector<64x1xf32>
    %161 = arith.divf %159, %160 : vector<64x1xf32>
    %162 = vector.broadcast %161 : vector<64x1xf32> to vector<64x16xf32>
    %163 = arith.subf %153, %162 : vector<64x16xf32>
    %164 = arith.mulf %163, %163 : vector<64x16xf32>
    %cst_73 = arith.constant dense<0.000000e+00> : vector<64xf32>
    %165 = vector.multi_reduction <add>, %164, %cst_73 [1] : vector<64x16xf32> to vector<64xf32>
    %166 = vector.shape_cast %165 : vector<64xf32> to vector<64x1xf32>
    %cst_74 = arith.constant 1.600000e+01 : f32
    %167 = vector.broadcast %cst_74 : f32 to vector<64x1xf32>
    %168 = arith.divf %166, %167 : vector<64x1xf32>
    %169 = vector.broadcast %161 : vector<64x1xf32> to vector<64x16xf32>
    %170 = arith.subf %153, %169 : vector<64x16xf32>
    %cst_75 = arith.constant 9.99999974E-6 : f32
    %171 = vector.broadcast %cst_75 : f32 to vector<64x1xf32>
    %172 = arith.addf %168, %171 : vector<64x1xf32>
    %173 = math.rsqrt %172 : vector<64x1xf32>
    %174 = vector.broadcast %173 : vector<64x1xf32> to vector<64x16xf32>
    %175 = arith.mulf %170, %174 : vector<64x16xf32>
    %176 = vector.broadcast %155 : vector<1x16xf32> to vector<64x16xf32>
    %177 = arith.mulf %175, %176 : vector<64x16xf32>
    %178 = vector.broadcast %157 : vector<1x16xf32> to vector<64x16xf32>
    %179 = arith.addf %177, %178 : vector<64x16xf32>
    %c0_76 = arith.constant 0 : index
    %c0_77 = arith.constant 0 : index
    %180 = vector.load %arg20[%c0_76, %c0_77] : memref<64x16xf32, #tpu.memory_space<vmem>>, vector<64x16xf32>
    tpu.vector_store %arg20[%c0_76, %c0_77], %179 {strides = array<i32>} : memref<64x16xf32, #tpu.memory_space<vmem>>, vector<64x16xf32>,
    %c0_i32_78 = arith.constant 0 : i32
    %181 = arith.cmpi eq, %arg1, %c0_i32_78 : i32
    %182 = arith.extui %181 : i1 to i32
    %c0_i32_79 = arith.constant 0 : i32
    %183 = arith.cmpi ne, %182, %c0_i32_79 : i32
    scf.if %183 {
      %184 = arith.truncf %179 : vector<64x16xf32> to vector<64x16xbf16>
      %c0_80 = arith.constant 0 : index
      %c0_81 = arith.constant 0 : index
      %185 = vector.load %arg17[%c0_80, %c0_81] : memref<16x8xbf16, #tpu.memory_space<vmem>>, vector<16x8xbf16>
      %cst_82 = arith.constant dense<0.000000e+00> : vector<64x8xf32>
      %186 = tpu.matmul %184, %185, %cst_82 {dimension_numbers = #tpu.dot_dimension_numbers<[1], [0], [0], [1], [0, 0, 1, 1], [], []>} : vector<64x16xbf16>, vector<16x8xbf16>, vector<64x8xf32> -> vector<64x8xf32>
      %c0_83 = arith.constant 0 : index
      %c0_84 = arith.constant 0 : index
      %187 = vector.load %arg18[%c0_83, %c0_84] : memref<1x8xf32, #tpu.memory_space<vmem>>, vector<1x8xf32>
      %188 = vector.broadcast %187 : vector<1x8xf32> to vector<64x8xf32>
      %189 = arith.addf %186, %188 : vector<64x8xf32>
      %c0_85 = arith.constant 0 : index
      %c0_86 = arith.constant 0 : index
      %c0_87 = arith.constant 0 : index
      %190 = vector.load %arg19[%c0_85, %c0_86, %c0_87] : memref<1x64x8xf32, #tpu.memory_space<vmem>>, vector<1x64x8xf32>
      %191 = vector.shape_cast %190 : vector<1x64x8xf32> to vector<64x8xf32>
      %192 = vector.shape_cast %189 : vector<64x8xf32> to vector<1x64x8xf32>
      tpu.vector_store %arg19[%c0_85, %c0_86, %c0_87], %192 {strides = array<i32>} : memref<1x64x8xf32, #tpu.memory_space<vmem>>, vector<1x64x8xf32>,
    } else {
    }
    return
  }
  func.func @transform_0(%arg0: i32, %arg1: i32) -> (i32, i32, i32) {
    %c0_i32 = arith.constant 0 : i32
    %c0_i32_0 = arith.constant 0 : i32
    %c0_i32_1 = arith.constant 0 : i32
    return %arg0, %c0_i32, %c0_i32_0 : i32, i32, i32
  }
  func.func @transform_1(%arg0: i32, %arg1: i32) -> (i32, i32) {
    %c0_i32 = arith.constant 0 : i32
    %c0_i32_0 = arith.constant 0 : i32
    %c0_i32_1 = arith.constant 0 : i32
    return %c0_i32, %c0_i32_0 : i32, i32
  }
  func.func @transform_2(%arg0: i32, %arg1: i32) -> (i32, i32) {
    %c0_i32 = arith.constant 0 : i32
    %c0_i32_0 = arith.constant 0 : i32
    %c0_i32_1 = arith.constant 0 : i32
    return %c0_i32, %c0_i32_0 : i32, i32
  }
  func.func @transform_3(%arg0: i32, %arg1: i32) -> (i32, i32, i32) {
    %c0_i32 = arith.constant 0 : i32
    %c0_i32_0 = arith.constant 0 : i32
    %c0_i32_1 = arith.constant 0 : i32
    return %arg1, %c0_i32, %c0_i32_0 : i32, i32, i32
  }
  func.func @transform_4(%arg0: i32, %arg1: i32) -> (i32, i32, i32) {
    %c0_i32 = arith.constant 0 : i32
    %c0_i32_0 = arith.constant 0 : i32
    %c0_i32_1 = arith.constant 0 : i32
    return %arg1, %c0_i32, %c0_i32_0 : i32, i32, i32
  }
  func.func @transform_5(%arg0: i32, %arg1: i32) -> (i32, i32, i32) {
    %c0_i32 = arith.constant 0 : i32
    %c0_i32_0 = arith.constant 0 : i32
    %c0_i32_1 = arith.constant 0 : i32
    return %arg1, %c0_i32, %c0_i32_0 : i32, i32, i32
  }
  func.func @transform_6(%arg0: i32, %arg1: i32) -> (i32, i32, i32) {
    %c0_i32 = arith.constant 0 : i32
    %c0_i32_0 = arith.constant 0 : i32
    %c0_i32_1 = arith.constant 0 : i32
    return %arg1, %c0_i32, %c0_i32_0 : i32, i32, i32
  }
  func.func @transform_7(%arg0: i32, %arg1: i32) -> (i32, i32, i32) {
    %c0_i32 = arith.constant 0 : i32
    %c0_i32_0 = arith.constant 0 : i32
    %c0_i32_1 = arith.constant 0 : i32
    return %arg1, %c0_i32, %c0_i32_0 : i32, i32, i32
  }
  func.func @transform_8(%arg0: i32, %arg1: i32) -> (i32, i32, i32) {
    %c0_i32 = arith.constant 0 : i32
    %c0_i32_0 = arith.constant 0 : i32
    %c0_i32_1 = arith.constant 0 : i32
    return %arg1, %c0_i32, %c0_i32_0 : i32, i32, i32
  }
  func.func @transform_9(%arg0: i32, %arg1: i32) -> (i32, i32, i32) {
    %c0_i32 = arith.constant 0 : i32
    %c0_i32_0 = arith.constant 0 : i32
    %c0_i32_1 = arith.constant 0 : i32
    return %arg1, %c0_i32, %c0_i32_0 : i32, i32, i32
  }
  func.func @transform_10(%arg0: i32, %arg1: i32) -> (i32, i32, i32) {
    %c0_i32 = arith.constant 0 : i32
    %c0_i32_0 = arith.constant 0 : i32
    %c0_i32_1 = arith.constant 0 : i32
    return %arg1, %c0_i32, %c0_i32_0 : i32, i32, i32
  }
  func.func @transform_11(%arg0: i32, %arg1: i32) -> (i32, i32, i32) {
    %c0_i32 = arith.constant 0 : i32
    %c0_i32_0 = arith.constant 0 : i32
    %c0_i32_1 = arith.constant 0 : i32
    return %arg1, %c0_i32, %c0_i32_0 : i32, i32, i32
  }
  func.func @transform_12(%arg0: i32, %arg1: i32) -> (i32, i32, i32) {
    %c0_i32 = arith.constant 0 : i32
    %c0_i32_0 = arith.constant 0 : i32
    %c0_i32_1 = arith.constant 0 : i32
    return %arg1, %c0_i32, %c0_i32_0 : i32, i32, i32
  }
  func.func @transform_13(%arg0: i32, %arg1: i32) -> (i32, i32, i32) {
    %c0_i32 = arith.constant 0 : i32
    %c0_i32_0 = arith.constant 0 : i32
    %c0_i32_1 = arith.constant 0 : i32
    return %arg1, %c0_i32, %c0_i32_0 : i32, i32, i32
  }
  func.func @transform_14(%arg0: i32, %arg1: i32) -> (i32, i32, i32) {
    %c0_i32 = arith.constant 0 : i32
    %c0_i32_0 = arith.constant 0 : i32
    %c0_i32_1 = arith.constant 0 : i32
    return %arg1, %c0_i32, %c0_i32_0 : i32, i32, i32
  }
  func.func @transform_15(%arg0: i32, %arg1: i32) -> (i32, i32) {
    %c0_i32 = arith.constant 0 : i32
    %c0_i32_0 = arith.constant 0 : i32
    %c0_i32_1 = arith.constant 0 : i32
    return %c0_i32, %c0_i32_0 : i32, i32
  }
  func.func @transform_16(%arg0: i32, %arg1: i32) -> (i32, i32) {
    %c0_i32 = arith.constant 0 : i32
    %c0_i32_0 = arith.constant 0 : i32
    %c0_i32_1 = arith.constant 0 : i32
    return %c0_i32, %c0_i32_0 : i32, i32
  }
  func.func @transform_17(%arg0: i32, %arg1: i32) -> (i32, i32, i32) {
    %c0_i32 = arith.constant 0 : i32
    %c0_i32_0 = arith.constant 0 : i32
    %c0_i32_1 = arith.constant 0 : i32
    return %arg0, %c0_i32, %c0_i32_0 : i32, i32, i32
  }
}

</mosaic_0001>

<llo_original>
// kernel: mae_vit_forward.2
$region0: #{mae_vit_forward.2}
  #allocation0 [shape = 'u32[]', space=smem, size = 0x4, offset = 0x4, fixed_abs, tag = 'smem constant byte address 0x4 - core index']
  #allocation1 [shape = 'u32[144,128]{1,0:T(1,128)}', space=vmem, size = 0x12000, scoped, tag = 'internal scratch']
  #allocation2 [shape = 'f32[16,32]{1,0:T(8,128)}', space=vmem, size = 0x2000, scoped, tag = 'scratch operand']
  %s0 = inlined_call_operand.vmem [shape: f32[2,16,8], index: 0, kind: input, shape index: {}]
  %s1 = inlined_call_operand.vmem [shape: bf16[8,32], index: 1, kind: input, shape index: {}]
  %s2 = inlined_call_operand.vmem [shape: f32[1,32], index: 2, kind: input, shape index: {}]
  %s3 = inlined_call_operand.vmem [shape: bf16[2,32,96], index: 3, kind: input, shape index: {}]
  %s4 = inlined_call_operand.vmem [shape: f32[2,1,96], index: 4, kind: input, shape index: {}]
  %s5 = inlined_call_operand.vmem [shape: bf16[2,32,32], index: 5, kind: input, shape index: {}]
  %s6 = inlined_call_operand.vmem [shape: f32[2,1,32], index: 6, kind: input, shape index: {}]
  %s7 = inlined_call_operand.vmem [shape: f32[2,1,32], index: 7, kind: input, shape index: {}]
  %s8 = inlined_call_operand.vmem [shape: f32[2,1,32], index: 8, kind: input, shape index: {}]
  %s9 = inlined_call_operand.vmem [shape: bf16[2,32,64], index: 9, kind: input, shape index: {}]
  %s10 = inlined_call_operand.vmem [shape: f32[2,1,64], index: 10, kind: input, shape index: {}]
  %s11 = inlined_call_operand.vmem [shape: bf16[2,64,32], index: 11, kind: input, shape index: {}]
  %s12 = inlined_call_operand.vmem [shape: f32[2,1,32], index: 12, kind: input, shape index: {}]
  %s13 = inlined_call_operand.vmem [shape: f32[2,1,32], index: 13, kind: input, shape index: {}]
  %s14 = inlined_call_operand.vmem [shape: f32[2,1,32], index: 14, kind: input, shape index: {}]
  %s15 = inlined_call_operand.vmem [shape: bf16[32,16], index: 15, kind: input, shape index: {}]
  %s16 = inlined_call_operand.vmem [shape: f32[1,16], index: 16, kind: input, shape index: {}]
  %s17 = inlined_call_operand.vmem [shape: f32[2,16,16], index: 17, kind: output, shape index: {}]
  %s18 = sld [smem:[#allocation0]]
  $region109: #{mae_vit_forward.2} parent=0
    _
  %s20 = ssub.s32 1, %s18
  %s21 = scalar_select 0, %s20, %s18
  loop: start=0, step=1, limit=6
  $region2: #{mae_vit_forward.2} parent=0 // loop_pre_header
    _
  $region3: #{mae_vit_forward.2} parent=0 // loop_header
    %s23 = sphi 0, %s27
    %p24 = scmp.ge.s32.totalorder %s23, 6
    %s30 = sphi 0, %s42
    %s31 = sphi 0, %s38
    %s32 = sphi 0, %s30
    %s33 = sphi 0, %s31
    %s34 = sphi 0, %s32
    %s35 = sphi 0, %s33
    %s45 = sphi 0, %s47
    %s48 = sphi 0, %s45
    %s49 = sphi 0, %s48
    %s65 = sphi 0, %s49
    %s69 = sphi 0, %s69
    %s71 = sphi 0, %s69
    %s72 = sphi 0, %s71
    %s86 = sphi 0, %s72
    %s90 = sphi 0, %s90
    %s92 = sphi 0, %s90
    %s93 = sphi 0, %s92
    %s107 = sphi 0, %s93
    %s113 = sphi 0, %s115
    %s116 = sphi 0, %s113
    %s117 = sphi 0, %s116
    %s133 = sphi 0, %s117
    %s139 = sphi 0, %s141
    %s142 = sphi 0, %s139
    %s143 = sphi 0, %s142
    %s159 = sphi 0, %s143
    %s165 = sphi 0, %s167
    %s168 = sphi 0, %s165
    %s169 = sphi 0, %s168
    %s185 = sphi 0, %s169
    %s191 = sphi 0, %s193
    %s194 = sphi 0, %s191
    %s195 = sphi 0, %s194
    %s211 = sphi 0, %s195
    %s217 = sphi 0, %s219
    %s220 = sphi 0, %s217
    %s221 = sphi 0, %s220
    %s237 = sphi 0, %s221
    %s243 = sphi 0, %s245
    %s246 = sphi 0, %s243
    %s247 = sphi 0, %s246
    %s263 = sphi 0, %s247
    %s269 = sphi 0, %s271
    %s272 = sphi 0, %s269
    %s273 = sphi 0, %s272
    %s289 = sphi 0, %s273
    %s295 = sphi 0, %s297
    %s298 = sphi 0, %s295
    %s299 = sphi 0, %s298
    %s315 = sphi 0, %s299
    %s321 = sphi 0, %s323
    %s324 = sphi 0, %s321
    %s325 = sphi 0, %s324
    %s341 = sphi 0, %s325
    %s347 = sphi 0, %s349
    %s350 = sphi 0, %s347
    %s351 = sphi 0, %s350
    %s367 = sphi 0, %s351
    %s373 = sphi 0, %s375
    %s376 = sphi 0, %s373
    %s377 = sphi 0, %s376
    %s393 = sphi 0, %s377
    %s399 = sphi 0, %s401
    %s402 = sphi 0, %s399
    %s403 = sphi 0, %s402
    %s419 = sphi 0, %s403
    %s423 = sphi 0, %s423
    %s425 = sphi 0, %s423
    %s426 = sphi 0, %s425
    %s440 = sphi 0, %s426
    %s444 = sphi 0, %s444
    %s446 = sphi 0, %s444
    %s447 = sphi 0, %s446
    %s461 = sphi 0, %s447
    %s467 = sphi 0, %s469
    %s470 = sphi 0, %s467
    %s471 = sphi 0, %s470
    %s487 = sphi 0, %s471
  $region4: #{mae_vit_forward.2} parent=0 // loop_header_branch
    %26 = sbr.rel (%p24) target = $region8
  $region5: #{mae_vit_forward.2} parent=0 // loop_body
    %s28 = ssub.s32 %s23, 1
    %s29 = ssub.s32 %s23, 2
    %s36 = sadd.s32 1, %s31
    %p37 = scmp.ge.s32.totalorder %s36, 2
    %s38 = scalar_select %p37, 0, %s36
    %s39 = sadd.s32 1, %s30
    %s40 = scalar_select %p37, %s39, %s30
    %p41 = scmp.ge.s32.totalorder %s40, 2
    %s42 = scalar_select %p41, 0, %s40
    %s43 = ssub.s32 %s30, %s42
    %p44 = scmp.eq.s32.totalorder %s43, 0
    %s46 = sadd.s32 %s45, 1
    %s47 = scalar_select %p44, %s45, %s46
    %p50 = pneg %p44
    %p51 = scmp.eq.s32.totalorder %s23, 3
    %p52 = por %p50, %p51
    %p53 = scmp.ne.s32.totalorder %s45, %s48
    %p54 = scmp.eq.s32.totalorder %s23, 0
    %p55 = por %p53, %p54
    %p56 = scmp.ne.s32.totalorder %s45, %s48
    %p57 = scmp.eq.s32.totalorder %s28, 3
    %p58 = por %p56, %p57
    %p59 = scmp.ne.s32.totalorder %s48, %s49
    %p60 = scmp.eq.s32.totalorder %s28, 0
    %p61 = por %p59, %p60
    %p62 = scmp.ne.s32.totalorder %s48, %s49
    %p63 = scmp.eq.s32.totalorder %s29, 3
    %p64 = por %p62, %p63
    %p66 = scmp.ne.s32.totalorder %s49, %s65
    %p67 = scmp.eq.s32.totalorder %s29, 0
    %p68 = por %p66, %p67
    %s70 = sadd.s32 %s69, 1
    %p73 = scmp.eq.s32.totalorder %s23, 3
    %p74 = scmp.ne.s32.totalorder %s69, %s71
    %p75 = scmp.eq.s32.totalorder %s23, 0
    %p76 = por %p74, %p75
    %p77 = scmp.ne.s32.totalorder %s69, %s71
    %p78 = scmp.eq.s32.totalorder %s28, 3
    %p79 = por %p77, %p78
    %p80 = scmp.ne.s32.totalorder %s71, %s72
    %p81 = scmp.eq.s32.totalorder %s28, 0
    %p82 = por %p80, %p81
    %p83 = scmp.ne.s32.totalorder %s71, %s72
    %p84 = scmp.eq.s32.totalorder %s29, 3
    %p85 = por %p83, %p84
    %p87 = scmp.ne.s32.totalorder %s72, %s86
    %p88 = scmp.eq.s32.totalorder %s29, 0
    %p89 = por %p87, %p88
    %s91 = sadd.s32 %s90, 1
    %p94 = scmp.eq.s32.totalorder %s23, 3
    %p95 = scmp.ne.s32.totalorder %s90, %s92
    %p96 = scmp.eq.s32.totalorder %s23, 0
    %p97 = por %p95, %p96
    %p98 = scmp.ne.s32.totalorder %s90, %s92
    %p99 = scmp.eq.s32.totalorder %s28, 3
    %p100 = por %p98, %p99
    %p101 = scmp.ne.s32.totalorder %s92, %s93
    %p102 = scmp.eq.s32.totalorder %s28, 0
    %p103 = por %p101, %p102
    %p104 = scmp.ne.s32.totalorder %s92, %s93
    %p105 = scmp.eq.s32.totalorder %s29, 3
    %p106 = por %p104, %p105
    %p108 = scmp.ne.s32.totalorder %s93, %s107
    %p109 = scmp.eq.s32.totalorder %s29, 0
    %p110 = por %p108, %p109
    %s111 = ssub.s32 %s31, %s38
    %p112 = scmp.eq.s32.totalorder %s111, 0
    %s114 = sadd.s32 %s113, 1
    %s115 = scalar_select %p112, %s113, %s114
    %p118 = pneg %p112
    %p119 = scmp.eq.s32.totalorder %s23, 3
    %p120 = por %p118, %p119
    %p121 = scmp.ne.s32.totalorder %s113, %s116
    %p122 = scmp.eq.s32.totalorder %s23, 0
    %p123 = por %p121, %p122
    %p124 = scmp.ne.s32.totalorder %s113, %s116
    %p125 = scmp.eq.s32.totalorder %s28, 3
    %p126 = por %p124, %p125
    %p127 = scmp.ne.s32.totalorder %s116, %s117
    %p128 = scmp.eq.s32.totalorder %s28, 0
    %p129 = por %p127, %p128
    %p130 = scmp.ne.s32.totalorder %s116, %s117
    %p131 = scmp.eq.s32.totalorder %s29, 3
    %p132 = por %p130, %p131
    %p134 = scmp.ne.s32.totalorder %s117, %s133
    %p135 = scmp.eq.s32.totalorder %s29, 0
    %p136 = por %p134, %p135
    %s137 = ssub.s32 %s31, %s38
    %p138 = scmp.eq.s32.totalorder %s137, 0
    %s140 = sadd.s32 %s139, 1
    %s141 = scalar_select %p138, %s139, %s140
    %p144 = pneg %p138
    %p145 = scmp.eq.s32.totalorder %s23, 3
    %p146 = por %p144, %p145
    %p147 = scmp.ne.s32.totalorder %s139, %s142
    %p148 = scmp.eq.s32.totalorder %s23, 0
    %p149 = por %p147, %p148
    %p150 = scmp.ne.s32.totalorder %s139, %s142
    %p151 = scmp.eq.s32.totalorder %s28, 3
    %p152 = por %p150, %p151
    %p153 = scmp.ne.s32.totalorder %s142, %s143
    %p154 = scmp.eq.s32.totalorder %s28, 0
    %p155 = por %p153, %p154
    %p156 = scmp.ne.s32.totalorder %s142, %s143
    %p157 = scmp.eq.s32.totalorder %s29, 3
    %p158 = por %p156, %p157
    %p160 = scmp.ne.s32.totalorder %s143, %s159
    %p161 = scmp.eq.s32.totalorder %s29, 0
    %p162 = por %p160, %p161
    %s163 = ssub.s32 %s31, %s38
    %p164 = scmp.eq.s32.totalorder %s163, 0
    %s166 = sadd.s32 %s165, 1
    %s167 = scalar_select %p164, %s165, %s166
    %p170 = pneg %p164
    %p171 = scmp.eq.s32.totalorder %s23, 3
    %p172 = por %p170, %p171
    %p173 = scmp.ne.s32.totalorder %s165, %s168
    %p174 = scmp.eq.s32.totalorder %s23, 0
    %p175 = por %p173, %p174
    %p176 = scmp.ne.s32.totalorder %s165, %s168
    %p177 = scmp.eq.s32.totalorder %s28, 3
    %p178 = por %p176, %p177
    %p179 = scmp.ne.s32.totalorder %s168, %s169
    %p180 = scmp.eq.s32.totalorder %s28, 0
    %p181 = por %p179, %p180
    %p182 = scmp.ne.s32.totalorder %s168, %s169
    %p183 = scmp.eq.s32.totalorder %s29, 3
    %p184 = por %p182, %p183
    %p186 = scmp.ne.s32.totalorder %s169, %s185
    %p187 = scmp.eq.s32.totalorder %s29, 0
    %p188 = por %p186, %p187
    %s189 = ssub.s32 %s31, %s38
    %p190 = scmp.eq.s32.totalorder %s189, 0
    %s192 = sadd.s32 %s191, 1
    %s193 = scalar_select %p190, %s191, %s192
    %p196 = pneg %p190
    %p197 = scmp.eq.s32.totalorder %s23, 3
    %p198 = por %p196, %p197
    %p199 = scmp.ne.s32.totalorder %s191, %s194
    %p200 = scmp.eq.s32.totalorder %s23, 0
    %p201 = por %p199, %p200
    %p202 = scmp.ne.s32.totalorder %s191, %s194
    %p203 = scmp.eq.s32.totalorder %s28, 3
    %p204 = por %p202, %p203
    %p205 = scmp.ne.s32.totalorder %s194, %s195
    %p206 = scmp.eq.s32.totalorder %s28, 0
    %p207 = por %p205, %p206
    %p208 = scmp.ne.s32.totalorder %s194, %s195
    %p209 = scmp.eq.s32.totalorder %s29, 3
    %p210 = por %p208, %p209
    %p212 = scmp.ne.s32.totalorder %s195, %s211
    %p213 = scmp.eq.s32.totalorder %s29, 0
    %p214 = por %p212, %p213
    %s215 = ssub.s32 %s31, %s38
    %p216 = scmp.eq.s32.totalorder %s215, 0
    %s218 = sadd.s32 %s217, 1
    %s219 = scalar_select %p216, %s217, %s218
    %p222 = pneg %p216
    %p223 = scmp.eq.s32.totalorder %s23, 3
    %p224 = por %p222, %p223
    %p225 = scmp.ne.s32.totalorder %s217, %s220
    %p226 = scmp.eq.s32.totalorder %s23, 0
    %p227 = por %p225, %p226
    %p228 = scmp.ne.s32.totalorder %s217, %s220
    %p229 = scmp.eq.s32.totalorder %s28, 3
    %p230 = por %p228, %p229
    %p231 = scmp.ne.s32.totalorder %s220, %s221
    %p232 = scmp.eq.s32.totalorder %s28, 0
    %p233 = por %p231, %p232
    %p234 = scmp.ne.s32.totalorder %s220, %s221
    %p235 = scmp.eq.s32.totalorder %s29, 3
    %p236 = por %p234, %p235
    %p238 = scmp.ne.s32.totalorder %s221, %s237
    %p239 = scmp.eq.s32.totalorder %s29, 0
    %p240 = por %p238, %p239
    %s241 = ssub.s32 %s31, %s38
    %p242 = scmp.eq.s32.totalorder %s241, 0
    %s244 = sadd.s32 %s243, 1
    %s245 = scalar_select %p242, %s243, %s244
    %p248 = pneg %p242
    %p249 = scmp.eq.s32.totalorder %s23, 3
    %p250 = por %p248, %p249
    %p251 = scmp.ne.s32.totalorder %s243, %s246
    %p252 = scmp.eq.s32.totalorder %s23, 0
    %p253 = por %p251, %p252
    %p254 = scmp.ne.s32.totalorder %s243, %s246
    %p255 = scmp.eq.s32.totalorder %s28, 3
    %p256 = por %p254, %p255
    %p257 = scmp.ne.s32.totalorder %s246, %s247
    %p258 = scmp.eq.s32.totalorder %s28, 0
    %p259 = por %p257, %p258
    %p260 = scmp.ne.s32.totalorder %s246, %s247
    %p261 = scmp.eq.s32.totalorder %s29, 3
    %p262 = por %p260, %p261
    %p264 = scmp.ne.s32.totalorder %s247, %s263
    %p265 = scmp.eq.s32.totalorder %s29, 0
    %p266 = por %p264, %p265
    %s267 = ssub.s32 %s31, %s38
    %p268 = scmp.eq.s32.totalorder %s267, 0
    %s270 = sadd.s32 %s269, 1
    %s271 = scalar_select %p268, %s269, %s270
    %p274 = pneg %p268
    %p275 = scmp.eq.s32.totalorder %s23, 3
    %p276 = por %p274, %p275
    %p277 = scmp.ne.s32.totalorder %s269, %s272
    %p278 = scmp.eq.s32.totalorder %s23, 0
    %p279 = por %p277, %p278
    %p280 = scmp.ne.s32.totalorder %s269, %s272
    %p281 = scmp.eq.s32.totalorder %s28, 3
    %p282 = por %p280, %p281
    %p283 = scmp.ne.s32.totalorder %s272, %s273
    %p284 = scmp.eq.s32.totalorder %s28, 0
    %p285 = por %p283, %p284
    %p286 = scmp.ne.s32.totalorder %s272, %s273
    %p287 = scmp.eq.s32.totalorder %s29, 3
    %p288 = por %p286, %p287
    %p290 = scmp.ne.s32.totalorder %s273, %s289
    %p291 = scmp.eq.s32.totalorder %s29, 0
    %p292 = por %p290, %p291
    %s293 = ssub.s32 %s31, %s38
    %p294 = scmp.eq.s32.totalorder %s293, 0
    %s296 = sadd.s32 %s295, 1
    %s297 = scalar_select %p294, %s295, %s296
    %p300 = pneg %p294
    %p301 = scmp.eq.s32.totalorder %s23, 3
    %p302 = por %p300, %p301
    %p303 = scmp.ne.s32.totalorder %s295, %s298
    %p304 = scmp.eq.s32.totalorder %s23, 0
    %p305 = por %p303, %p304
    %p306 = scmp.ne.s32.totalorder %s295, %s298
    %p307 = scmp.eq.s32.totalorder %s28, 3
    %p308 = por %p306, %p307
    %p309 = scmp.ne.s32.totalorder %s298, %s299
    %p310 = scmp.eq.s32.totalorder %s28, 0
    %p311 = por %p309, %p310
    %p312 = scmp.ne.s32.totalorder %s298, %s299
    %p313 = scmp.eq.s32.totalorder %s29, 3
    %p314 = por %p312, %p313
    %p316 = scmp.ne.s32.totalorder %s299, %s315
    %p317 = scmp.eq.s32.totalorder %s29, 0
    %p318 = por %p316, %p317
    %s319 = ssub.s32 %s31, %s38
    %p320 = scmp.eq.s32.totalorder %s319, 0
    %s322 = sadd.s32 %s321, 1
    %s323 = scalar_select %p320, %s321, %s322
    %p326 = pneg %p320
    %p327 = scmp.eq.s32.totalorder %s23, 3
    %p328 = por %p326, %p327
    %p329 = scmp.ne.s32.totalorder %s321, %s324
    %p330 = scmp.eq.s32.totalorder %s23, 0
    %p331 = por %p329, %p330
    %p332 = scmp.ne.s32.totalorder %s321, %s324
    %p333 = scmp.eq.s32.totalorder %s28, 3
    %p334 = por %p332, %p333
    %p335 = scmp.ne.s32.totalorder %s324, %s325
    %p336 = scmp.eq.s32.totalorder %s28, 0
    %p337 = por %p335, %p336
    %p338 = scmp.ne.s32.totalorder %s324, %s325
    %p339 = scmp.eq.s32.totalorder %s29, 3
    %p340 = por %p338, %p339
    %p342 = scmp.ne.s32.totalorder %s325, %s341
    %p343 = scmp.eq.s32.totalorder %s29, 0
    %p344 = por %p342, %p343
    %s345 = ssub.s32 %s31, %s38
    %p346 = scmp.eq.s32.totalorder %s345, 0
    %s348 = sadd.s32 %s347, 1
    %s349 = scalar_select %p346, %s347, %s348
    %p352 = pneg %p346
    %p353 = scmp.eq.s32.totalorder %s23, 3
    %p354 = por %p352, %p353
    %p355 = scmp.ne.s32.totalorder %s347, %s350
    %p356 = scmp.eq.s32.totalorder %s23, 0
    %p357 = por %p355, %p356
    %p358 = scmp.ne.s32.totalorder %s347, %s350
    %p359 = scmp.eq.s32.totalorder %s28, 3
    %p360 = por %p358, %p359
    %p361 = scmp.ne.s32.totalorder %s350, %s351
    %p362 = scmp.eq.s32.totalorder %s28, 0
    %p363 = por %p361, %p362
    %p364 = scmp.ne.s32.totalorder %s350, %s351
    %p365 = scmp.eq.s32.totalorder %s29, 3
    %p366 = por %p364, %p365
    %p368 = scmp.ne.s32.totalorder %s351, %s367
    %p369 = scmp.eq.s32.totalorder %s29, 0
    %p370 = por %p368, %p369
    %s371 = ssub.s32 %s31, %s38
    %p372 = scmp.eq.s32.totalorder %s371, 0
    %s374 = sadd.s32 %s373, 1
    %s375 = scalar_select %p372, %s373, %s374
    %p378 = pneg %p372
    %p379 = scmp.eq.s32.totalorder %s23, 3
    %p380 = por %p378, %p379
    %p381 = scmp.ne.s32.totalorder %s373, %s376
    %p382 = scmp.eq.s32.totalorder %s23, 0
    %p383 = por %p381, %p382
    %p384 = scmp.ne.s32.totalorder %s373, %s376
    %p385 = scmp.eq.s32.totalorder %s28, 3
    %p386 = por %p384, %p385
    %p387 = scmp.ne.s32.totalorder %s376, %s377
    %p388 = scmp.eq.s32.totalorder %s28, 0
    %p389 = por %p387, %p388
    %p390 = scmp.ne.s32.totalorder %s376, %s377
    %p391 = scmp.eq.s32.totalorder %s29, 3
    %p392 = por %p390, %p391
    %p394 = scmp.ne.s32.totalorder %s377, %s393
    %p395 = scmp.eq.s32.totalorder %s29, 0
    %p396 = por %p394, %p395
    %s397 = ssub.s32 %s31, %s38
    %p398 = scmp.eq.s32.totalorder %s397, 0
    %s400 = sadd.s32 %s399, 1
    %s401 = scalar_select %p398, %s399, %s400
    %p404 = pneg %p398
    %p405 = scmp.eq.s32.totalorder %s23, 3
    %p406 = por %p404, %p405
    %p407 = scmp.ne.s32.totalorder %s399, %s402
    %p408 = scmp.eq.s32.totalorder %s23, 0
    %p409 = por %p407, %p408
    %p410 = scmp.ne.s32.totalorder %s399, %s402
    %p411 = scmp.eq.s32.totalorder %s28, 3
    %p412 = por %p410, %p411
    %p413 = scmp.ne.s32.totalorder %s402, %s403
    %p414 = scmp.eq.s32.totalorder %s28, 0
    %p415 = por %p413, %p414
    %p416 = scmp.ne.s32.totalorder %s402, %s403
    %p417 = scmp.eq.s32.totalorder %s29, 3
    %p418 = por %p416, %p417
    %p420 = scmp.ne.s32.totalorder %s403, %s419
    %p421 = scmp.eq.s32.totalorder %s29, 0
    %p422 = por %p420, %p421
    %s424 = sadd.s32 %s423, 1
    %p427 = scmp.eq.s32.totalorder %s23, 3
    %p428 = scmp.ne.s32.totalorder %s423, %s425
    %p429 = scmp.eq.s32.totalorder %s23, 0
    %p430 = por %p428, %p429
    %p431 = scmp.ne.s32.totalorder %s423, %s425
    %p432 = scmp.eq.s32.totalorder %s28, 3
    %p433 = por %p431, %p432
    %p434 = scmp.ne.s32.totalorder %s425, %s426
    %p435 = scmp.eq.s32.totalorder %s28, 0
    %p436 = por %p434, %p435
    %p437 = scmp.ne.s32.totalorder %s425, %s426
    %p438 = scmp.eq.s32.totalorder %s29, 3
    %p439 = por %p437, %p438
    %p441 = scmp.ne.s32.totalorder %s426, %s440
    %p442 = scmp.eq.s32.totalorder %s29, 0
    %p443 = por %p441, %p442
    %s445 = sadd.s32 %s444, 1
    %p448 = scmp.eq.s32.totalorder %s23, 3
    %p449 = scmp.ne.s32.totalorder %s444, %s446
    %p450 = scmp.eq.s32.totalorder %s23, 0
    %p451 = por %p449, %p450
    %p452 = scmp.ne.s32.totalorder %s444, %s446
    %p453 = scmp.eq.s32.totalorder %s28, 3
    %p454 = por %p452, %p453
    %p455 = scmp.ne.s32.totalorder %s446, %s447
    %p456 = scmp.eq.s32.totalorder %s28, 0
    %p457 = por %p455, %p456
    %p458 = scmp.ne.s32.totalorder %s446, %s447
    %p459 = scmp.eq.s32.totalorder %s29, 3
    %p460 = por %p458, %p459
    %p462 = scmp.ne.s32.totalorder %s447, %s461
    %p463 = scmp.eq.s32.totalorder %s29, 0
    %p464 = por %p462, %p463
    %s465 = ssub.s32 %s30, %s42
    %p466 = scmp.eq.s32.totalorder %s465, 0
    %s468 = sadd.s32 %s467, 1
    %s469 = scalar_select %p466, %s467, %s468
    %p472 = pneg %p466
    %p473 = scmp.eq.s32.totalorder %s23, 3
    %p474 = por %p472, %p473
    %p475 = scmp.ne.s32.totalorder %s467, %s470
    %p476 = scmp.eq.s32.totalorder %s23, 0
    %p477 = por %p475, %p476
    %p478 = scmp.ne.s32.totalorder %s467, %s470
    %p479 = scmp.eq.s32.totalorder %s28, 3
    %p480 = por %p478, %p479
    %p481 = scmp.ne.s32.totalorder %s470, %s471
    %p482 = scmp.eq.s32.totalorder %s28, 0
    %p483 = por %p481, %p482
    %p484 = scmp.ne.s32.totalorder %s470, %s471
    %p485 = scmp.eq.s32.totalorder %s29, 3
    %p486 = por %p484, %p485
    %p488 = scmp.ne.s32.totalorder %s471, %s487
    %p489 = scmp.eq.s32.totalorder %s29, 0
    %p490 = por %p488, %p489
    %p491 = scmp.le.s32.totalorder 1, %s23
    %p492 = scmp.lt.s32.totalorder %s23, 5
    %p493 = pnand %p491, %p492
    %p494 = pneg %p493
    // Predicated region
    $region9: #{mae_vit_forward.2} parent=5 // pred_check
      _
    $region10: #{mae_vit_forward.2} parent=5 // pred_check_branch
      %496 = sbr.rel (%p493) target = $region12
    $region11: #{mae_vit_forward.2} parent=5 // pred_region
      %s497 = ssub.s32 %s23, 1
      // Predicated region
      $region13: #{mae_vit_forward.2} parent=11 // pred_check
        %p498 = pneg %p82
      $region14: #{mae_vit_forward.2} parent=11 // pred_check_branch
        %500 = sbr.rel (%p498) target = $region16
      $region15: #{mae_vit_forward.2} parent=11 // pred_region
        _
      $region16: #{mae_vit_forward.2} parent=11 // pred_fallthru
        _
      // Predicated region
      $region17: #{mae_vit_forward.2} parent=11 // pred_check
        %p501 = pneg %p103
      $region18: #{mae_vit_forward.2} parent=11 // pred_check_branch
        %503 = sbr.rel (%p501) target = $region20
      $region19: #{mae_vit_forward.2} parent=11 // pred_region
        _
      $region20: #{mae_vit_forward.2} parent=11 // pred_fallthru
        _
      // Predicated region
      $region21: #{mae_vit_forward.2} parent=11 // pred_check
        %p504 = pneg %p436
      $region22: #{mae_vit_forward.2} parent=11 // pred_check_branch
        %506 = sbr.rel (%p504) target = $region24
      $region23: #{mae_vit_forward.2} parent=11 // pred_region
        _
      $region24: #{mae_vit_forward.2} parent=11 // pred_fallthru
        _
      // Predicated region
      $region25: #{mae_vit_forward.2} parent=11 // pred_check
        %p507 = pneg %p457
      $region26: #{mae_vit_forward.2} parent=11 // pred_check_branch
        %509 = sbr.rel (%p507) target = $region28
      $region27: #{mae_vit_forward.2} parent=11 // pred_region
        _
      $region28: #{mae_vit_forward.2} parent=11 // pred_fallthru
        _
    $region12: #{mae_vit_forward.2} parent=5 // pred_fallthru
      _
    %p510 = scmp.lt.s32.totalorder %s23, 4
    // Predicated region
    $region29: #{mae_vit_forward.2} parent=5 // pred_check
      %p511 = pneg %p510
    $region30: #{mae_vit_forward.2} parent=5 // pred_check_branch
      %513 = sbr.rel (%p511) target = $region32
    $region31: #{mae_vit_forward.2} parent=5 // pred_region
      // Predicated region
      $region33: #{mae_vit_forward.2} parent=31 // pred_check
        %p514 = pneg %p55
      $region34: #{mae_vit_forward.2} parent=31 // pred_check_branch
        %516 = sbr.rel (%p514) target = $region36
      $region35: #{mae_vit_forward.2} parent=31 // pred_region
        %p517 = scmp.lt.s32.totalorder %s30, 1
        %s518 = scalar_select %p517, %s30, 1
        %s519 = smul.addr %s518, 2
        %s520 = smul.addr %s519, 8
        %s521 = scalar_lea.vmem %s0, %s520
      $region36: #{mae_vit_forward.2} parent=31 // pred_fallthru
        _
      // Predicated region
      $region37: #{mae_vit_forward.2} parent=31 // pred_check
        %p522 = pneg %p123
      $region38: #{mae_vit_forward.2} parent=31 // pred_check_branch
        %524 = sbr.rel (%p522) target = $region40
      $region39: #{mae_vit_forward.2} parent=31 // pred_region
        %p525 = scmp.lt.s32.totalorder %s31, 1
        %s526 = scalar_select %p525, %s31, 1
        %s527 = smul.addr %s526, 4
        %s528 = smul.addr %s527, 4
        %s529 = scalar_lea.vmem %s3, %s528
      $region40: #{mae_vit_forward.2} parent=31 // pred_fallthru
        _
      // Predicated region
      $region41: #{mae_vit_forward.2} parent=31 // pred_check
        %p530 = pneg %p149
      $region42: #{mae_vit_forward.2} parent=31 // pred_check_branch
        %532 = sbr.rel (%p530) target = $region44
      $region43: #{mae_vit_forward.2} parent=31 // pred_region
        %p533 = scmp.lt.s32.totalorder %s31, 1
        %s534 = scalar_select %p533, %s31, 1
        %s535 = scalar_lea.vmem %s4, %s534
      $region44: #{mae_vit_forward.2} parent=31 // pred_fallthru
        _
      // Predicated region
      $region45: #{mae_vit_forward.2} parent=31 // pred_check
        %p536 = pneg %p175
      $region46: #{mae_vit_forward.2} parent=31 // pred_check_branch
        %538 = sbr.rel (%p536) target = $region48
      $region47: #{mae_vit_forward.2} parent=31 // pred_region
        %p539 = scmp.lt.s32.totalorder %s31, 1
        %s540 = scalar_select %p539, %s31, 1
        %s541 = smul.addr %s540, 4
        %s542 = smul.addr %s541, 4
        %s543 = scalar_lea.vmem %s5, %s542
      $region48: #{mae_vit_forward.2} parent=31 // pred_fallthru
        _
      // Predicated region
      $region49: #{mae_vit_forward.2} parent=31 // pred_check
        %p544 = pneg %p201
      $region50: #{mae_vit_forward.2} parent=31 // pred_check_branch
        %546 = sbr.rel (%p544) target = $region52
      $region51: #{mae_vit_forward.2} parent=31 // pred_region
        %p547 = scmp.lt.s32.totalorder %s31, 1
        %s548 = scalar_select %p547, %s31, 1
        %s549 = scalar_lea.vmem %s6, %s548
      $region52: #{mae_vit_forward.2} parent=31 // pred_fallthru
        _
      // Predicated region
      $region53: #{mae_vit_forward.2} parent=31 // pred_check
        %p550 = pneg %p227
      $region54: #{mae_vit_forward.2} parent=31 // pred_check_branch
        %552 = sbr.rel (%p550) target = $region56
      $region55: #{mae_vit_forward.2} parent=31 // pred_region
        %p553 = scmp.lt.s32.totalorder %s31, 1
        %s554 = scalar_select %p553, %s31, 1
        %s555 = scalar_lea.vmem %s7, %s554
      $region56: #{mae_vit_forward.2} parent=31 // pred_fallthru
        _
      // Predicated region
      $region57: #{mae_vit_forward.2} parent=31 // pred_check
        %p556 = pneg %p253
      $region58: #{mae_vit_forward.2} parent=31 // pred_check_branch
        %558 = sbr.rel (%p556) target = $region60
      $region59: #{mae_vit_forward.2} parent=31 // pred_region
        %p559 = scmp.lt.s32.totalorder %s31, 1
        %s560 = scalar_select %p559, %s31, 1
        %s561 = scalar_lea.vmem %s8, %s560
      $region60: #{mae_vit_forward.2} parent=31 // pred_fallthru
        _
      // Predicated region
      $region61: #{mae_vit_forward.2} parent=31 // pred_check
        %p562 = pneg %p279
      $region62: #{mae_vit_forward.2} parent=31 // pred_check_branch
        %564 = sbr.rel (%p562) target = $region64
      $region63: #{mae_vit_forward.2} parent=31 // pred_region
        %p565 = scmp.lt.s32.totalorder %s31, 1
        %s566 = scalar_select %p565, %s31, 1
        %s567 = smul.addr %s566, 4
        %s568 = smul.addr %s567, 4
        %s569 = scalar_lea.vmem %s9, %s568
      $region64: #{mae_vit_forward.2} parent=31 // pred_fallthru
        _
      // Predicated region
      $region65: #{mae_vit_forward.2} parent=31 // pred_check
        %p570 = pneg %p305
      $region66: #{mae_vit_forward.2} parent=31 // pred_check_branch
        %572 = sbr.rel (%p570) target = $region68
      $region67: #{mae_vit_forward.2} parent=31 // pred_region
        %p573 = scmp.lt.s32.totalorder %s31, 1
        %s574 = scalar_select %p573, %s31, 1
        %s575 = scalar_lea.vmem %s10, %s574
      $region68: #{mae_vit_forward.2} parent=31 // pred_fallthru
        _
      // Predicated region
      $region69: #{mae_vit_forward.2} parent=31 // pred_check
        %p576 = pneg %p331
      $region70: #{mae_vit_forward.2} parent=31 // pred_check_branch
        %578 = sbr.rel (%p576) target = $region72
      $region71: #{mae_vit_forward.2} parent=31 // pred_region
        %p579 = scmp.lt.s32.totalorder %s31, 1
        %s580 = scalar_select %p579, %s31, 1
        %s581 = smul.addr %s580, 8
        %s582 = smul.addr %s581, 4
        %s583 = scalar_lea.vmem %s11, %s582
      $region72: #{mae_vit_forward.2} parent=31 // pred_fallthru
        _
      // Predicated region
      $region73: #{mae_vit_forward.2} parent=31 // pred_check
        %p584 = pneg %p357
      $region74: #{mae_vit_forward.2} parent=31 // pred_check_branch
        %586 = sbr.rel (%p584) target = $region76
      $region75: #{mae_vit_forward.2} parent=31 // pred_region
        %p587 = scmp.lt.s32.totalorder %s31, 1
        %s588 = scalar_select %p587, %s31, 1
        %s589 = scalar_lea.vmem %s12, %s588
      $region76: #{mae_vit_forward.2} parent=31 // pred_fallthru
        _
      // Predicated region
      $region77: #{mae_vit_forward.2} parent=31 // pred_check
        %p590 = pneg %p383
      $region78: #{mae_vit_forward.2} parent=31 // pred_check_branch
        %592 = sbr.rel (%p590) target = $region80
      $region79: #{mae_vit_forward.2} parent=31 // pred_region
        %p593 = scmp.lt.s32.totalorder %s31, 1
        %s594 = scalar_select %p593, %s31, 1
        %s595 = scalar_lea.vmem %s13, %s594
      $region80: #{mae_vit_forward.2} parent=31 // pred_fallthru
        _
      // Predicated region
      $region81: #{mae_vit_forward.2} parent=31 // pred_check
        %p596 = pneg %p409
      $region82: #{mae_vit_forward.2} parent=31 // pred_check_branch
        %598 = sbr.rel (%p596) target = $region84
      $region83: #{mae_vit_forward.2} parent=31 // pred_region
        %p599 = scmp.lt.s32.totalorder %s31, 1
        %s600 = scalar_select %p599, %s31, 1
        %s601 = scalar_lea.vmem %s14, %s600
      $region84: #{mae_vit_forward.2} parent=31 // pred_fallthru
        _
    $region32: #{mae_vit_forward.2} parent=5 // pred_fallthru
      _
    %p602 = scmp.le.s32.totalorder 1, %s23
    %p603 = scmp.lt.s32.totalorder %s23, 5
    %p604 = pnand %p602, %p603
    %p605 = pneg %p604
    // Predicated region
    $region85: #{mae_vit_forward.2} parent=5 // pred_check
      _
    $region86: #{mae_vit_forward.2} parent=5 // pred_check_branch
      %607 = sbr.rel (%p604) target = $region88
    $region87: #{mae_vit_forward.2} parent=5 // pred_region
      %s608 = ssub.s32 %s23, 1
      %p609 = scmp.lt.s32.totalorder %s32, 1
      %s610 = scalar_select %p609, %s32, 1
      %s611 = smul.addr %s610, 2
      %s612 = smul.addr %s611, 8
      %s613 = scalar_lea.vmem %s0, %s612
      %p614 = pneg %p61
      %p615 = pneg %p58
      %p616 = pneg %p82
      %p617 = pneg %p79
      %p618 = pneg %p103
      %p619 = pneg %p100
      %p620 = scmp.lt.s32.totalorder %s33, 1
      %s621 = scalar_select %p620, %s33, 1
      %s622 = smul.addr %s621, 4
      %s623 = smul.addr %s622, 4
      %s624 = scalar_lea.vmem %s3, %s623
      %p625 = pneg %p129
      %p626 = pneg %p126
      %p627 = scmp.lt.s32.totalorder %s33, 1
      %s628 = scalar_select %p627, %s33, 1
      %s629 = scalar_lea.vmem %s4, %s628
      %p630 = pneg %p155
      %p631 = pneg %p152
      %p632 = scmp.lt.s32.totalorder %s33, 1
      %s633 = scalar_select %p632, %s33, 1
      %s634 = smul.addr %s633, 4
      %s635 = smul.addr %s634, 4
      %s636 = scalar_lea.vmem %s5, %s635
      %p637 = pneg %p181
      %p638 = pneg %p178
      %p639 = scmp.lt.s32.totalorder %s33, 1
      %s640 = scalar_select %p639, %s33, 1
      %s641 = scalar_lea.vmem %s6, %s640
      %p642 = pneg %p207
      %p643 = pneg %p204
      %p644 = scmp.lt.s32.totalorder %s33, 1
      %s645 = scalar_select %p644, %s33, 1
      %s646 = scalar_lea.vmem %s7, %s645
      %p647 = pneg %p233
      %p648 = pneg %p230
      %p649 = scmp.lt.s32.totalorder %s33, 1
      %s650 = scalar_select %p649, %s33, 1
      %s651 = scalar_lea.vmem %s8, %s650
      %p652 = pneg %p259
      %p653 = pneg %p256
      %p654 = scmp.lt.s32.totalorder %s33, 1
      %s655 = scalar_select %p654, %s33, 1
      %s656 = smul.addr %s655, 4
      %s657 = smul.addr %s656, 4
      %s658 = scalar_lea.vmem %s9, %s657
      %p659 = pneg %p285
      %p660 = pneg %p282
      %p661 = scmp.lt.s32.totalorder %s33, 1
      %s662 = scalar_select %p661, %s33, 1
      %s663 = scalar_lea.vmem %s10, %s662
      %p664 = pneg %p311
      %p665 = pneg %p308
      %p666 = scmp.lt.s32.totalorder %s33, 1
      %s667 = scalar_select %p666, %s33, 1
      %s668 = smul.addr %s667, 8
      %s669 = smul.addr %s668, 4
      %s670 = scalar_lea.vmem %s11, %s669
      %p671 = pneg %p337
      %p672 = pneg %p334
      %p673 = scmp.lt.s32.totalorder %s33, 1
      %s674 = scalar_select %p673, %s33, 1
      %s675 = scalar_lea.vmem %s12, %s674
      %p676 = pneg %p363
      %p677 = pneg %p360
      %p678 = scmp.lt.s32.totalorder %s33, 1
      %s679 = scalar_select %p678, %s33, 1
      %s680 = scalar_lea.vmem %s13, %s679
      %p681 = pneg %p389
      %p682 = pneg %p386
      %p683 = scmp.lt.s32.totalorder %s33, 1
      %s684 = scalar_select %p683, %s33, 1
      %s685 = scalar_lea.vmem %s14, %s684
      %p686 = pneg %p415
      %p687 = pneg %p412
      %p688 = pneg %p436
      %p689 = pneg %p433
      %p690 = pneg %p457
      %p691 = pneg %p454
      %p692 = pneg %p483
      %p693 = pneg %p480
      %p694 = scmp.lt.s32.totalorder %s32, 1
      %s695 = scalar_select %p694, %s32, 1
      %s696 = smul.addr %s695, 2
      %s697 = smul.addr %s696, 8
      %s698 = scalar_lea.vmem %s17, %s697
      %p699 = scmp.lt.s32.totalorder %s32, 1
      %s700 = scalar_select %p699, %s32, 1
      %s701 = smul.addr %s700, 2
      %s702 = smul.addr %s701, 8
      %s703 = scalar_lea.vmem %s0, %s702
      %p704 = scmp.lt.s32.totalorder %s33, 1
      %s705 = scalar_select %p704, %s33, 1
      %s706 = smul.addr %s705, 4
      %s707 = smul.addr %s706, 4
      %s708 = scalar_lea.vmem %s3, %s707
      %p709 = scmp.lt.s32.totalorder %s33, 1
      %s710 = scalar_select %p709, %s33, 1
      %s711 = scalar_lea.vmem %s4, %s710
      %p712 = scmp.lt.s32.totalorder %s33, 1
      %s713 = scalar_select %p712, %s33, 1
      %s714 = smul.addr %s713, 4
      %s715 = smul.addr %s714, 4
      %s716 = scalar_lea.vmem %s5, %s715
      %p717 = scmp.lt.s32.totalorder %s33, 1
      %s718 = scalar_select %p717, %s33, 1
      %s719 = scalar_lea.vmem %s6, %s718
      %p720 = scmp.lt.s32.totalorder %s33, 1
      %s721 = scalar_select %p720, %s33, 1
      %s722 = scalar_lea.vmem %s7, %s721
      %p723 = scmp.lt.s32.totalorder %s33, 1
      %s724 = scalar_select %p723, %s33, 1
      %s725 = scalar_lea.vmem %s8, %s724
      %p726 = scmp.lt.s32.totalorder %s33, 1
      %s727 = scalar_select %p726, %s33, 1
      %s728 = smul.addr %s727, 4
      %s729 = smul.addr %s728, 4
      %s730 = scalar_lea.vmem %s9, %s729
      %p731 = scmp.lt.s32.totalorder %s33, 1
      %s732 = scalar_select %p731, %s33, 1
      %s733 = scalar_lea.vmem %s10, %s732
      %p734 = scmp.lt.s32.totalorder %s33, 1
      %s735 = scalar_select %p734, %s33, 1
      %s736 = smul.addr %s735, 8
      %s737 = smul.addr %s736, 4
      %s738 = scalar_lea.vmem %s11, %s737
      %p739 = scmp.lt.s32.totalorder %s33, 1
      %s740 = scalar_select %p739, %s33, 1
      %s741 = scalar_lea.vmem %s12, %s740
      %p742 = scmp.lt.s32.totalorder %s33, 1
      %s743 = scalar_select %p742, %s33, 1
      %s744 = scalar_lea.vmem %s13, %s743
      %p745 = scmp.lt.s32.totalorder %s33, 1
      %s746 = scalar_select %p745, %s33, 1
      %s747 = scalar_lea.vmem %s14, %s746
      %p748 = scmp.lt.s32.totalorder %s32, 1
      %s749 = scalar_select %p748, %s32, 1
      %s750 = smul.addr %s749, 2
      %s751 = smul.addr %s750, 8
      %s752 = scalar_lea.vmem %s17, %s751
      %p754 = scmp.eq.s32.totalorder %s33, 0
      // Predicated region
      $region89: #{mae_vit_forward.2} parent=87 // pred_check
        %p755 = pneg %p754
      $region90: #{mae_vit_forward.2} parent=87 // pred_check_branch
        %757 = sbr.rel (%p755) target = $region92
      $region91: #{mae_vit_forward.2} parent=87 // pred_region
        %v758 = vld [vmem:[%s703] sm:$0xff]
        %v759 = vld [vmem:[%s703 + $0x8] sm:$0xff]
        %v760 = vpack.c.bf16 %v759, %v758
        %v761 = vld [vmem:[%s1] sm:$0xf]
        %v762 = vld [vmem:[%s2] sm:$0x1]
        %v764 = vlaneseq
        %v765 = vshrl.u32 %v764, 7
        %v766 = vsub.s32 0, %v765
        %v767 = vrot.slane %v762, %v766
        %vm769 = vcmask 64512
        %v771 = vsel %vm769, %v760, 0
        %vm773 = vcmask 1043456
        %v775 = vsel %vm773, %v761, 0
        %777 = vmatprep.subr.bf16.mxu0 0
        %778 = vmatpush1.bf16.msra.mxu0 %v775
        %779 = vmatprep.subr.bf16.mxu0 0
        %780 = vmatpush1.bf16.msra.mxu0 0
        %781 = vmatprep.subr.bf16.mxu0 0
        %782 = vmatpush1.bf16.msra.mxu0 0
        %783 = vmatprep.subr.bf16.mxu0 0
        %784 = vmatpush1.bf16.msra.mxu0 0
        %785 = vmatprep.subr.bf16.mxu0 0
        %786 = vmatpush1.bf16.msra.mxu0 0
        %787 = vmatprep.subr.bf16.mxu0 0
        %788 = vmatpush1.bf16.msra.mxu0 0
        %789 = vmatprep.subr.bf16.mxu0 0
        %790 = vmatpush1.bf16.msra.mxu0 0
        %791 = vmatprep.subr.bf16.mxu0 0
        %792 = vmatpush1.bf16.msra.mxu0 0
        %793 = vmatprep.subr.bf16.mxu0 0
        %794 = vmatpush1.bf16.msra.mxu0 0
        %795 = vmatprep.subr.bf16.mxu0 0
        %796 = vmatpush1.bf16.msra.mxu0 0
        %797 = vmatprep.subr.bf16.mxu0 0
        %798 = vmatpush1.bf16.msra.mxu0 0
        %799 = vmatprep.subr.bf16.mxu0 0
        %800 = vmatpush1.bf16.msra.mxu0 0
        %801 = vmatprep.subr.bf16.mxu0 0
        %802 = vmatpush1.bf16.msra.mxu0 0
        %803 = vmatprep.subr.bf16.mxu0 0
        %804 = vmatpush1.bf16.msra.mxu0 0
        %805 = vmatprep.subr.bf16.mxu0 0
        %806 = vmatpush1.bf16.msra.mxu0 0
        %807 = vmatprep.subr.bf16.mxu0 0
        %808 = vmatpush1.bf16.msra.mxu0 0
        %809 = vmatprep.mubr.bf16.mxu0 0
        %810 = vmatmul.mubr.bf16.gmra.mrb[0].mxu0 %v771
        %v811 = vpop.f32.mrb[0].mxu0
        %v812 = vadd.f32 %v767, %v811
        %v813 = vpop.f32.mrb[0].mxu0
        %v814 = vpop.f32.mrb[0].mxu0
        %v815 = vadd.f32 %v767, %v814
        %v816 = vpop.f32.mrb[0].mxu0
        %817 = vdwg.mxu0
        %vm818 = vcmask 261120
        %819 = vst.msk [vmem:[#allocation2] sm:$0xff] %vm818, %v812
        %820 = vst.msk [vmem:[#allocation2 + $0x8] sm:$0xff] %vm818, %v815
      $region92: #{mae_vit_forward.2} parent=87 // pred_fallthru
        _
      %v821 = vld [vmem:[#allocation2] sm:$0xff]
      %v822 = vld [vmem:[#allocation2 + $0x8] sm:$0xff]
      %v823 = vpack.c.bf16 %v822, %v821
      %v824 = vld [vmem:[%s708] sm:$0xf]
      %v825 = vld [vmem:[%s708 + $0x4] sm:$0xf]
      %v826 = vld [vmem:[%s708 + $0x8] sm:$0xf]
      %v827 = vld [vmem:[%s708 + $0xc] sm:$0xf]
      %v828 = vld [vmem:[%s711] sm:$0x1]
      %v830 = vlaneseq
      %v831 = vshrl.u32 %v830, 7
      %v832 = vsub.s32 0, %v831
      %v833 = vrot.slane %v828, %v832
      %v839 = vunpack.c.l.b16 %v824
      %v840 = vunpack.c.l.b16 %v825
      %v841 = vunpack.c.l.b16 %v826
      %v842 = vunpack.c.l.b16 %v827
      %v843 = vpack.c.b16 %v840, %v839
      %v844 = vpack.c.b16 %v842, %v841
      %vm847 = vcmask 261120
      %v849 = vsel %vm847, %v823, 0
      %851 = vmatprep.subr.bf16.mxu0 0
      %852 = vmatpush1.bf16.msra.mxu0 %v843
      %853 = vmatprep.subr.bf16.mxu0 0
      %854 = vmatpush1.bf16.msra.mxu0 %v844
      %855 = vmatprep.subr.bf16.mxu0 0
      %856 = vmatpush1.bf16.msra.mxu0 0
      %857 = vmatprep.subr.bf16.mxu0 0
      %858 = vmatpush1.bf16.msra.mxu0 0
      %859 = vmatprep.subr.bf16.mxu0 0
      %860 = vmatpush1.bf16.msra.mxu0 0
      %861 = vmatprep.subr.bf16.mxu0 0
      %862 = vmatpush1.bf16.msra.mxu0 0
      %863 = vmatprep.subr.bf16.mxu0 0
      %864 = vmatpush1.bf16.msra.mxu0 0
      %865 = vmatprep.subr.bf16.mxu0 0
      %866 = vmatpush1.bf16.msra.mxu0 0
      %867 = vmatprep.subr.bf16.mxu0 0
      %868 = vmatpush1.bf16.msra.mxu0 0
      %869 = vmatprep.subr.bf16.mxu0 0
      %870 = vmatpush1.bf16.msra.mxu0 0
      %871 = vmatprep.subr.bf16.mxu0 0
      %872 = vmatpush1.bf16.msra.mxu0 0
      %873 = vmatprep.subr.bf16.mxu0 0
      %874 = vmatpush1.bf16.msra.mxu0 0
      %875 = vmatprep.subr.bf16.mxu0 0
      %876 = vmatpush1.bf16.msra.mxu0 0
      %877 = vmatprep.subr.bf16.mxu0 0
      %878 = vmatpush1.bf16.msra.mxu0 0
      %879 = vmatprep.subr.bf16.mxu0 0
      %880 = vmatpush1.bf16.msra.mxu0 0
      %881 = vmatprep.subr.bf16.mxu0 0
      %882 = vmatpush1.bf16.msra.mxu0 0
      %883 = vmatprep.mubr.bf16.mxu0 0
      %884 = vmatmul.mubr.bf16.gmra.mrb[0].mxu0 %v849
      %v885 = vpop.f32.mrb[0].mxu0
      %v886 = vadd.f32 %v833, %v885
      %v887 = vpop.f32.mrb[0].mxu0
      %v888 = vpop.f32.mrb[0].mxu0
      %v889 = vadd.f32 %v833, %v888
      %v890 = vpop.f32.mrb[0].mxu0
      %891 = vdwg.mxu0
      %v892 = vpack.c.bf16 %v889, %v886
      %v893 = vld [vmem:[%s716] sm:$0xf]
      %v894 = vld [vmem:[%s716 + $0x4] sm:$0xf]
      %v895 = vld [vmem:[%s716 + $0x8] sm:$0xf]
      %v896 = vld [vmem:[%s716 + $0xc] sm:$0xf]
      %898 = vrot.lane.b32.xlu0 %v892, 96
      %v899 = vpop.permute.xlu0 %898
      %vm900 = vcmask 64512
      %v902 = vsel %vm900, %v892, 0
      %v905 = vsel %vm900, %v899, 0
      %907 = vmatprep.subr.bf16.mxu0 0
      %908 = vmatpush1.bf16.xpose.msra.mxu0 %v905
      %909 = vmatprep.subr.bf16.mxu0 0
      %910 = vmatpush1.bf16.xpose.msra.mxu0 0
      %911 = vmatprep.subr.bf16.mxu0 0
      %912 = vmatpush1.bf16.xpose.msra.mxu0 0
      %913 = vmatprep.subr.bf16.mxu0 0
      %914 = vmatpush1.bf16.xpose.msra.mxu0 0
      %915 = vmatprep.subr.bf16.mxu0 0
      %916 = vmatpush1.bf16.xpose.msra.mxu0 0
      %917 = vmatprep.subr.bf16.mxu0 0
      %918 = vmatpush1.bf16.xpose.msra.mxu0 0
      %919 = vmatprep.subr.bf16.mxu0 0
      %920 = vmatpush1.bf16.xpose.msra.mxu0 0
      %921 = vmatprep.subr.bf16.mxu0 0
      %922 = vmatpush1.bf16.xpose.msra.mxu0 0
      %923 = vmatprep.subr.bf16.mxu0 0
      %924 = vmatpush1.bf16.xpose.msra.mxu0 0
      %925 = vmatprep.subr.bf16.mxu0 0
      %926 = vmatpush1.bf16.xpose.msra.mxu0 0
      %927 = vmatprep.subr.bf16.mxu0 0
      %928 = vmatpush1.bf16.xpose.msra.mxu0 0
      %929 = vmatprep.subr.bf16.mxu0 0
      %930 = vmatpush1.bf16.xpose.msra.mxu0 0
      %931 = vmatprep.subr.bf16.mxu0 0
      %932 = vmatpush1.bf16.xpose.msra.mxu0 0
      %933 = vmatprep.subr.bf16.mxu0 0
      %934 = vmatpush1.bf16.xpose.msra.mxu0 0
      %935 = vmatprep.subr.bf16.mxu0 0
      %936 = vmatpush1.bf16.xpose.msra.mxu0 0
      %937 = vmatprep.subr.bf16.mxu0 0
      %938 = vmatpush1.bf16.xpose.msra.mxu0 0
      %939 = vmatprep.mubr.bf16.mxu0 0
      %940 = vmatmul.mubr.bf16.gmra.mrb[0].mxu0 %v902
      %v941 = vpop.f32.mrb[0].mxu0
      %v942 = vadd.f32 0.0, %v941
      %v943 = vpop.f32.mrb[0].mxu0
      %v944 = vpop.f32.mrb[0].mxu0
      %v945 = vadd.f32 0.0, %v944
      %v946 = vpop.f32.mrb[0].mxu0
      %947 = vdwg.mxu0
      %v948 = vmul.f32 %v942, 0.35355338
      %v949 = vmul.f32 %v945, 0.35355338
      %vm950 = vcmask 130048
      %v951 = vsel %vm950, %v948, -inf
      %952 = vmax.xlane.f32.xlu0 %v951
      %v953 = vpop.xlane.xlu0 %952
      %v954 = vsel %vm950, %v949, -inf
      %955 = vmax.xlane.f32.xlu0 %v954
      %v956 = vpop.xlane.xlu0 %955
      %v957 = vsub.f32 %v948, %v953
      %v958 = vsub.f32 %v949, %v956
      %v959 = vmul.f32 %v957, 1.442695
      %v960 = vpow.pop %v959
      %v961 = vmul.f32 %v958, 1.442695
      %v962 = vpow.pop %v961
      %v963 = vsel %vm950, %v960, 0.0
      %964 = vadd.xlane.f32.xlu0 %v963
      %v965 = vpop.xlane.xlu0 %964
      %v966 = vsel %vm950, %v962, 0.0
      %967 = vadd.xlane.f32.xlu0 %v966
      %v968 = vpop.xlane.xlu0 %967
      %v969 = vrcp.pop %v965
      %v970 = vrcp.pop %v968
      %v971 = vmul.f32 %v960, %v969
      %v972 = vmul.f32 %v962, %v970
      %v973 = vpack.c.bf16 %v972, %v971
      %974 = vrot.lane.b32.xlu0 %v892, 64
      %v975 = vpop.permute.xlu0 %974
      %v978 = vsel %vm950, %v973, 0
      %980 = vmatprep.subr.bf16.mxu0 0
      %981 = vmatpush1.bf16.msra.mxu0 %v975
      %982 = vmatprep.subr.bf16.mxu0 0
      %983 = vmatpush1.bf16.msra.mxu0 0
      %984 = vmatprep.subr.bf16.mxu0 0
      %985 = vmatpush1.bf16.msra.mxu0 0
      %986 = vmatprep.subr.bf16.mxu0 0
      %987 = vmatpush1.bf16.msra.mxu0 0
      %988 = vmatprep.subr.bf16.mxu0 0
      %989 = vmatpush1.bf16.msra.mxu0 0
      %990 = vmatprep.subr.bf16.mxu0 0
      %991 = vmatpush1.bf16.msra.mxu0 0
      %992 = vmatprep.subr.bf16.mxu0 0
      %993 = vmatpush1.bf16.msra.mxu0 0
      %994 = vmatprep.subr.bf16.mxu0 0
      %995 = vmatpush1.bf16.msra.mxu0 0
      %996 = vmatprep.subr.bf16.mxu0 0
      %997 = vmatpush1.bf16.msra.mxu0 0
      %998 = vmatprep.subr.bf16.mxu0 0
      %999 = vmatpush1.bf16.msra.mxu0 0
      %1000 = vmatprep.subr.bf16.mxu0 0
      %1001 = vmatpush1.bf16.msra.mxu0 0
      %1002 = vmatprep.subr.bf16.mxu0 0
      %1003 = vmatpush1.bf16.msra.mxu0 0
      %1004 = vmatprep.subr.bf16.mxu0 0
      %1005 = vmatpush1.bf16.msra.mxu0 0
      %1006 = vmatprep.subr.bf16.mxu0 0
      %1007 = vmatpush1.bf16.msra.mxu0 0
      %1008 = vmatprep.subr.bf16.mxu0 0
      %1009 = vmatpush1.bf16.msra.mxu0 0
      %1010 = vmatprep.subr.bf16.mxu0 0
      %1011 = vmatpush1.bf16.msra.mxu0 0
      %1012 = vmatprep.mubr.bf16.mxu0 0
      %1013 = vmatmul.mubr.bf16.gmra.mrb[0].mxu0 %v978
      %v1014 = vpop.f32.mrb[0].mxu0
      %v1015 = vadd.f32 0.0, %v1014
      %v1016 = vpop.f32.mrb[0].mxu0
      %v1017 = vpop.f32.mrb[0].mxu0
      %v1018 = vadd.f32 0.0, %v1017
      %v1019 = vpop.f32.mrb[0].mxu0
      %1020 = vdwg.mxu0
      %v1021 = vpack.c.bf16 %v1018, %v1015
      %1022 = vrot.lane.b32.xlu0 %v892, 120
      %v1023 = vpop.permute.xlu0 %1022
      %1024 = vrot.lane.b32.xlu0 %v892, 88
      %v1025 = vpop.permute.xlu0 %1024
      %v1027 = vsel %vm900, %v1023, 0
      %v1030 = vsel %vm900, %v1025, 0
      %1032 = vmatprep.subr.bf16.mxu0 0
      %1033 = vmatpush1.bf16.xpose.msra.mxu0 %v1030
      %1034 = vmatprep.subr.bf16.mxu0 0
      %1035 = vmatpush1.bf16.xpose.msra.mxu0 0
      %1036 = vmatprep.subr.bf16.mxu0 0
      %1037 = vmatpush1.bf16.xpose.msra.mxu0 0
      %1038 = vmatprep.subr.bf16.mxu0 0
      %1039 = vmatpush1.bf16.xpose.msra.mxu0 0
      %1040 = vmatprep.subr.bf16.mxu0 0
      %1041 = vmatpush1.bf16.xpose.msra.mxu0 0
      %1042 = vmatprep.subr.bf16.mxu0 0
      %1043 = vmatpush1.bf16.xpose.msra.mxu0 0
      %1044 = vmatprep.subr.bf16.mxu0 0
      %1045 = vmatpush1.bf16.xpose.msra.mxu0 0
      %1046 = vmatprep.subr.bf16.mxu0 0
      %1047 = vmatpush1.bf16.xpose.msra.mxu0 0
      %1048 = vmatprep.subr.bf16.mxu0 0
      %1049 = vmatpush1.bf16.xpose.msra.mxu0 0
      %1050 = vmatprep.subr.bf16.mxu0 0
      %1051 = vmatpush1.bf16.xpose.msra.mxu0 0
      %1052 = vmatprep.subr.bf16.mxu0 0
      %1053 = vmatpush1.bf16.xpose.msra.mxu0 0
      %1054 = vmatprep.subr.bf16.mxu0 0
      %1055 = vmatpush1.bf16.xpose.msra.mxu0 0
      %1056 = vmatprep.subr.bf16.mxu0 0
      %1057 = vmatpush1.bf16.xpose.msra.mxu0 0
      %1058 = vmatprep.subr.bf16.mxu0 0
      %1059 = vmatpush1.bf16.xpose.msra.mxu0 0
      %1060 = vmatprep.subr.bf16.mxu0 0
      %1061 = vmatpush1.bf16.xpose.msra.mxu0 0
      %1062 = vmatprep.subr.bf16.mxu0 0
      %1063 = vmatpush1.bf16.xpose.msra.mxu0 0
      %1064 = vmatprep.mubr.bf16.mxu0 0
      %1065 = vmatmul.mubr.bf16.gmra.mrb[0].mxu0 %v1027
      %v1066 = vpop.f32.mrb[0].mxu0
      %v1067 = vadd.f32 0.0, %v1066
      %v1068 = vpop.f32.mrb[0].mxu0
      %v1069 = vpop.f32.mrb[0].mxu0
      %v1070 = vadd.f32 0.0, %v1069
      %v1071 = vpop.f32.mrb[0].mxu0
      %1072 = vdwg.mxu0
      %v1073 = vmul.f32 %v1067, 0.35355338
      %v1074 = vmul.f32 %v1070, 0.35355338
      %v1075 = vsel %vm950, %v1073, -inf
      %1076 = vmax.xlane.f32.xlu0 %v1075
      %v1077 = vpop.xlane.xlu0 %1076
      %v1078 = vsel %vm950, %v1074, -inf
      %1079 = vmax.xlane.f32.xlu0 %v1078
      %v1080 = vpop.xlane.xlu0 %1079
      %v1081 = vsub.f32 %v1073, %v1077
      %v1082 = vsub.f32 %v1074, %v1080
      %v1083 = vmul.f32 %v1081, 1.442695
      %v1084 = vpow.pop %v1083
      %v1085 = vmul.f32 %v1082, 1.442695
      %v1086 = vpow.pop %v1085
      %v1087 = vsel %vm950, %v1084, 0.0
      %1088 = vadd.xlane.f32.xlu0 %v1087
      %v1089 = vpop.xlane.xlu0 %1088
      %v1090 = vsel %vm950, %v1086, 0.0
      %1091 = vadd.xlane.f32.xlu0 %v1090
      %v1092 = vpop.xlane.xlu0 %1091
      %v1093 = vrcp.pop %v1089
      %v1094 = vrcp.pop %v1092
      %v1095 = vmul.f32 %v1084, %v1093
      %v1096 = vmul.f32 %v1086, %v1094
      %v1097 = vpack.c.bf16 %v1096, %v1095
      %1098 = vrot.lane.b32.xlu0 %v892, 56
      %v1099 = vpop.permute.xlu0 %1098
      %v1102 = vsel %vm950, %v1097, 0
      %1104 = vmatprep.subr.bf16.mxu0 0
      %1105 = vmatpush1.bf16.msra.mxu0 %v1099
      %1106 = vmatprep.subr.bf16.mxu0 0
      %1107 = vmatpush1.bf16.msra.mxu0 0
      %1108 = vmatprep.subr.bf16.mxu0 0
      %1109 = vmatpush1.bf16.msra.mxu0 0
      %1110 = vmatprep.subr.bf16.mxu0 0
      %1111 = vmatpush1.bf16.msra.mxu0 0
      %1112 = vmatprep.subr.bf16.mxu0 0
      %1113 = vmatpush1.bf16.msra.mxu0 0
      %1114 = vmatprep.subr.bf16.mxu0 0
      %1115 = vmatpush1.bf16.msra.mxu0 0
      %1116 = vmatprep.subr.bf16.mxu0 0
      %1117 = vmatpush1.bf16.msra.mxu0 0
      %1118 = vmatprep.subr.bf16.mxu0 0
      %1119 = vmatpush1.bf16.msra.mxu0 0
      %1120 = vmatprep.subr.bf16.mxu0 0
      %1121 = vmatpush1.bf16.msra.mxu0 0
      %1122 = vmatprep.subr.bf16.mxu0 0
      %1123 = vmatpush1.bf16.msra.mxu0 0
      %1124 = vmatprep.subr.bf16.mxu0 0
      %1125 = vmatpush1.bf16.msra.mxu0 0
      %1126 = vmatprep.subr.bf16.mxu0 0
      %1127 = vmatpush1.bf16.msra.mxu0 0
      %1128 = vmatprep.subr.bf16.mxu0 0
      %1129 = vmatpush1.bf16.msra.mxu0 0
      %1130 = vmatprep.subr.bf16.mxu0 0
      %1131 = vmatpush1.bf16.msra.mxu0 0
      %1132 = vmatprep.subr.bf16.mxu0 0
      %1133 = vmatpush1.bf16.msra.mxu0 0
      %1134 = vmatprep.subr.bf16.mxu0 0
      %1135 = vmatpush1.bf16.msra.mxu0 0
      %1136 = vmatprep.mubr.bf16.mxu0 0
      %1137 = vmatmul.mubr.bf16.gmra.mrb[0].mxu0 %v1102
      %v1138 = vpop.f32.mrb[0].mxu0
      %v1139 = vadd.f32 0.0, %v1138
      %v1140 = vpop.f32.mrb[0].mxu0
      %v1141 = vpop.f32.mrb[0].mxu0
      %v1142 = vadd.f32 0.0, %v1141
      %v1143 = vpop.f32.mrb[0].mxu0
      %1144 = vdwg.mxu0
      %v1145 = vpack.c.bf16 %v1142, %v1139
      %v1147 = vsel %vm900, %v1145, 0
      %vm1149 = vcmask 1043456
      %v1151 = vsel %vm1149, %v894, 0
      %1153 = vmatprep.subr.bf16.mxu0 0
      %1154 = vmatpush1.bf16.msra.mxu0 %v1151
      %1155 = vmatprep.subr.bf16.mxu0 0
      %1156 = vmatpush1.bf16.msra.mxu0 0
      %1157 = vmatprep.subr.bf16.mxu0 0
      %1158 = vmatpush1.bf16.msra.mxu0 0
      %1159 = vmatprep.subr.bf16.mxu0 0
      %1160 = vmatpush1.bf16.msra.mxu0 0
      %1161 = vmatprep.subr.bf16.mxu0 0
      %1162 = vmatpush1.bf16.msra.mxu0 0
      %1163 = vmatprep.subr.bf16.mxu0 0
      %1164 = vmatpush1.bf16.msra.mxu0 0
      %1165 = vmatprep.subr.bf16.mxu0 0
      %1166 = vmatpush1.bf16.msra.mxu0 0
      %1167 = vmatprep.subr.bf16.mxu0 0
      %1168 = vmatpush1.bf16.msra.mxu0 0
      %1169 = vmatprep.subr.bf16.mxu0 0
      %1170 = vmatpush1.bf16.msra.mxu0 0
      %1171 = vmatprep.subr.bf16.mxu0 0
      %1172 = vmatpush1.bf16.msra.mxu0 0
      %1173 = vmatprep.subr.bf16.mxu0 0
      %1174 = vmatpush1.bf16.msra.mxu0 0
      %1175 = vmatprep.subr.bf16.mxu0 0
      %1176 = vmatpush1.bf16.msra.mxu0 0
      %1177 = vmatprep.subr.bf16.mxu0 0
      %1178 = vmatpush1.bf16.msra.mxu0 0
      %1179 = vmatprep.subr.bf16.mxu0 0
      %1180 = vmatpush1.bf16.msra.mxu0 0
      %1181 = vmatprep.subr.bf16.mxu0 0
      %1182 = vmatpush1.bf16.msra.mxu0 0
      %1183 = vmatprep.subr.bf16.mxu0 0
      %1184 = vmatpush1.bf16.msra.mxu0 0
      %1185 = vmatprep.mubr.bf16.mxu0 0
      %1186 = vmatmul.mubr.bf16.gmra.mrb[0].mxu0 %v1147
      %v1187 = vpop.f32.mrb[0].mxu0
      %v1188 = vadd.f32 0.0, %v1187
      %v1189 = vpop.f32.mrb[0].mxu0
      %v1190 = vpop.f32.mrb[0].mxu0
      %v1191 = vadd.f32 0.0, %v1190
      %v1192 = vpop.f32.mrb[0].mxu0
      %1193 = vdwg.mxu0
      %v1195 = vsel %vm900, %v1021, 0
      %v1198 = vsel %vm1149, %v893, 0
      %1200 = vmatprep.subr.bf16.mxu0 0
      %1201 = vmatpush1.bf16.msra.mxu0 %v1198
      %1202 = vmatprep.subr.bf16.mxu0 0
      %1203 = vmatpush1.bf16.msra.mxu0 0
      %1204 = vmatprep.subr.bf16.mxu0 0
      %1205 = vmatpush1.bf16.msra.mxu0 0
      %1206 = vmatprep.subr.bf16.mxu0 0
      %1207 = vmatpush1.bf16.msra.mxu0 0
      %1208 = vmatprep.subr.bf16.mxu0 0
      %1209 = vmatpush1.bf16.msra.mxu0 0
      %1210 = vmatprep.subr.bf16.mxu0 0
      %1211 = vmatpush1.bf16.msra.mxu0 0
      %1212 = vmatprep.subr.bf16.mxu0 0
      %1213 = vmatpush1.bf16.msra.mxu0 0
      %1214 = vmatprep.subr.bf16.mxu0 0
      %1215 = vmatpush1.bf16.msra.mxu0 0
      %1216 = vmatprep.subr.bf16.mxu0 0
      %1217 = vmatpush1.bf16.msra.mxu0 0
      %1218 = vmatprep.subr.bf16.mxu0 0
      %1219 = vmatpush1.bf16.msra.mxu0 0
      %1220 = vmatprep.subr.bf16.mxu0 0
      %1221 = vmatpush1.bf16.msra.mxu0 0
      %1222 = vmatprep.subr.bf16.mxu0 0
      %1223 = vmatpush1.bf16.msra.mxu0 0
      %1224 = vmatprep.subr.bf16.mxu0 0
      %1225 = vmatpush1.bf16.msra.mxu0 0
      %1226 = vmatprep.subr.bf16.mxu0 0
      %1227 = vmatpush1.bf16.msra.mxu0 0
      %1228 = vmatprep.subr.bf16.mxu0 0
      %1229 = vmatpush1.bf16.msra.mxu0 0
      %1230 = vmatprep.subr.bf16.mxu0 0
      %1231 = vmatpush1.bf16.msra.mxu0 0
      %1232 = vmatprep.mubr.bf16.mxu0 0
      %1233 = vmatmul.mubr.bf16.gmra.mrb[0].mxu0 %v1195
      %v1234 = vpop.f32.mrb[0].mxu0
      %v1235 = vadd.f32 %v1188, %v1234
      %v1236 = vpop.f32.mrb[0].mxu0
      %v1237 = vpop.f32.mrb[0].mxu0
      %v1238 = vadd.f32 %v1191, %v1237
      %v1239 = vpop.f32.mrb[0].mxu0
      %1240 = vdwg.mxu0
      %1241 = vrot.lane.b32.xlu0 %v892, 112
      %v1242 = vpop.permute.xlu0 %1241
      %1243 = vrot.lane.b32.xlu0 %v892, 80
      %v1244 = vpop.permute.xlu0 %1243
      %v1246 = vsel %vm900, %v1242, 0
      %v1249 = vsel %vm900, %v1244, 0
      %1251 = vmatprep.subr.bf16.mxu0 0
      %1252 = vmatpush1.bf16.xpose.msra.mxu0 %v1249
      %1253 = vmatprep.subr.bf16.mxu0 0
      %1254 = vmatpush1.bf16.xpose.msra.mxu0 0
      %1255 = vmatprep.subr.bf16.mxu0 0
      %1256 = vmatpush1.bf16.xpose.msra.mxu0 0
      %1257 = vmatprep.subr.bf16.mxu0 0
      %1258 = vmatpush1.bf16.xpose.msra.mxu0 0
      %1259 = vmatprep.subr.bf16.mxu0 0
      %1260 = vmatpush1.bf16.xpose.msra.mxu0 0
      %1261 = vmatprep.subr.bf16.mxu0 0
      %1262 = vmatpush1.bf16.xpose.msra.mxu0 0
      %1263 = vmatprep.subr.bf16.mxu0 0
      %1264 = vmatpush1.bf16.xpose.msra.mxu0 0
      %1265 = vmatprep.subr.bf16.mxu0 0
      %1266 = vmatpush1.bf16.xpose.msra.mxu0 0
      %1267 = vmatprep.subr.bf16.mxu0 0
      %1268 = vmatpush1.bf16.xpose.msra.mxu0 0
      %1269 = vmatprep.subr.bf16.mxu0 0
      %1270 = vmatpush1.bf16.xpose.msra.mxu0 0
      %1271 = vmatprep.subr.bf16.mxu0 0
      %1272 = vmatpush1.bf16.xpose.msra.mxu0 0
      %1273 = vmatprep.subr.bf16.mxu0 0
      %1274 = vmatpush1.bf16.xpose.msra.mxu0 0
      %1275 = vmatprep.subr.bf16.mxu0 0
      %1276 = vmatpush1.bf16.xpose.msra.mxu0 0
      %1277 = vmatprep.subr.bf16.mxu0 0
      %1278 = vmatpush1.bf16.xpose.msra.mxu0 0
      %1279 = vmatprep.subr.bf16.mxu0 0
      %1280 = vmatpush1.bf16.xpose.msra.mxu0 0
      %1281 = vmatprep.subr.bf16.mxu0 0
      %1282 = vmatpush1.bf16.xpose.msra.mxu0 0
      %1283 = vmatprep.mubr.bf16.mxu0 0
      %1284 = vmatmul.mubr.bf16.gmra.mrb[0].mxu0 %v1246
      %v1285 = vpop.f32.mrb[0].mxu0
      %v1286 = vadd.f32 0.0, %v1285
      %v1287 = vpop.f32.mrb[0].mxu0
      %v1288 = vpop.f32.mrb[0].mxu0
      %v1289 = vadd.f32 0.0, %v1288
      %v1290 = vpop.f32.mrb[0].mxu0
      %1291 = vdwg.mxu0
      %v1292 = vmul.f32 %v1286, 0.35355338
      %v1293 = vmul.f32 %v1289, 0.35355338
      %v1294 = vsel %vm950, %v1292, -inf
      %1295 = vmax.xlane.f32.xlu0 %v1294
      %v1296 = vpop.xlane.xlu0 %1295
      %v1297 = vsel %vm950, %v1293, -inf
      %1298 = vmax.xlane.f32.xlu0 %v1297
      %v1299 = vpop.xlane.xlu0 %1298
      %v1300 = vsub.f32 %v1292, %v1296
      %v1301 = vsub.f32 %v1293, %v1299
      %v1302 = vmul.f32 %v1300, 1.442695
      %v1303 = vpow.pop %v1302
      %v1304 = vmul.f32 %v1301, 1.442695
      %v1305 = vpow.pop %v1304
      %v1306 = vsel %vm950, %v1303, 0.0
      %1307 = vadd.xlane.f32.xlu0 %v1306
      %v1308 = vpop.xlane.xlu0 %1307
      %v1309 = vsel %vm950, %v1305, 0.0
      %1310 = vadd.xlane.f32.xlu0 %v1309
      %v1311 = vpop.xlane.xlu0 %1310
      %v1312 = vrcp.pop %v1308
      %v1313 = vrcp.pop %v1311
      %v1314 = vmul.f32 %v1303, %v1312
      %v1315 = vmul.f32 %v1305, %v1313
      %v1316 = vpack.c.bf16 %v1315, %v1314
      %1317 = vrot.lane.b32.xlu0 %v892, 48
      %v1318 = vpop.permute.xlu0 %1317
      %v1321 = vsel %vm950, %v1316, 0
      %1323 = vmatprep.subr.bf16.mxu0 0
      %1324 = vmatpush1.bf16.msra.mxu0 %v1318
      %1325 = vmatprep.subr.bf16.mxu0 0
      %1326 = vmatpush1.bf16.msra.mxu0 0
      %1327 = vmatprep.subr.bf16.mxu0 0
      %1328 = vmatpush1.bf16.msra.mxu0 0
      %1329 = vmatprep.subr.bf16.mxu0 0
      %1330 = vmatpush1.bf16.msra.mxu0 0
      %1331 = vmatprep.subr.bf16.mxu0 0
      %1332 = vmatpush1.bf16.msra.mxu0 0
      %1333 = vmatprep.subr.bf16.mxu0 0
      %1334 = vmatpush1.bf16.msra.mxu0 0
      %1335 = vmatprep.subr.bf16.mxu0 0
      %1336 = vmatpush1.bf16.msra.mxu0 0
      %1337 = vmatprep.subr.bf16.mxu0 0
      %1338 = vmatpush1.bf16.msra.mxu0 0
      %1339 = vmatprep.subr.bf16.mxu0 0
      %1340 = vmatpush1.bf16.msra.mxu0 0
      %1341 = vmatprep.subr.bf16.mxu0 0
      %1342 = vmatpush1.bf16.msra.mxu0 0
      %1343 = vmatprep.subr.bf16.mxu0 0
      %1344 = vmatpush1.bf16.msra.mxu0 0
      %1345 = vmatprep.subr.bf16.mxu0 0
      %1346 = vmatpush1.bf16.msra.mxu0 0
      %1347 = vmatprep.subr.bf16.mxu0 0
      %1348 = vmatpush1.bf16.msra.mxu0 0
      %1349 = vmatprep.subr.bf16.mxu0 0
      %1350 = vmatpush1.bf16.msra.mxu0 0
      %1351 = vmatprep.subr.bf16.mxu0 0
      %1352 = vmatpush1.bf16.msra.mxu0 0
      %1353 = vmatprep.subr.bf16.mxu0 0
      %1354 = vmatpush1.bf16.msra.mxu0 0
      %1355 = vmatprep.mubr.bf16.mxu0 0
      %1356 = vmatmul.mubr.bf16.gmra.mrb[0].mxu0 %v1321
      %v1357 = vpop.f32.mrb[0].mxu0
      %v1358 = vadd.f32 0.0, %v1357
      %v1359 = vpop.f32.mrb[0].mxu0
      %v1360 = vpop.f32.mrb[0].mxu0
      %v1361 = vadd.f32 0.0, %v1360
      %v1362 = vpop.f32.mrb[0].mxu0
      %1363 = vdwg.mxu0
      %v1364 = vpack.c.bf16 %v1361, %v1358
      %v1366 = vsel %vm900, %v1364, 0
      %v1369 = vsel %vm1149, %v895, 0
      %1371 = vmatprep.subr.bf16.mxu0 0
      %1372 = vmatpush1.bf16.msra.mxu0 %v1369
      %1373 = vmatprep.subr.bf16.mxu0 0
      %1374 = vmatpush1.bf16.msra.mxu0 0
      %1375 = vmatprep.subr.bf16.mxu0 0
      %1376 = vmatpush1.bf16.msra.mxu0 0
      %1377 = vmatprep.subr.bf16.mxu0 0
      %1378 = vmatpush1.bf16.msra.mxu0 0
      %1379 = vmatprep.subr.bf16.mxu0 0
      %1380 = vmatpush1.bf16.msra.mxu0 0
      %1381 = vmatprep.subr.bf16.mxu0 0
      %1382 = vmatpush1.bf16.msra.mxu0 0
      %1383 = vmatprep.subr.bf16.mxu0 0
      %1384 = vmatpush1.bf16.msra.mxu0 0
      %1385 = vmatprep.subr.bf16.mxu0 0
      %1386 = vmatpush1.bf16.msra.mxu0 0
      %1387 = vmatprep.subr.bf16.mxu0 0
      %1388 = vmatpush1.bf16.msra.mxu0 0
      %1389 = vmatprep.subr.bf16.mxu0 0
      %1390 = vmatpush1.bf16.msra.mxu0 0
      %1391 = vmatprep.subr.bf16.mxu0 0
      %1392 = vmatpush1.bf16.msra.mxu0 0
      %1393 = vmatprep.subr.bf16.mxu0 0
      %1394 = vmatpush1.bf16.msra.mxu0 0
      %1395 = vmatprep.subr.bf16.mxu0 0
      %1396 = vmatpush1.bf16.msra.mxu0 0
      %1397 = vmatprep.subr.bf16.mxu0 0
      %1398 = vmatpush1.bf16.msra.mxu0 0
      %1399 = vmatprep.subr.bf16.mxu0 0
      %1400 = vmatpush1.bf16.msra.mxu0 0
      %1401 = vmatprep.subr.bf16.mxu0 0
      %1402 = vmatpush1.bf16.msra.mxu0 0
      %1403 = vmatprep.mubr.bf16.mxu0 0
      %1404 = vmatmul.mubr.bf16.gmra.mrb[0].mxu0 %v1366
      %v1405 = vpop.f32.mrb[0].mxu0
      %v1406 = vadd.f32 0.0, %v1405
      %v1407 = vpop.f32.mrb[0].mxu0
      %v1408 = vpop.f32.mrb[0].mxu0
      %v1409 = vadd.f32 0.0, %v1408
      %v1410 = vpop.f32.mrb[0].mxu0
      %1411 = vdwg.mxu0
      %v1412 = vadd.f32 %v1235, %v1406
      %v1413 = vadd.f32 %v1238, %v1409
      %1414 = vrot.lane.b32.xlu0 %v892, 104
      %v1415 = vpop.permute.xlu0 %1414
      %1416 = vrot.lane.b32.xlu0 %v892, 72
      %v1417 = vpop.permute.xlu0 %1416
      %v1419 = vsel %vm900, %v1415, 0
      %v1422 = vsel %vm900, %v1417, 0
      %1424 = vmatprep.subr.bf16.mxu0 0
      %1425 = vmatpush1.bf16.xpose.msra.mxu0 %v1422
      %1426 = vmatprep.subr.bf16.mxu0 0
      %1427 = vmatpush1.bf16.xpose.msra.mxu0 0
      %1428 = vmatprep.subr.bf16.mxu0 0
      %1429 = vmatpush1.bf16.xpose.msra.mxu0 0
      %1430 = vmatprep.subr.bf16.mxu0 0
      %1431 = vmatpush1.bf16.xpose.msra.mxu0 0
      %1432 = vmatprep.subr.bf16.mxu0 0
      %1433 = vmatpush1.bf16.xpose.msra.mxu0 0
      %1434 = vmatprep.subr.bf16.mxu0 0
      %1435 = vmatpush1.bf16.xpose.msra.mxu0 0
      %1436 = vmatprep.subr.bf16.mxu0 0
      %1437 = vmatpush1.bf16.xpose.msra.mxu0 0
      %1438 = vmatprep.subr.bf16.mxu0 0
      %1439 = vmatpush1.bf16.xpose.msra.mxu0 0
      %1440 = vmatprep.subr.bf16.mxu0 0
      %1441 = vmatpush1.bf16.xpose.msra.mxu0 0
      %1442 = vmatprep.subr.bf16.mxu0 0
      %1443 = vmatpush1.bf16.xpose.msra.mxu0 0
      %1444 = vmatprep.subr.bf16.mxu0 0
      %1445 = vmatpush1.bf16.xpose.msra.mxu0 0
      %1446 = vmatprep.subr.bf16.mxu0 0
      %1447 = vmatpush1.bf16.xpose.msra.mxu0 0
      %1448 = vmatprep.subr.bf16.mxu0 0
      %1449 = vmatpush1.bf16.xpose.msra.mxu0 0
      %1450 = vmatprep.subr.bf16.mxu0 0
      %1451 = vmatpush1.bf16.xpose.msra.mxu0 0
      %1452 = vmatprep.subr.bf16.mxu0 0
      %1453 = vmatpush1.bf16.xpose.msra.mxu0 0
      %1454 = vmatprep.subr.bf16.mxu0 0
      %1455 = vmatpush1.bf16.xpose.msra.mxu0 0
      %1456 = vmatprep.mubr.bf16.mxu0 0
      %1457 = vmatmul.mubr.bf16.gmra.mrb[0].mxu0 %v1419
      %v1458 = vpop.f32.mrb[0].mxu0
      %v1459 = vadd.f32 0.0, %v1458
      %v1460 = vpop.f32.mrb[0].mxu0
      %v1461 = vpop.f32.mrb[0].mxu0
      %v1462 = vadd.f32 0.0, %v1461
      %v1463 = vpop.f32.mrb[0].mxu0
      %1464 = vdwg.mxu0
      %v1465 = vmul.f32 %v1459, 0.35355338
      %v1466 = vmul.f32 %v1462, 0.35355338
      %v1467 = vsel %vm950, %v1465, -inf
      %1468 = vmax.xlane.f32.xlu0 %v1467
      %v1469 = vpop.xlane.xlu0 %1468
      %v1470 = vsel %vm950, %v1466, -inf
      %1471 = vmax.xlane.f32.xlu0 %v1470
      %v1472 = vpop.xlane.xlu0 %1471
      %v1473 = vsub.f32 %v1465, %v1469
      %v1474 = vsub.f32 %v1466, %v1472
      %v1475 = vmul.f32 %v1473, 1.442695
      %v1476 = vpow.pop %v1475
      %v1477 = vmul.f32 %v1474, 1.442695
      %v1478 = vpow.pop %v1477
      %v1479 = vsel %vm950, %v1476, 0.0
      %1480 = vadd.xlane.f32.xlu0 %v1479
      %v1481 = vpop.xlane.xlu0 %1480
      %v1482 = vsel %vm950, %v1478, 0.0
      %1483 = vadd.xlane.f32.xlu0 %v1482
      %v1484 = vpop.xlane.xlu0 %1483
      %v1485 = vrcp.pop %v1481
      %v1486 = vrcp.pop %v1484
      %v1487 = vmul.f32 %v1476, %v1485
      %v1488 = vmul.f32 %v1478, %v1486
      %v1489 = vpack.c.bf16 %v1488, %v1487
      %1490 = vrot.lane.b32.xlu0 %v892, 40
      %v1491 = vpop.permute.xlu0 %1490
      %v1494 = vsel %vm950, %v1489, 0
      %1496 = vmatprep.subr.bf16.mxu0 0
      %1497 = vmatpush1.bf16.msra.mxu0 %v1491
      %1498 = vmatprep.subr.bf16.mxu0 0
      %1499 = vmatpush1.bf16.msra.mxu0 0
      %1500 = vmatprep.subr.bf16.mxu0 0
      %1501 = vmatpush1.bf16.msra.mxu0 0
      %1502 = vmatprep.subr.bf16.mxu0 0
      %1503 = vmatpush1.bf16.msra.mxu0 0
      %1504 = vmatprep.subr.bf16.mxu0 0
      %1505 = vmatpush1.bf16.msra.mxu0 0
      %1506 = vmatprep.subr.bf16.mxu0 0
      %1507 = vmatpush1.bf16.msra.mxu0 0
      %1508 = vmatprep.subr.bf16.mxu0 0
      %1509 = vmatpush1.bf16.msra.mxu0 0
      %1510 = vmatprep.subr.bf16.mxu0 0
      %1511 = vmatpush1.bf16.msra.mxu0 0
      %1512 = vmatprep.subr.bf16.mxu0 0
      %1513 = vmatpush1.bf16.msra.mxu0 0
      %1514 = vmatprep.subr.bf16.mxu0 0
      %1515 = vmatpush1.bf16.msra.mxu0 0
      %1516 = vmatprep.subr.bf16.mxu0 0
      %1517 = vmatpush1.bf16.msra.mxu0 0
      %1518 = vmatprep.subr.bf16.mxu0 0
      %1519 = vmatpush1.bf16.msra.mxu0 0
      %1520 = vmatprep.subr.bf16.mxu0 0
      %1521 = vmatpush1.bf16.msra.mxu0 0
      %1522 = vmatprep.subr.bf16.mxu0 0
      %1523 = vmatpush1.bf16.msra.mxu0 0
      %1524 = vmatprep.subr.bf16.mxu0 0
      %1525 = vmatpush1.bf16.msra.mxu0 0
      %1526 = vmatprep.subr.bf16.mxu0 0
      %1527 = vmatpush1.bf16.msra.mxu0 0
      %1528 = vmatprep.mubr.bf16.mxu0 0
      %1529 = vmatmul.mubr.bf16.gmra.mrb[0].mxu0 %v1494
      %v1530 = vpop.f32.mrb[0].mxu0
      %v1531 = vadd.f32 0.0, %v1530
      %v1532 = vpop.f32.mrb[0].mxu0
      %v1533 = vpop.f32.mrb[0].mxu0
      %v1534 = vadd.f32 0.0, %v1533
      %v1535 = vpop.f32.mrb[0].mxu0
      %1536 = vdwg.mxu0
      %v1537 = vpack.c.bf16 %v1534, %v1531
      %v1539 = vsel %vm900, %v1537, 0
      %v1542 = vsel %vm1149, %v896, 0
      %1544 = vmatprep.subr.bf16.mxu0 0
      %1545 = vmatpush1.bf16.msra.mxu0 %v1542
      %1546 = vmatprep.subr.bf16.mxu0 0
      %1547 = vmatpush1.bf16.msra.mxu0 0
      %1548 = vmatprep.subr.bf16.mxu0 0
      %1549 = vmatpush1.bf16.msra.mxu0 0
      %1550 = vmatprep.subr.bf16.mxu0 0
      %1551 = vmatpush1.bf16.msra.mxu0 0
      %1552 = vmatprep.subr.bf16.mxu0 0
      %1553 = vmatpush1.bf16.msra.mxu0 0
      %1554 = vmatprep.subr.bf16.mxu0 0
      %1555 = vmatpush1.bf16.msra.mxu0 0
      %1556 = vmatprep.subr.bf16.mxu0 0
      %1557 = vmatpush1.bf16.msra.mxu0 0
      %1558 = vmatprep.subr.bf16.mxu0 0
      %1559 = vmatpush1.bf16.msra.mxu0 0
      %1560 = vmatprep.subr.bf16.mxu0 0
      %1561 = vmatpush1.bf16.msra.mxu0 0
      %1562 = vmatprep.subr.bf16.mxu0 0
      %1563 = vmatpush1.bf16.msra.mxu0 0
      %1564 = vmatprep.subr.bf16.mxu0 0
      %1565 = vmatpush1.bf16.msra.mxu0 0
      %1566 = vmatprep.subr.bf16.mxu0 0
      %1567 = vmatpush1.bf16.msra.mxu0 0
      %1568 = vmatprep.subr.bf16.mxu0 0
      %1569 = vmatpush1.bf16.msra.mxu0 0
      %1570 = vmatprep.subr.bf16.mxu0 0
      %1571 = vmatpush1.bf16.msra.mxu0 0
      %1572 = vmatprep.subr.bf16.mxu0 0
      %1573 = vmatpush1.bf16.msra.mxu0 0
      %1574 = vmatprep.subr.bf16.mxu0 0
      %1575 = vmatpush1.bf16.msra.mxu0 0
      %1576 = vmatprep.mubr.bf16.mxu0 0
      %1577 = vmatmul.mubr.bf16.gmra.mrb[0].mxu0 %v1539
      %v1578 = vpop.f32.mrb[0].mxu0
      %v1579 = vadd.f32 0.0, %v1578
      %v1580 = vpop.f32.mrb[0].mxu0
      %v1581 = vpop.f32.mrb[0].mxu0
      %v1582 = vadd.f32 0.0, %v1581
      %v1583 = vpop.f32.mrb[0].mxu0
      %1584 = vdwg.mxu0
      %v1585 = vadd.f32 %v1412, %v1579
      %v1586 = vadd.f32 %v1413, %v1582
      %v1587 = vld [vmem:[%s719] sm:$0x1]
      %v1589 = vlaneseq
      %v1590 = vshrl.u32 %v1589, 7
      %v1591 = vsub.s32 0, %v1590
      %v1592 = vrot.slane %v1587, %v1591
      %v1594 = vadd.f32 %v1585, %v1592
      %v1595 = vadd.f32 %v1586, %v1592
      %v1596 = vadd.f32 %v821, %v1594
      %v1597 = vadd.f32 %v822, %v1595
      %v1598 = vld [vmem:[%s722] sm:$0x1]
      %v1599 = vld [vmem:[%s725] sm:$0x1]
      %v1600 = vsel %vm847, %v1596, 0.0
      %1601 = vadd.xlane.f32.xlu0 %v1600
      %v1602 = vpop.xlane.xlu0 %1601
      %v1603 = vsel %vm847, %v1597, 0.0
      %1604 = vadd.xlane.f32.xlu0 %v1603
      %v1605 = vpop.xlane.xlu0 %1604
      %v1606 = vrcp.pop 32.0
      %v1607 = vmul.f32 %v1602, %v1606
      %v1608 = vmul.f32 %v1605, %v1606
      %v1609 = vsub.f32 %v1596, %v1607
      %v1610 = vsub.f32 %v1597, %v1608
      %v1611 = vmul.f32 %v1609, %v1609
      %v1612 = vmul.f32 %v1610, %v1610
      %v1613 = vsel %vm847, %v1611, 0.0
      %1614 = vadd.xlane.f32.xlu0 %v1613
      %v1615 = vpop.xlane.xlu0 %1614
      %v1616 = vsel %vm847, %v1612, 0.0
      %1617 = vadd.xlane.f32.xlu0 %v1616
      %v1618 = vpop.xlane.xlu0 %1617
      %v1619 = vmul.f32 %v1615, %v1606
      %v1620 = vmul.f32 %v1618, %v1606
      %v1621 = vadd.f32 %v1619, 1e-05
      %v1622 = vadd.f32 %v1620, 1e-05
      %v1623 = vrsqrt.pop %v1621
      %v1624 = vrsqrt.pop %v1622
      %v1625 = vmul.f32 %v1609, %v1623
      %v1626 = vmul.f32 %v1610, %v1624
      %v1628 = vlaneseq
      %v1629 = vshrl.u32 %v1628, 7
      %v1630 = vsub.s32 0, %v1629
      %v1631 = vrot.slane %v1598, %v1630
      %v1633 = vmul.f32 %v1625, %v1631
      %v1634 = vmul.f32 %v1626, %v1631
      %v1636 = vlaneseq
      %v1637 = vshrl.u32 %v1636, 7
      %v1638 = vsub.s32 0, %v1637
      %v1639 = vrot.slane %v1599, %v1638
      %v1641 = vadd.f32 %v1633, %v1639
      %v1642 = vadd.f32 %v1634, %v1639
      %v1643 = vpack.c.bf16 %v1642, %v1641
      %v1644 = vld [vmem:[%s730] sm:$0xf]
      %v1645 = vld [vmem:[%s730 + $0x4] sm:$0xf]
      %v1646 = vld [vmem:[%s730 + $0x8] sm:$0xf]
      %v1647 = vld [vmem:[%s730 + $0xc] sm:$0xf]
      %v1648 = vld [vmem:[%s733] sm:$0x1]
      %v1650 = vlaneseq
      %v1651 = vshrl.u32 %v1650, 7
      %v1652 = vsub.s32 0, %v1651
      %v1653 = vrot.slane %v1648, %v1652
      %v1659 = vunpack.c.l.b16 %v1644
      %v1660 = vunpack.c.l.b16 %v1645
      %v1661 = vunpack.c.l.b16 %v1646
      %v1662 = vunpack.c.l.b16 %v1647
      %v1663 = vpack.c.b16 %v1660, %v1659
      %v1664 = vpack.c.b16 %v1662, %v1661
      %v1668 = vsel %vm847, %v1643, 0
      %1670 = vmatprep.subr.bf16.mxu0 0
      %1671 = vmatpush1.bf16.msra.mxu0 %v1663
      %1672 = vmatprep.subr.bf16.mxu0 0
      %1673 = vmatpush1.bf16.msra.mxu0 %v1664
      %1674 = vmatprep.subr.bf16.mxu0 0
      %1675 = vmatpush1.bf16.msra.mxu0 0
      %1676 = vmatprep.subr.bf16.mxu0 0
      %1677 = vmatpush1.bf16.msra.mxu0 0
      %1678 = vmatprep.subr.bf16.mxu0 0
      %1679 = vmatpush1.bf16.msra.mxu0 0
      %1680 = vmatprep.subr.bf16.mxu0 0
      %1681 = vmatpush1.bf16.msra.mxu0 0
      %1682 = vmatprep.subr.bf16.mxu0 0
      %1683 = vmatpush1.bf16.msra.mxu0 0
      %1684 = vmatprep.subr.bf16.mxu0 0
      %1685 = vmatpush1.bf16.msra.mxu0 0
      %1686 = vmatprep.subr.bf16.mxu0 0
      %1687 = vmatpush1.bf16.msra.mxu0 0
      %1688 = vmatprep.subr.bf16.mxu0 0
      %1689 = vmatpush1.bf16.msra.mxu0 0
      %1690 = vmatprep.subr.bf16.mxu0 0
      %1691 = vmatpush1.bf16.msra.mxu0 0
      %1692 = vmatprep.subr.bf16.mxu0 0
      %1693 = vmatpush1.bf16.msra.mxu0 0
      %1694 = vmatprep.subr.bf16.mxu0 0
      %1695 = vmatpush1.bf16.msra.mxu0 0
      %1696 = vmatprep.subr.bf16.mxu0 0
      %1697 = vmatpush1.bf16.msra.mxu0 0
      %1698 = vmatprep.subr.bf16.mxu0 0
      %1699 = vmatpush1.bf16.msra.mxu0 0
      %1700 = vmatprep.subr.bf16.mxu0 0
      %1701 = vmatpush1.bf16.msra.mxu0 0
      %1702 = vmatprep.mubr.bf16.mxu0 0
      %1703 = vmatmul.mubr.bf16.gmra.mrb[0].mxu0 %v1668
      %v1704 = vpop.f32.mrb[0].mxu0
      %v1705 = vadd.f32 %v1653, %v1704
      %v1706 = vpop.f32.mrb[0].mxu0
      %v1707 = vpop.f32.mrb[0].mxu0
      %v1708 = vadd.f32 %v1653, %v1707
      %v1709 = vpop.f32.mrb[0].mxu0
      %1710 = vdwg.mxu0
      %v1711 = vmax.f32 %v1705, 0.0
      %v1712 = vmax.f32 %v1708, 0.0
      %v1713 = vpack.c.bf16 %v1712, %v1711
      %v1714 = vld [vmem:[%s738] sm:$0xf]
      %v1715 = vld [vmem:[%s738 + $0x4] sm:$0xf]
      %v1716 = vld [vmem:[%s738 + $0x8] sm:$0xf]
      %v1717 = vld [vmem:[%s738 + $0xc] sm:$0xf]
      %v1718 = vld [vmem:[%s738 + $0x10] sm:$0xf]
      %v1719 = vld [vmem:[%s738 + $0x14] sm:$0xf]
      %v1720 = vld [vmem:[%s738 + $0x18] sm:$0xf]
      %v1721 = vld [vmem:[%s738 + $0x1c] sm:$0xf]
      %v1722 = vld [vmem:[%s741] sm:$0x1]
      %v1724 = vlaneseq
      %v1725 = vshrl.u32 %v1724, 7
      %v1726 = vsub.s32 0, %v1725
      %v1727 = vrot.slane %v1722, %v1726
      %v1737 = vunpack.c.l.b16 %v1714
      %v1738 = vunpack.c.l.b16 %v1715
      %v1739 = vunpack.c.l.b16 %v1716
      %v1740 = vunpack.c.l.b16 %v1717
      %v1741 = vunpack.c.l.b16 %v1718
      %v1742 = vunpack.c.l.b16 %v1719
      %v1743 = vunpack.c.l.b16 %v1720
      %v1744 = vunpack.c.l.b16 %v1721
      %v1745 = vpack.c.b16 %v1738, %v1737
      %v1746 = vpack.c.b16 %v1740, %v1739
      %v1747 = vpack.c.b16 %v1742, %v1741
      %v1748 = vpack.c.b16 %v1744, %v1743
      %vm1753 = vcmask 523264
      %v1755 = vsel %vm1753, %v1713, 0
      %1757 = vmatprep.subr.bf16.mxu0 0
      %1758 = vmatpush1.bf16.msra.mxu0 %v1745
      %1759 = vmatprep.subr.bf16.mxu0 0
      %1760 = vmatpush1.bf16.msra.mxu0 %v1746
      %1761 = vmatprep.subr.bf16.mxu0 0
      %1762 = vmatpush1.bf16.msra.mxu0 %v1747
      %1763 = vmatprep.subr.bf16.mxu0 0
      %1764 = vmatpush1.bf16.msra.mxu0 %v1748
      %1765 = vmatprep.subr.bf16.mxu0 0
      %1766 = vmatpush1.bf16.msra.mxu0 0
      %1767 = vmatprep.subr.bf16.mxu0 0
      %1768 = vmatpush1.bf16.msra.mxu0 0
      %1769 = vmatprep.subr.bf16.mxu0 0
      %1770 = vmatpush1.bf16.msra.mxu0 0
      %1771 = vmatprep.subr.bf16.mxu0 0
      %1772 = vmatpush1.bf16.msra.mxu0 0
      %1773 = vmatprep.subr.bf16.mxu0 0
      %1774 = vmatpush1.bf16.msra.mxu0 0
      %1775 = vmatprep.subr.bf16.mxu0 0
      %1776 = vmatpush1.bf16.msra.mxu0 0
      %1777 = vmatprep.subr.bf16.mxu0 0
      %1778 = vmatpush1.bf16.msra.mxu0 0
      %1779 = vmatprep.subr.bf16.mxu0 0
      %1780 = vmatpush1.bf16.msra.mxu0 0
      %1781 = vmatprep.subr.bf16.mxu0 0
      %1782 = vmatpush1.bf16.msra.mxu0 0
      %1783 = vmatprep.subr.bf16.mxu0 0
      %1784 = vmatpush1.bf16.msra.mxu0 0
      %1785 = vmatprep.subr.bf16.mxu0 0
      %1786 = vmatpush1.bf16.msra.mxu0 0
      %1787 = vmatprep.subr.bf16.mxu0 0
      %1788 = vmatpush1.bf16.msra.mxu0 0
      %1789 = vmatprep.mubr.bf16.mxu0 0
      %1790 = vmatmul.mubr.bf16.gmra.mrb[0].mxu0 %v1755
      %v1791 = vpop.f32.mrb[0].mxu0
      %v1792 = vadd.f32 %v1727, %v1791
      %v1793 = vpop.f32.mrb[0].mxu0
      %v1794 = vpop.f32.mrb[0].mxu0
      %v1795 = vadd.f32 %v1727, %v1794
      %v1796 = vpop.f32.mrb[0].mxu0
      %1797 = vdwg.mxu0
      %v1798 = vadd.f32 %v1641, %v1792
      %v1799 = vadd.f32 %v1642, %v1795
      %v1800 = vld [vmem:[%s744] sm:$0x1]
      %v1801 = vld [vmem:[%s747] sm:$0x1]
      %v1802 = vsel %vm847, %v1798, 0.0
      %1803 = vadd.xlane.f32.xlu0 %v1802
      %v1804 = vpop.xlane.xlu0 %1803
      %v1805 = vsel %vm847, %v1799, 0.0
      %1806 = vadd.xlane.f32.xlu0 %v1805
      %v1807 = vpop.xlane.xlu0 %1806
      %v1808 = vmul.f32 %v1804, %v1606
      %v1809 = vmul.f32 %v1807, %v1606
      %v1810 = vsub.f32 %v1798, %v1808
      %v1811 = vsub.f32 %v1799, %v1809
      %v1812 = vmul.f32 %v1810, %v1810
      %v1813 = vmul.f32 %v1811, %v1811
      %v1814 = vsel %vm847, %v1812, 0.0
      %1815 = vadd.xlane.f32.xlu0 %v1814
      %v1816 = vpop.xlane.xlu0 %1815
      %v1817 = vsel %vm847, %v1813, 0.0
      %1818 = vadd.xlane.f32.xlu0 %v1817
      %v1819 = vpop.xlane.xlu0 %1818
      %v1820 = vmul.f32 %v1816, %v1606
      %v1821 = vmul.f32 %v1819, %v1606
      %v1822 = vadd.f32 %v1820, 1e-05
      %v1823 = vadd.f32 %v1821, 1e-05
      %v1824 = vrsqrt.pop %v1822
      %v1825 = vrsqrt.pop %v1823
      %v1826 = vmul.f32 %v1810, %v1824
      %v1827 = vmul.f32 %v1811, %v1825
      %v1829 = vlaneseq
      %v1830 = vshrl.u32 %v1829, 7
      %v1831 = vsub.s32 0, %v1830
      %v1832 = vrot.slane %v1800, %v1831
      %v1834 = vmul.f32 %v1826, %v1832
      %v1835 = vmul.f32 %v1827, %v1832
      %v1837 = vlaneseq
      %v1838 = vshrl.u32 %v1837, 7
      %v1839 = vsub.s32 0, %v1838
      %v1840 = vrot.slane %v1801, %v1839
      %v1842 = vadd.f32 %v1834, %v1840
      %v1843 = vadd.f32 %v1835, %v1840
      %1844 = vst.msk [vmem:[#allocation2] sm:$0xff] %vm847, %v1842
      %1845 = vst.msk [vmem:[#allocation2 + $0x8] sm:$0xff] %vm847, %v1843
      %p1846 = scmp.eq.s32.totalorder %s33, 1
      // Predicated region
      $region93: #{mae_vit_forward.2} parent=87 // pred_check
        %p1847 = pneg %p1846
      $region94: #{mae_vit_forward.2} parent=87 // pred_check_branch
        %1849 = sbr.rel (%p1847) target = $region96
      $region95: #{mae_vit_forward.2} parent=87 // pred_region
        %v1850 = vpack.c.bf16 %v1843, %v1842
        %v1851 = vld [vmem:[%s15] sm:$0xf]
        %v1852 = vld [vmem:[%s15 + $0x4] sm:$0xf]
        %v1853 = vld [vmem:[%s15 + $0x8] sm:$0xf]
        %v1854 = vld [vmem:[%s15 + $0xc] sm:$0xf]
        %v1855 = vld [vmem:[%s16] sm:$0x1]
        %v1857 = vlaneseq
        %v1858 = vshrl.u32 %v1857, 7
        %v1859 = vsub.s32 0, %v1858
        %v1860 = vrot.slane %v1855, %v1859
        %v1866 = vunpack.c.l.b16 %v1851
        %v1867 = vunpack.c.l.b16 %v1852
        %v1868 = vunpack.c.l.b16 %v1853
        %v1869 = vunpack.c.l.b16 %v1854
        %v1870 = vpack.c.b16 %v1867, %v1866
        %v1871 = vpack.c.b16 %v1869, %v1868
        %v1875 = vsel %vm847, %v1850, 0
        %1877 = vmatprep.subr.bf16.mxu0 0
        %1878 = vmatpush1.bf16.msra.mxu0 %v1870
        %1879 = vmatprep.subr.bf16.mxu0 0
        %1880 = vmatpush1.bf16.msra.mxu0 %v1871
        %1881 = vmatprep.subr.bf16.mxu0 0
        %1882 = vmatpush1.bf16.msra.mxu0 0
        %1883 = vmatprep.subr.bf16.mxu0 0
        %1884 = vmatpush1.bf16.msra.mxu0 0
        %1885 = vmatprep.subr.bf16.mxu0 0
        %1886 = vmatpush1.bf16.msra.mxu0 0
        %1887 = vmatprep.subr.bf16.mxu0 0
        %1888 = vmatpush1.bf16.msra.mxu0 0
        %1889 = vmatprep.subr.bf16.mxu0 0
        %1890 = vmatpush1.bf16.msra.mxu0 0
        %1891 = vmatprep.subr.bf16.mxu0 0
        %1892 = vmatpush1.bf16.msra.mxu0 0
        %1893 = vmatprep.subr.bf16.mxu0 0
        %1894 = vmatpush1.bf16.msra.mxu0 0
        %1895 = vmatprep.subr.bf16.mxu0 0
        %1896 = vmatpush1.bf16.msra.mxu0 0
        %1897 = vmatprep.subr.bf16.mxu0 0
        %1898 = vmatpush1.bf16.msra.mxu0 0
        %1899 = vmatprep.subr.bf16.mxu0 0
        %1900 = vmatpush1.bf16.msra.mxu0 0
        %1901 = vmatprep.subr.bf16.mxu0 0
        %1902 = vmatpush1.bf16.msra.mxu0 0
        %1903 = vmatprep.subr.bf16.mxu0 0
        %1904 = vmatpush1.bf16.msra.mxu0 0
        %1905 = vmatprep.subr.bf16.mxu0 0
        %1906 = vmatpush1.bf16.msra.mxu0 0
        %1907 = vmatprep.subr.bf16.mxu0 0
        %1908 = vmatpush1.bf16.msra.mxu0 0
        %1909 = vmatprep.mubr.bf16.mxu0 0
        %1910 = vmatmul.mubr.bf16.gmra.mrb[0].mxu0 %v1875
        %v1911 = vpop.f32.mrb[0].mxu0
        %v1912 = vadd.f32 %v1860, %v1911
        %v1913 = vpop.f32.mrb[0].mxu0
        %v1914 = vpop.f32.mrb[0].mxu0
        %v1915 = vadd.f32 %v1860, %v1914
        %v1916 = vpop.f32.mrb[0].mxu0
        %1917 = vdwg.mxu0
        %1918 = vst.msk [vmem:[%s752] sm:$0xff] %vm950, %v1912
        %1919 = vst.msk [vmem:[%s752 + $0x8] sm:$0xff] %vm950, %v1915
      $region96: #{mae_vit_forward.2} parent=87 // pred_fallthru
        _
      %p1920 = scmp.lt.s32.totalorder %s32, 1
      %s1921 = scalar_select %p1920, %s32, 1
      %s1922 = smul.addr %s1921, 2
      %s1923 = smul.addr %s1922, 8
      %s1924 = scalar_lea.vmem %s17, %s1923
      // Predicated region
      $region97: #{mae_vit_forward.2} parent=87 // pred_check
        %p1925 = pneg %p480
      $region98: #{mae_vit_forward.2} parent=87 // pred_check_branch
        %1927 = sbr.rel (%p1925) target = $region100
      $region99: #{mae_vit_forward.2} parent=87 // pred_region
        _
      $region100: #{mae_vit_forward.2} parent=87 // pred_fallthru
        _
    $region88: #{mae_vit_forward.2} parent=5 // pred_fallthru
      _
    %p1928 = scmp.le.s32.totalorder 2, %s23
    // Predicated region
    $region101: #{mae_vit_forward.2} parent=5 // pred_check
      %p1929 = pneg %p1928
    $region102: #{mae_vit_forward.2} parent=5 // pred_check_branch
      %1931 = sbr.rel (%p1929) target = $region104
    $region103: #{mae_vit_forward.2} parent=5 // pred_region
      %s1932 = ssub.s32 %s23, 2
      // Predicated region
      $region105: #{mae_vit_forward.2} parent=103 // pred_check
        %p1933 = pneg %p486
      $region106: #{mae_vit_forward.2} parent=103 // pred_check_branch
        %1935 = sbr.rel (%p1933) target = $region108
      $region107: #{mae_vit_forward.2} parent=103 // pred_region
        %p1936 = scmp.lt.s32.totalorder %s34, 1
        %s1937 = scalar_select %p1936, %s34, 1
        %s1938 = smul.addr %s1937, 2
        %s1939 = smul.addr %s1938, 8
        %s1940 = scalar_lea.vmem %s17, %s1939
      $region108: #{mae_vit_forward.2} parent=103 // pred_fallthru
        _
    $region104: #{mae_vit_forward.2} parent=5 // pred_fallthru
      _
  $region6: #{mae_vit_forward.2} parent=0 // loop_footer
    %s27 = sadd.s32 1, %s23
  $region7: #{mae_vit_forward.2} parent=0 // loop_footer_branch
    %22 = sbr.rel target = $region3
  $region8: #{mae_vit_forward.2} parent=0 // loop_exit
    _

// kernel: mae_vit_forward.3
$region0: #{mae_vit_forward.3}
  #allocation0 [shape = 'u32[]', space=smem, size = 0x4, offset = 0x4, fixed_abs, tag = 'smem constant byte address 0x4 - core index']
  #allocation1 [shape = 'u32[144,128]{1,0:T(1,128)}', space=vmem, size = 0x12000, scoped, tag = 'internal scratch']
  #allocation2 [shape = 'f32[64,16]{1,0:T(8,128)}', space=vmem, size = 0x8000, scoped, tag = 'scratch operand']
  %s0 = inlined_call_operand.vmem [shape: f32[2,64,16], index: 0, kind: input, shape index: {}]
  %s1 = inlined_call_operand.vmem [shape: bf16[8,32], index: 1, kind: input, shape index: {}]
  %s2 = inlined_call_operand.vmem [shape: f32[1,32], index: 2, kind: input, shape index: {}]
  %s3 = inlined_call_operand.vmem [shape: bf16[1,16,48], index: 3, kind: input, shape index: {}]
  %s4 = inlined_call_operand.vmem [shape: f32[1,1,48], index: 4, kind: input, shape index: {}]
  %s5 = inlined_call_operand.vmem [shape: bf16[1,16,16], index: 5, kind: input, shape index: {}]
  %s6 = inlined_call_operand.vmem [shape: f32[1,1,16], index: 6, kind: input, shape index: {}]
  %s7 = inlined_call_operand.vmem [shape: f32[1,1,16], index: 7, kind: input, shape index: {}]
  %s8 = inlined_call_operand.vmem [shape: f32[1,1,16], index: 8, kind: input, shape index: {}]
  %s9 = inlined_call_operand.vmem [shape: bf16[1,16,64], index: 9, kind: input, shape index: {}]
  %s10 = inlined_call_operand.vmem [shape: f32[1,1,64], index: 10, kind: input, shape index: {}]
  %s11 = inlined_call_operand.vmem [shape: bf16[1,64,16], index: 11, kind: input, shape index: {}]
  %s12 = inlined_call_operand.vmem [shape: f32[1,1,16], index: 12, kind: input, shape index: {}]
  %s13 = inlined_call_operand.vmem [shape: f32[1,1,16], index: 13, kind: input, shape index: {}]
  %s14 = inlined_call_operand.vmem [shape: f32[1,1,16], index: 14, kind: input, shape index: {}]
  %s15 = inlined_call_operand.vmem [shape: bf16[16,8], index: 15, kind: input, shape index: {}]
  %s16 = inlined_call_operand.vmem [shape: f32[1,8], index: 16, kind: input, shape index: {}]
  %s17 = inlined_call_operand.vmem [shape: f32[2,64,8], index: 17, kind: output, shape index: {}]
  %s18 = sld [smem:[#allocation0]]
  $region109: #{mae_vit_forward.3} parent=0
    _
  %s20 = ssub.s32 1, %s18
  %s21 = scalar_select 0, %s20, %s18
  loop: start=0, step=1, limit=4
  $region2: #{mae_vit_forward.3} parent=0 // loop_pre_header
    _
  $region3: #{mae_vit_forward.3} parent=0 // loop_header
    %s23 = sphi 0, %s27
    %p24 = scmp.ge.s32.totalorder %s23, 4
    %s30 = sphi 0, %s42
    %s31 = sphi 0, %s38
    %s32 = sphi 0, %s30
    %s33 = sphi 0, %s31
    %s34 = sphi 0, %s32
    %s35 = sphi 0, %s33
    %s45 = sphi 0, %s47
    %s48 = sphi 0, %s45
    %s49 = sphi 0, %s48
    %s65 = sphi 0, %s49
    %s69 = sphi 0, %s69
    %s71 = sphi 0, %s69
    %s72 = sphi 0, %s71
    %s86 = sphi 0, %s72
    %s90 = sphi 0, %s90
    %s92 = sphi 0, %s90
    %s93 = sphi 0, %s92
    %s107 = sphi 0, %s93
    %s113 = sphi 0, %s115
    %s116 = sphi 0, %s113
    %s117 = sphi 0, %s116
    %s133 = sphi 0, %s117
    %s139 = sphi 0, %s141
    %s142 = sphi 0, %s139
    %s143 = sphi 0, %s142
    %s159 = sphi 0, %s143
    %s165 = sphi 0, %s167
    %s168 = sphi 0, %s165
    %s169 = sphi 0, %s168
    %s185 = sphi 0, %s169
    %s191 = sphi 0, %s193
    %s194 = sphi 0, %s191
    %s195 = sphi 0, %s194
    %s211 = sphi 0, %s195
    %s217 = sphi 0, %s219
    %s220 = sphi 0, %s217
    %s221 = sphi 0, %s220
    %s237 = sphi 0, %s221
    %s243 = sphi 0, %s245
    %s246 = sphi 0, %s243
    %s247 = sphi 0, %s246
    %s263 = sphi 0, %s247
    %s269 = sphi 0, %s271
    %s272 = sphi 0, %s269
    %s273 = sphi 0, %s272
    %s289 = sphi 0, %s273
    %s295 = sphi 0, %s297
    %s298 = sphi 0, %s295
    %s299 = sphi 0, %s298
    %s315 = sphi 0, %s299
    %s321 = sphi 0, %s323
    %s324 = sphi 0, %s321
    %s325 = sphi 0, %s324
    %s341 = sphi 0, %s325
    %s347 = sphi 0, %s349
    %s350 = sphi 0, %s347
    %s351 = sphi 0, %s350
    %s367 = sphi 0, %s351
    %s373 = sphi 0, %s375
    %s376 = sphi 0, %s373
    %s377 = sphi 0, %s376
    %s393 = sphi 0, %s377
    %s399 = sphi 0, %s401
    %s402 = sphi 0, %s399
    %s403 = sphi 0, %s402
    %s419 = sphi 0, %s403
    %s423 = sphi 0, %s423
    %s425 = sphi 0, %s423
    %s426 = sphi 0, %s425
    %s440 = sphi 0, %s426
    %s444 = sphi 0, %s444
    %s446 = sphi 0, %s444
    %s447 = sphi 0, %s446
    %s461 = sphi 0, %s447
    %s467 = sphi 0, %s469
    %s470 = sphi 0, %s467
    %s471 = sphi 0, %s470
    %s487 = sphi 0, %s471
  $region4: #{mae_vit_forward.3} parent=0 // loop_header_branch
    %26 = sbr.rel (%p24) target = $region8
  $region5: #{mae_vit_forward.3} parent=0 // loop_body
    %s28 = ssub.s32 %s23, 1
    %s29 = ssub.s32 %s23, 2
    %s36 = sadd.s32 1, %s31
    %p37 = scmp.ge.s32.totalorder %s36, 1
    %s38 = scalar_select %p37, 0, %s36
    %s39 = sadd.s32 1, %s30
    %s40 = scalar_select %p37, %s39, %s30
    %p41 = scmp.ge.s32.totalorder %s40, 2
    %s42 = scalar_select %p41, 0, %s40
    %s43 = ssub.s32 %s30, %s42
    %p44 = scmp.eq.s32.totalorder %s43, 0
    %s46 = sadd.s32 %s45, 1
    %s47 = scalar_select %p44, %s45, %s46
    %p50 = pneg %p44
    %p51 = scmp.eq.s32.totalorder %s23, 1
    %p52 = por %p50, %p51
    %p53 = scmp.ne.s32.totalorder %s45, %s48
    %p54 = scmp.eq.s32.totalorder %s23, 0
    %p55 = por %p53, %p54
    %p56 = scmp.ne.s32.totalorder %s45, %s48
    %p57 = scmp.eq.s32.totalorder %s28, 1
    %p58 = por %p56, %p57
    %p59 = scmp.ne.s32.totalorder %s48, %s49
    %p60 = scmp.eq.s32.totalorder %s28, 0
    %p61 = por %p59, %p60
    %p62 = scmp.ne.s32.totalorder %s48, %s49
    %p63 = scmp.eq.s32.totalorder %s29, 1
    %p64 = por %p62, %p63
    %p66 = scmp.ne.s32.totalorder %s49, %s65
    %p67 = scmp.eq.s32.totalorder %s29, 0
    %p68 = por %p66, %p67
    %s70 = sadd.s32 %s69, 1
    %p73 = scmp.eq.s32.totalorder %s23, 1
    %p74 = scmp.ne.s32.totalorder %s69, %s71
    %p75 = scmp.eq.s32.totalorder %s23, 0
    %p76 = por %p74, %p75
    %p77 = scmp.ne.s32.totalorder %s69, %s71
    %p78 = scmp.eq.s32.totalorder %s28, 1
    %p79 = por %p77, %p78
    %p80 = scmp.ne.s32.totalorder %s71, %s72
    %p81 = scmp.eq.s32.totalorder %s28, 0
    %p82 = por %p80, %p81
    %p83 = scmp.ne.s32.totalorder %s71, %s72
    %p84 = scmp.eq.s32.totalorder %s29, 1
    %p85 = por %p83, %p84
    %p87 = scmp.ne.s32.totalorder %s72, %s86
    %p88 = scmp.eq.s32.totalorder %s29, 0
    %p89 = por %p87, %p88
    %s91 = sadd.s32 %s90, 1
    %p94 = scmp.eq.s32.totalorder %s23, 1
    %p95 = scmp.ne.s32.totalorder %s90, %s92
    %p96 = scmp.eq.s32.totalorder %s23, 0
    %p97 = por %p95, %p96
    %p98 = scmp.ne.s32.totalorder %s90, %s92
    %p99 = scmp.eq.s32.totalorder %s28, 1
    %p100 = por %p98, %p99
    %p101 = scmp.ne.s32.totalorder %s92, %s93
    %p102 = scmp.eq.s32.totalorder %s28, 0
    %p103 = por %p101, %p102
    %p104 = scmp.ne.s32.totalorder %s92, %s93
    %p105 = scmp.eq.s32.totalorder %s29, 1
    %p106 = por %p104, %p105
    %p108 = scmp.ne.s32.totalorder %s93, %s107
    %p109 = scmp.eq.s32.totalorder %s29, 0
    %p110 = por %p108, %p109
    %s111 = ssub.s32 %s31, %s38
    %p112 = scmp.eq.s32.totalorder %s111, 0
    %s114 = sadd.s32 %s113, 1
    %s115 = scalar_select %p112, %s113, %s114
    %p118 = pneg %p112
    %p119 = scmp.eq.s32.totalorder %s23, 1
    %p120 = por %p118, %p119
    %p121 = scmp.ne.s32.totalorder %s113, %s116
    %p122 = scmp.eq.s32.totalorder %s23, 0
    %p123 = por %p121, %p122
    %p124 = scmp.ne.s32.totalorder %s113, %s116
    %p125 = scmp.eq.s32.totalorder %s28, 1
    %p126 = por %p124, %p125
    %p127 = scmp.ne.s32.totalorder %s116, %s117
    %p128 = scmp.eq.s32.totalorder %s28, 0
    %p129 = por %p127, %p128
    %p130 = scmp.ne.s32.totalorder %s116, %s117
    %p131 = scmp.eq.s32.totalorder %s29, 1
    %p132 = por %p130, %p131
    %p134 = scmp.ne.s32.totalorder %s117, %s133
    %p135 = scmp.eq.s32.totalorder %s29, 0
    %p136 = por %p134, %p135
    %s137 = ssub.s32 %s31, %s38
    %p138 = scmp.eq.s32.totalorder %s137, 0
    %s140 = sadd.s32 %s139, 1
    %s141 = scalar_select %p138, %s139, %s140
    %p144 = pneg %p138
    %p145 = scmp.eq.s32.totalorder %s23, 1
    %p146 = por %p144, %p145
    %p147 = scmp.ne.s32.totalorder %s139, %s142
    %p148 = scmp.eq.s32.totalorder %s23, 0
    %p149 = por %p147, %p148
    %p150 = scmp.ne.s32.totalorder %s139, %s142
    %p151 = scmp.eq.s32.totalorder %s28, 1
    %p152 = por %p150, %p151
    %p153 = scmp.ne.s32.totalorder %s142, %s143
    %p154 = scmp.eq.s32.totalorder %s28, 0
    %p155 = por %p153, %p154
    %p156 = scmp.ne.s32.totalorder %s142, %s143
    %p157 = scmp.eq.s32.totalorder %s29, 1
    %p158 = por %p156, %p157
    %p160 = scmp.ne.s32.totalorder %s143, %s159
    %p161 = scmp.eq.s32.totalorder %s29, 0
    %p162 = por %p160, %p161
    %s163 = ssub.s32 %s31, %s38
    %p164 = scmp.eq.s32.totalorder %s163, 0
    %s166 = sadd.s32 %s165, 1
    %s167 = scalar_select %p164, %s165, %s166
    %p170 = pneg %p164
    %p171 = scmp.eq.s32.totalorder %s23, 1
    %p172 = por %p170, %p171
    %p173 = scmp.ne.s32.totalorder %s165, %s168
    %p174 = scmp.eq.s32.totalorder %s23, 0
    %p175 = por %p173, %p174
    %p176 = scmp.ne.s32.totalorder %s165, %s168
    %p177 = scmp.eq.s32.totalorder %s28, 1
    %p178 = por %p176, %p177
    %p179 = scmp.ne.s32.totalorder %s168, %s169
    %p180 = scmp.eq.s32.totalorder %s28, 0
    %p181 = por %p179, %p180
    %p182 = scmp.ne.s32.totalorder %s168, %s169
    %p183 = scmp.eq.s32.totalorder %s29, 1
    %p184 = por %p182, %p183
    %p186 = scmp.ne.s32.totalorder %s169, %s185
    %p187 = scmp.eq.s32.totalorder %s29, 0
    %p188 = por %p186, %p187
    %s189 = ssub.s32 %s31, %s38
    %p190 = scmp.eq.s32.totalorder %s189, 0
    %s192 = sadd.s32 %s191, 1
    %s193 = scalar_select %p190, %s191, %s192
    %p196 = pneg %p190
    %p197 = scmp.eq.s32.totalorder %s23, 1
    %p198 = por %p196, %p197
    %p199 = scmp.ne.s32.totalorder %s191, %s194
    %p200 = scmp.eq.s32.totalorder %s23, 0
    %p201 = por %p199, %p200
    %p202 = scmp.ne.s32.totalorder %s191, %s194
    %p203 = scmp.eq.s32.totalorder %s28, 1
    %p204 = por %p202, %p203
    %p205 = scmp.ne.s32.totalorder %s194, %s195
    %p206 = scmp.eq.s32.totalorder %s28, 0
    %p207 = por %p205, %p206
    %p208 = scmp.ne.s32.totalorder %s194, %s195
    %p209 = scmp.eq.s32.totalorder %s29, 1
    %p210 = por %p208, %p209
    %p212 = scmp.ne.s32.totalorder %s195, %s211
    %p213 = scmp.eq.s32.totalorder %s29, 0
    %p214 = por %p212, %p213
    %s215 = ssub.s32 %s31, %s38
    %p216 = scmp.eq.s32.totalorder %s215, 0
    %s218 = sadd.s32 %s217, 1
    %s219 = scalar_select %p216, %s217, %s218
    %p222 = pneg %p216
    %p223 = scmp.eq.s32.totalorder %s23, 1
    %p224 = por %p222, %p223
    %p225 = scmp.ne.s32.totalorder %s217, %s220
    %p226 = scmp.eq.s32.totalorder %s23, 0
    %p227 = por %p225, %p226
    %p228 = scmp.ne.s32.totalorder %s217, %s220
    %p229 = scmp.eq.s32.totalorder %s28, 1
    %p230 = por %p228, %p229
    %p231 = scmp.ne.s32.totalorder %s220, %s221
    %p232 = scmp.eq.s32.totalorder %s28, 0
    %p233 = por %p231, %p232
    %p234 = scmp.ne.s32.totalorder %s220, %s221
    %p235 = scmp.eq.s32.totalorder %s29, 1
    %p236 = por %p234, %p235
    %p238 = scmp.ne.s32.totalorder %s221, %s237
    %p239 = scmp.eq.s32.totalorder %s29, 0
    %p240 = por %p238, %p239
    %s241 = ssub.s32 %s31, %s38
    %p242 = scmp.eq.s32.totalorder %s241, 0
    %s244 = sadd.s32 %s243, 1
    %s245 = scalar_select %p242, %s243, %s244
    %p248 = pneg %p242
    %p249 = scmp.eq.s32.totalorder %s23, 1
    %p250 = por %p248, %p249
    %p251 = scmp.ne.s32.totalorder %s243, %s246
    %p252 = scmp.eq.s32.totalorder %s23, 0
    %p253 = por %p251, %p252
    %p254 = scmp.ne.s32.totalorder %s243, %s246
    %p255 = scmp.eq.s32.totalorder %s28, 1
    %p256 = por %p254, %p255
    %p257 = scmp.ne.s32.totalorder %s246, %s247
    %p258 = scmp.eq.s32.totalorder %s28, 0
    %p259 = por %p257, %p258
    %p260 = scmp.ne.s32.totalorder %s246, %s247
    %p261 = scmp.eq.s32.totalorder %s29, 1
    %p262 = por %p260, %p261
    %p264 = scmp.ne.s32.totalorder %s247, %s263
    %p265 = scmp.eq.s32.totalorder %s29, 0
    %p266 = por %p264, %p265
    %s267 = ssub.s32 %s31, %s38
    %p268 = scmp.eq.s32.totalorder %s267, 0
    %s270 = sadd.s32 %s269, 1
    %s271 = scalar_select %p268, %s269, %s270
    %p274 = pneg %p268
    %p275 = scmp.eq.s32.totalorder %s23, 1
    %p276 = por %p274, %p275
    %p277 = scmp.ne.s32.totalorder %s269, %s272
    %p278 = scmp.eq.s32.totalorder %s23, 0
    %p279 = por %p277, %p278
    %p280 = scmp.ne.s32.totalorder %s269, %s272
    %p281 = scmp.eq.s32.totalorder %s28, 1
    %p282 = por %p280, %p281
    %p283 = scmp.ne.s32.totalorder %s272, %s273
    %p284 = scmp.eq.s32.totalorder %s28, 0
    %p285 = por %p283, %p284
    %p286 = scmp.ne.s32.totalorder %s272, %s273
    %p287 = scmp.eq.s32.totalorder %s29, 1
    %p288 = por %p286, %p287
    %p290 = scmp.ne.s32.totalorder %s273, %s289
    %p291 = scmp.eq.s32.totalorder %s29, 0
    %p292 = por %p290, %p291
    %s293 = ssub.s32 %s31, %s38
    %p294 = scmp.eq.s32.totalorder %s293, 0
    %s296 = sadd.s32 %s295, 1
    %s297 = scalar_select %p294, %s295, %s296
    %p300 = pneg %p294
    %p301 = scmp.eq.s32.totalorder %s23, 1
    %p302 = por %p300, %p301
    %p303 = scmp.ne.s32.totalorder %s295, %s298
    %p304 = scmp.eq.s32.totalorder %s23, 0
    %p305 = por %p303, %p304
    %p306 = scmp.ne.s32.totalorder %s295, %s298
    %p307 = scmp.eq.s32.totalorder %s28, 1
    %p308 = por %p306, %p307
    %p309 = scmp.ne.s32.totalorder %s298, %s299
    %p310 = scmp.eq.s32.totalorder %s28, 0
    %p311 = por %p309, %p310
    %p312 = scmp.ne.s32.totalorder %s298, %s299
    %p313 = scmp.eq.s32.totalorder %s29, 1
    %p314 = por %p312, %p313
    %p316 = scmp.ne.s32.totalorder %s299, %s315
    %p317 = scmp.eq.s32.totalorder %s29, 0
    %p318 = por %p316, %p317
    %s319 = ssub.s32 %s31, %s38
    %p320 = scmp.eq.s32.totalorder %s319, 0
    %s322 = sadd.s32 %s321, 1
    %s323 = scalar_select %p320, %s321, %s322
    %p326 = pneg %p320
    %p327 = scmp.eq.s32.totalorder %s23, 1
    %p328 = por %p326, %p327
    %p329 = scmp.ne.s32.totalorder %s321, %s324
    %p330 = scmp.eq.s32.totalorder %s23, 0
    %p331 = por %p329, %p330
    %p332 = scmp.ne.s32.totalorder %s321, %s324
    %p333 = scmp.eq.s32.totalorder %s28, 1
    %p334 = por %p332, %p333
    %p335 = scmp.ne.s32.totalorder %s324, %s325
    %p336 = scmp.eq.s32.totalorder %s28, 0
    %p337 = por %p335, %p336
    %p338 = scmp.ne.s32.totalorder %s324, %s325
    %p339 = scmp.eq.s32.totalorder %s29, 1
    %p340 = por %p338, %p339
    %p342 = scmp.ne.s32.totalorder %s325, %s341
    %p343 = scmp.eq.s32.totalorder %s29, 0
    %p344 = por %p342, %p343
    %s345 = ssub.s32 %s31, %s38
    %p346 = scmp.eq.s32.totalorder %s345, 0
    %s348 = sadd.s32 %s347, 1
    %s349 = scalar_select %p346, %s347, %s348
    %p352 = pneg %p346
    %p353 = scmp.eq.s32.totalorder %s23, 1
    %p354 = por %p352, %p353
    %p355 = scmp.ne.s32.totalorder %s347, %s350
    %p356 = scmp.eq.s32.totalorder %s23, 0
    %p357 = por %p355, %p356
    %p358 = scmp.ne.s32.totalorder %s347, %s350
    %p359 = scmp.eq.s32.totalorder %s28, 1
    %p360 = por %p358, %p359
    %p361 = scmp.ne.s32.totalorder %s350, %s351
    %p362 = scmp.eq.s32.totalorder %s28, 0
    %p363 = por %p361, %p362
    %p364 = scmp.ne.s32.totalorder %s350, %s351
    %p365 = scmp.eq.s32.totalorder %s29, 1
    %p366 = por %p364, %p365
    %p368 = scmp.ne.s32.totalorder %s351, %s367
    %p369 = scmp.eq.s32.totalorder %s29, 0
    %p370 = por %p368, %p369
    %s371 = ssub.s32 %s31, %s38
    %p372 = scmp.eq.s32.totalorder %s371, 0
    %s374 = sadd.s32 %s373, 1
    %s375 = scalar_select %p372, %s373, %s374
    %p378 = pneg %p372
    %p379 = scmp.eq.s32.totalorder %s23, 1
    %p380 = por %p378, %p379
    %p381 = scmp.ne.s32.totalorder %s373, %s376
    %p382 = scmp.eq.s32.totalorder %s23, 0
    %p383 = por %p381, %p382
    %p384 = scmp.ne.s32.totalorder %s373, %s376
    %p385 = scmp.eq.s32.totalorder %s28, 1
    %p386 = por %p384, %p385
    %p387 = scmp.ne.s32.totalorder %s376, %s377
    %p388 = scmp.eq.s32.totalorder %s28, 0
    %p389 = por %p387, %p388
    %p390 = scmp.ne.s32.totalorder %s376, %s377
    %p391 = scmp.eq.s32.totalorder %s29, 1
    %p392 = por %p390, %p391
    %p394 = scmp.ne.s32.totalorder %s377, %s393
    %p395 = scmp.eq.s32.totalorder %s29, 0
    %p396 = por %p394, %p395
    %s397 = ssub.s32 %s31, %s38
    %p398 = scmp.eq.s32.totalorder %s397, 0
    %s400 = sadd.s32 %s399, 1
    %s401 = scalar_select %p398, %s399, %s400
    %p404 = pneg %p398
    %p405 = scmp.eq.s32.totalorder %s23, 1
    %p406 = por %p404, %p405
    %p407 = scmp.ne.s32.totalorder %s399, %s402
    %p408 = scmp.eq.s32.totalorder %s23, 0
    %p409 = por %p407, %p408
    %p410 = scmp.ne.s32.totalorder %s399, %s402
    %p411 = scmp.eq.s32.totalorder %s28, 1
    %p412 = por %p410, %p411
    %p413 = scmp.ne.s32.totalorder %s402, %s403
    %p414 = scmp.eq.s32.totalorder %s28, 0
    %p415 = por %p413, %p414
    %p416 = scmp.ne.s32.totalorder %s402, %s403
    %p417 = scmp.eq.s32.totalorder %s29, 1
    %p418 = por %p416, %p417
    %p420 = scmp.ne.s32.totalorder %s403, %s419
    %p421 = scmp.eq.s32.totalorder %s29, 0
    %p422 = por %p420, %p421
    %s424 = sadd.s32 %s423, 1
    %p427 = scmp.eq.s32.totalorder %s23, 1
    %p428 = scmp.ne.s32.totalorder %s423, %s425
    %p429 = scmp.eq.s32.totalorder %s23, 0
    %p430 = por %p428, %p429
    %p431 = scmp.ne.s32.totalorder %s423, %s425
    %p432 = scmp.eq.s32.totalorder %s28, 1
    %p433 = por %p431, %p432
    %p434 = scmp.ne.s32.totalorder %s425, %s426
    %p435 = scmp.eq.s32.totalorder %s28, 0
    %p436 = por %p434, %p435
    %p437 = scmp.ne.s32.totalorder %s425, %s426
    %p438 = scmp.eq.s32.totalorder %s29, 1
    %p439 = por %p437, %p438
    %p441 = scmp.ne.s32.totalorder %s426, %s440
    %p442 = scmp.eq.s32.totalorder %s29, 0
    %p443 = por %p441, %p442
    %s445 = sadd.s32 %s444, 1
    %p448 = scmp.eq.s32.totalorder %s23, 1
    %p449 = scmp.ne.s32.totalorder %s444, %s446
    %p450 = scmp.eq.s32.totalorder %s23, 0
    %p451 = por %p449, %p450
    %p452 = scmp.ne.s32.totalorder %s444, %s446
    %p453 = scmp.eq.s32.totalorder %s28, 1
    %p454 = por %p452, %p453
    %p455 = scmp.ne.s32.totalorder %s446, %s447
    %p456 = scmp.eq.s32.totalorder %s28, 0
    %p457 = por %p455, %p456
    %p458 = scmp.ne.s32.totalorder %s446, %s447
    %p459 = scmp.eq.s32.totalorder %s29, 1
    %p460 = por %p458, %p459
    %p462 = scmp.ne.s32.totalorder %s447, %s461
    %p463 = scmp.eq.s32.totalorder %s29, 0
    %p464 = por %p462, %p463
    %s465 = ssub.s32 %s30, %s42
    %p466 = scmp.eq.s32.totalorder %s465, 0
    %s468 = sadd.s32 %s467, 1
    %s469 = scalar_select %p466, %s467, %s468
    %p472 = pneg %p466
    %p473 = scmp.eq.s32.totalorder %s23, 1
    %p474 = por %p472, %p473
    %p475 = scmp.ne.s32.totalorder %s467, %s470
    %p476 = scmp.eq.s32.totalorder %s23, 0
    %p477 = por %p475, %p476
    %p478 = scmp.ne.s32.totalorder %s467, %s470
    %p479 = scmp.eq.s32.totalorder %s28, 1
    %p480 = por %p478, %p479
    %p481 = scmp.ne.s32.totalorder %s470, %s471
    %p482 = scmp.eq.s32.totalorder %s28, 0
    %p483 = por %p481, %p482
    %p484 = scmp.ne.s32.totalorder %s470, %s471
    %p485 = scmp.eq.s32.totalorder %s29, 1
    %p486 = por %p484, %p485
    %p488 = scmp.ne.s32.totalorder %s471, %s487
    %p489 = scmp.eq.s32.totalorder %s29, 0
    %p490 = por %p488, %p489
    %p491 = scmp.le.s32.totalorder 1, %s23
    %p492 = scmp.lt.s32.totalorder %s23, 3
    %p493 = pnand %p491, %p492
    %p494 = pneg %p493
    // Predicated region
    $region9: #{mae_vit_forward.3} parent=5 // pred_check
      _
    $region10: #{mae_vit_forward.3} parent=5 // pred_check_branch
      %496 = sbr.rel (%p493) target = $region12
    $region11: #{mae_vit_forward.3} parent=5 // pred_region
      %s497 = ssub.s32 %s23, 1
      // Predicated region
      $region13: #{mae_vit_forward.3} parent=11 // pred_check
        %p498 = pneg %p82
      $region14: #{mae_vit_forward.3} parent=11 // pred_check_branch
        %500 = sbr.rel (%p498) target = $region16
      $region15: #{mae_vit_forward.3} parent=11 // pred_region
        _
      $region16: #{mae_vit_forward.3} parent=11 // pred_fallthru
        _
      // Predicated region
      $region17: #{mae_vit_forward.3} parent=11 // pred_check
        %p501 = pneg %p103
      $region18: #{mae_vit_forward.3} parent=11 // pred_check_branch
        %503 = sbr.rel (%p501) target = $region20
      $region19: #{mae_vit_forward.3} parent=11 // pred_region
        _
      $region20: #{mae_vit_forward.3} parent=11 // pred_fallthru
        _
      // Predicated region
      $region21: #{mae_vit_forward.3} parent=11 // pred_check
        %p504 = pneg %p129
      $region22: #{mae_vit_forward.3} parent=11 // pred_check_branch
        %506 = sbr.rel (%p504) target = $region24
      $region23: #{mae_vit_forward.3} parent=11 // pred_region
        %p507 = scmp.lt.s32.totalorder %s33, 0
        %s508 = scalar_select %p507, %s33, 0
        %s509 = smul.addr %s508, 2
        %s510 = smul.addr %s509, 4
        %s511 = scalar_lea.vmem %s3, %s510
      $region24: #{mae_vit_forward.3} parent=11 // pred_fallthru
        _
      // Predicated region
      $region25: #{mae_vit_forward.3} parent=11 // pred_check
        %p512 = pneg %p155
      $region26: #{mae_vit_forward.3} parent=11 // pred_check_branch
        %514 = sbr.rel (%p512) target = $region28
      $region27: #{mae_vit_forward.3} parent=11 // pred_region
        %p515 = scmp.lt.s32.totalorder %s33, 0
        %s516 = scalar_select %p515, %s33, 0
        %s517 = scalar_lea.vmem %s4, %s516
      $region28: #{mae_vit_forward.3} parent=11 // pred_fallthru
        _
      // Predicated region
      $region29: #{mae_vit_forward.3} parent=11 // pred_check
        %p518 = pneg %p181
      $region30: #{mae_vit_forward.3} parent=11 // pred_check_branch
        %520 = sbr.rel (%p518) target = $region32
      $region31: #{mae_vit_forward.3} parent=11 // pred_region
        %p521 = scmp.lt.s32.totalorder %s33, 0
        %s522 = scalar_select %p521, %s33, 0
        %s523 = smul.addr %s522, 2
        %s524 = smul.addr %s523, 4
        %s525 = scalar_lea.vmem %s5, %s524
      $region32: #{mae_vit_forward.3} parent=11 // pred_fallthru
        _
      // Predicated region
      $region33: #{mae_vit_forward.3} parent=11 // pred_check
        %p526 = pneg %p207
      $region34: #{mae_vit_forward.3} parent=11 // pred_check_branch
        %528 = sbr.rel (%p526) target = $region36
      $region35: #{mae_vit_forward.3} parent=11 // pred_region
        %p529 = scmp.lt.s32.totalorder %s33, 0
        %s530 = scalar_select %p529, %s33, 0
        %s531 = scalar_lea.vmem %s6, %s530
      $region36: #{mae_vit_forward.3} parent=11 // pred_fallthru
        _
      // Predicated region
      $region37: #{mae_vit_forward.3} parent=11 // pred_check
        %p532 = pneg %p233
      $region38: #{mae_vit_forward.3} parent=11 // pred_check_branch
        %534 = sbr.rel (%p532) target = $region40
      $region39: #{mae_vit_forward.3} parent=11 // pred_region
        %p535 = scmp.lt.s32.totalorder %s33, 0
        %s536 = scalar_select %p535, %s33, 0
        %s537 = scalar_lea.vmem %s7, %s536
      $region40: #{mae_vit_forward.3} parent=11 // pred_fallthru
        _
      // Predicated region
      $region41: #{mae_vit_forward.3} parent=11 // pred_check
        %p538 = pneg %p259
      $region42: #{mae_vit_forward.3} parent=11 // pred_check_branch
        %540 = sbr.rel (%p538) target = $region44
      $region43: #{mae_vit_forward.3} parent=11 // pred_region
        %p541 = scmp.lt.s32.totalorder %s33, 0
        %s542 = scalar_select %p541, %s33, 0
        %s543 = scalar_lea.vmem %s8, %s542
      $region44: #{mae_vit_forward.3} parent=11 // pred_fallthru
        _
      // Predicated region
      $region45: #{mae_vit_forward.3} parent=11 // pred_check
        %p544 = pneg %p285
      $region46: #{mae_vit_forward.3} parent=11 // pred_check_branch
        %546 = sbr.rel (%p544) target = $region48
      $region47: #{mae_vit_forward.3} parent=11 // pred_region
        %p547 = scmp.lt.s32.totalorder %s33, 0
        %s548 = scalar_select %p547, %s33, 0
        %s549 = smul.addr %s548, 2
        %s550 = smul.addr %s549, 4
        %s551 = scalar_lea.vmem %s9, %s550
      $region48: #{mae_vit_forward.3} parent=11 // pred_fallthru
        _
      // Predicated region
      $region49: #{mae_vit_forward.3} parent=11 // pred_check
        %p552 = pneg %p311
      $region50: #{mae_vit_forward.3} parent=11 // pred_check_branch
        %554 = sbr.rel (%p552) target = $region52
      $region51: #{mae_vit_forward.3} parent=11 // pred_region
        %p555 = scmp.lt.s32.totalorder %s33, 0
        %s556 = scalar_select %p555, %s33, 0
        %s557 = scalar_lea.vmem %s10, %s556
      $region52: #{mae_vit_forward.3} parent=11 // pred_fallthru
        _
      // Predicated region
      $region53: #{mae_vit_forward.3} parent=11 // pred_check
        %p558 = pneg %p337
      $region54: #{mae_vit_forward.3} parent=11 // pred_check_branch
        %560 = sbr.rel (%p558) target = $region56
      $region55: #{mae_vit_forward.3} parent=11 // pred_region
        %p561 = scmp.lt.s32.totalorder %s33, 0
        %s562 = scalar_select %p561, %s33, 0
        %s563 = smul.addr %s562, 8
        %s564 = smul.addr %s563, 4
        %s565 = scalar_lea.vmem %s11, %s564
      $region56: #{mae_vit_forward.3} parent=11 // pred_fallthru
        _
      // Predicated region
      $region57: #{mae_vit_forward.3} parent=11 // pred_check
        %p566 = pneg %p363
      $region58: #{mae_vit_forward.3} parent=11 // pred_check_branch
        %568 = sbr.rel (%p566) target = $region60
      $region59: #{mae_vit_forward.3} parent=11 // pred_region
        %p569 = scmp.lt.s32.totalorder %s33, 0
        %s570 = scalar_select %p569, %s33, 0
        %s571 = scalar_lea.vmem %s12, %s570
      $region60: #{mae_vit_forward.3} parent=11 // pred_fallthru
        _
      // Predicated region
      $region61: #{mae_vit_forward.3} parent=11 // pred_check
        %p572 = pneg %p389
      $region62: #{mae_vit_forward.3} parent=11 // pred_check_branch
        %574 = sbr.rel (%p572) target = $region64
      $region63: #{mae_vit_forward.3} parent=11 // pred_region
        %p575 = scmp.lt.s32.totalorder %s33, 0
        %s576 = scalar_select %p575, %s33, 0
        %s577 = scalar_lea.vmem %s13, %s576
      $region64: #{mae_vit_forward.3} parent=11 // pred_fallthru
        _
      // Predicated region
      $region65: #{mae_vit_forward.3} parent=11 // pred_check
        %p578 = pneg %p415
      $region66: #{mae_vit_forward.3} parent=11 // pred_check_branch
        %580 = sbr.rel (%p578) target = $region68
      $region67: #{mae_vit_forward.3} parent=11 // pred_region
        %p581 = scmp.lt.s32.totalorder %s33, 0
        %s582 = scalar_select %p581, %s33, 0
        %s583 = scalar_lea.vmem %s14, %s582
      $region68: #{mae_vit_forward.3} parent=11 // pred_fallthru
        _
      // Predicated region
      $region69: #{mae_vit_forward.3} parent=11 // pred_check
        %p584 = pneg %p436
      $region70: #{mae_vit_forward.3} parent=11 // pred_check_branch
        %586 = sbr.rel (%p584) target = $region72
      $region71: #{mae_vit_forward.3} parent=11 // pred_region
        _
      $region72: #{mae_vit_forward.3} parent=11 // pred_fallthru
        _
      // Predicated region
      $region73: #{mae_vit_forward.3} parent=11 // pred_check
        %p587 = pneg %p457
      $region74: #{mae_vit_forward.3} parent=11 // pred_check_branch
        %589 = sbr.rel (%p587) target = $region76
      $region75: #{mae_vit_forward.3} parent=11 // pred_region
        _
      $region76: #{mae_vit_forward.3} parent=11 // pred_fallthru
        _
    $region12: #{mae_vit_forward.3} parent=5 // pred_fallthru
      _
    %p590 = scmp.lt.s32.totalorder %s23, 2
    // Predicated region
    $region77: #{mae_vit_forward.3} parent=5 // pred_check
      %p591 = pneg %p590
    $region78: #{mae_vit_forward.3} parent=5 // pred_check_branch
      %593 = sbr.rel (%p591) target = $region80
    $region79: #{mae_vit_forward.3} parent=5 // pred_region
      // Predicated region
      $region81: #{mae_vit_forward.3} parent=79 // pred_check
        %p594 = pneg %p55
      $region82: #{mae_vit_forward.3} parent=79 // pred_check_branch
        %596 = sbr.rel (%p594) target = $region84
      $region83: #{mae_vit_forward.3} parent=79 // pred_region
        %p597 = scmp.lt.s32.totalorder %s30, 1
        %s598 = scalar_select %p597, %s30, 1
        %s599 = smul.addr %s598, 8
        %s600 = smul.addr %s599, 8
        %s601 = scalar_lea.vmem %s0, %s600
      $region84: #{mae_vit_forward.3} parent=79 // pred_fallthru
        _
    $region80: #{mae_vit_forward.3} parent=5 // pred_fallthru
      _
    %p602 = scmp.le.s32.totalorder 1, %s23
    %p603 = scmp.lt.s32.totalorder %s23, 3
    %p604 = pnand %p602, %p603
    %p605 = pneg %p604
    // Predicated region
    $region85: #{mae_vit_forward.3} parent=5 // pred_check
      _
    $region86: #{mae_vit_forward.3} parent=5 // pred_check_branch
      %607 = sbr.rel (%p604) target = $region88
    $region87: #{mae_vit_forward.3} parent=5 // pred_region
      %s608 = ssub.s32 %s23, 1
      %p609 = scmp.lt.s32.totalorder %s32, 1
      %s610 = scalar_select %p609, %s32, 1
      %s611 = smul.addr %s610, 8
      %s612 = smul.addr %s611, 8
      %s613 = scalar_lea.vmem %s0, %s612
      %p614 = pneg %p61
      %p615 = pneg %p58
      %p616 = pneg %p82
      %p617 = pneg %p79
      %p618 = pneg %p103
      %p619 = pneg %p100
      %p620 = scmp.lt.s32.totalorder %s33, 0
      %s621 = scalar_select %p620, %s33, 0
      %s622 = smul.addr %s621, 2
      %s623 = smul.addr %s622, 4
      %s624 = scalar_lea.vmem %s3, %s623
      %p625 = pneg %p129
      %p626 = pneg %p126
      %p627 = scmp.lt.s32.totalorder %s33, 0
      %s628 = scalar_select %p627, %s33, 0
      %s629 = scalar_lea.vmem %s4, %s628
      %p630 = pneg %p155
      %p631 = pneg %p152
      %p632 = scmp.lt.s32.totalorder %s33, 0
      %s633 = scalar_select %p632, %s33, 0
      %s634 = smul.addr %s633, 2
      %s635 = smul.addr %s634, 4
      %s636 = scalar_lea.vmem %s5, %s635
      %p637 = pneg %p181
      %p638 = pneg %p178
      %p639 = scmp.lt.s32.totalorder %s33, 0
      %s640 = scalar_select %p639, %s33, 0
      %s641 = scalar_lea.vmem %s6, %s640
      %p642 = pneg %p207
      %p643 = pneg %p204
      %p644 = scmp.lt.s32.totalorder %s33, 0
      %s645 = scalar_select %p644, %s33, 0
      %s646 = scalar_lea.vmem %s7, %s645
      %p647 = pneg %p233
      %p648 = pneg %p230
      %p649 = scmp.lt.s32.totalorder %s33, 0
      %s650 = scalar_select %p649, %s33, 0
      %s651 = scalar_lea.vmem %s8, %s650
      %p652 = pneg %p259
      %p653 = pneg %p256
      %p654 = scmp.lt.s32.totalorder %s33, 0
      %s655 = scalar_select %p654, %s33, 0
      %s656 = smul.addr %s655, 2
      %s657 = smul.addr %s656, 4
      %s658 = scalar_lea.vmem %s9, %s657
      %p659 = pneg %p285
      %p660 = pneg %p282
      %p661 = scmp.lt.s32.totalorder %s33, 0
      %s662 = scalar_select %p661, %s33, 0
      %s663 = scalar_lea.vmem %s10, %s662
      %p664 = pneg %p311
      %p665 = pneg %p308
      %p666 = scmp.lt.s32.totalorder %s33, 0
      %s667 = scalar_select %p666, %s33, 0
      %s668 = smul.addr %s667, 8
      %s669 = smul.addr %s668, 4
      %s670 = scalar_lea.vmem %s11, %s669
      %p671 = pneg %p337
      %p672 = pneg %p334
      %p673 = scmp.lt.s32.totalorder %s33, 0
      %s674 = scalar_select %p673, %s33, 0
      %s675 = scalar_lea.vmem %s12, %s674
      %p676 = pneg %p363
      %p677 = pneg %p360
      %p678 = scmp.lt.s32.totalorder %s33, 0
      %s679 = scalar_select %p678, %s33, 0
      %s680 = scalar_lea.vmem %s13, %s679
      %p681 = pneg %p389
      %p682 = pneg %p386
      %p683 = scmp.lt.s32.totalorder %s33, 0
      %s684 = scalar_select %p683, %s33, 0
      %s685 = scalar_lea.vmem %s14, %s684
      %p686 = pneg %p415
      %p687 = pneg %p412
      %p688 = pneg %p436
      %p689 = pneg %p433
      %p690 = pneg %p457
      %p691 = pneg %p454
      %p692 = pneg %p483
      %p693 = pneg %p480
      %p694 = scmp.lt.s32.totalorder %s32, 1
      %s695 = scalar_select %p694, %s32, 1
      %s696 = smul.addr %s695, 8
      %s697 = smul.addr %s696, 8
      %s698 = scalar_lea.vmem %s17, %s697
      %p699 = scmp.lt.s32.totalorder %s32, 1
      %s700 = scalar_select %p699, %s32, 1
      %s701 = smul.addr %s700, 8
      %s702 = smul.addr %s701, 8
      %s703 = scalar_lea.vmem %s0, %s702
      %p704 = scmp.lt.s32.totalorder %s33, 0
      %s705 = scalar_select %p704, %s33, 0
      %s706 = smul.addr %s705, 2
      %s707 = smul.addr %s706, 4
      %s708 = scalar_lea.vmem %s3, %s707
      %p709 = scmp.lt.s32.totalorder %s33, 0
      %s710 = scalar_select %p709, %s33, 0
      %s711 = scalar_lea.vmem %s4, %s710
      %p712 = scmp.lt.s32.totalorder %s33, 0
      %s713 = scalar_select %p712, %s33, 0
      %s714 = smul.addr %s713, 2
      %s715 = smul.addr %s714, 4
      %s716 = scalar_lea.vmem %s5, %s715
      %p717 = scmp.lt.s32.totalorder %s33, 0
      %s718 = scalar_select %p717, %s33, 0
      %s719 = scalar_lea.vmem %s6, %s718
      %p720 = scmp.lt.s32.totalorder %s33, 0
      %s721 = scalar_select %p720, %s33, 0
      %s722 = scalar_lea.vmem %s7, %s721
      %p723 = scmp.lt.s32.totalorder %s33, 0
      %s724 = scalar_select %p723, %s33, 0
      %s725 = scalar_lea.vmem %s8, %s724
      %p726 = scmp.lt.s32.totalorder %s33, 0
      %s727 = scalar_select %p726, %s33, 0
      %s728 = smul.addr %s727, 2
      %s729 = smul.addr %s728, 4
      %s730 = scalar_lea.vmem %s9, %s729
      %p731 = scmp.lt.s32.totalorder %s33, 0
      %s732 = scalar_select %p731, %s33, 0
      %s733 = scalar_lea.vmem %s10, %s732
      %p734 = scmp.lt.s32.totalorder %s33, 0
      %s735 = scalar_select %p734, %s33, 0
      %s736 = smul.addr %s735, 8
      %s737 = smul.addr %s736, 4
      %s738 = scalar_lea.vmem %s11, %s737
      %p739 = scmp.lt.s32.totalorder %s33, 0
      %s740 = scalar_select %p739, %s33, 0
      %s741 = scalar_lea.vmem %s12, %s740
      %p742 = scmp.lt.s32.totalorder %s33, 0
      %s743 = scalar_select %p742, %s33, 0
      %s744 = scalar_lea.vmem %s13, %s743
      %p745 = scmp.lt.s32.totalorder %s33, 0
      %s746 = scalar_select %p745, %s33, 0
      %s747 = scalar_lea.vmem %s14, %s746
      %p748 = scmp.lt.s32.totalorder %s32, 1
      %s749 = scalar_select %p748, %s32, 1
      %s750 = smul.addr %s749, 8
      %s751 = smul.addr %s750, 8
      %s752 = scalar_lea.vmem %s17, %s751
      %p754 = scmp.eq.s32.totalorder %s33, 0
      // Predicated region
      $region89: #{mae_vit_forward.3} parent=87 // pred_check
        %p755 = pneg %p754
      $region90: #{mae_vit_forward.3} parent=87 // pred_check_branch
        %757 = sbr.rel (%p755) target = $region92
      $region91: #{mae_vit_forward.3} parent=87 // pred_region
        %v758 = vld [vmem:[%s703] sm:$0xff]
        %v759 = vld [vmem:[%s703 + $0x8] sm:$0xff]
        %v760 = vld [vmem:[%s703 + $0x10] sm:$0xff]
        %v761 = vld [vmem:[%s703 + $0x18] sm:$0xff]
        %v762 = vld [vmem:[%s703 + $0x20] sm:$0xff]
        %v763 = vld [vmem:[%s703 + $0x28] sm:$0xff]
        %v764 = vld [vmem:[%s703 + $0x30] sm:$0xff]
        %v765 = vld [vmem:[%s703 + $0x38] sm:$0xff]
        %vm766 = vcmask 130048
        %767 = vst.msk [vmem:[#allocation2] sm:$0xff] %vm766, %v758
        %768 = vst.msk [vmem:[#allocation2 + $0x8] sm:$0xff] %vm766, %v759
        %769 = vst.msk [vmem:[#allocation2 + $0x10] sm:$0xff] %vm766, %v760
        %770 = vst.msk [vmem:[#allocation2 + $0x18] sm:$0xff] %vm766, %v761
        %771 = vst.msk [vmem:[#allocation2 + $0x20] sm:$0xff] %vm766, %v762
        %772 = vst.msk [vmem:[#allocation2 + $0x28] sm:$0xff] %vm766, %v763
        %773 = vst.msk [vmem:[#allocation2 + $0x30] sm:$0xff] %vm766, %v764
        %774 = vst.msk [vmem:[#allocation2 + $0x38] sm:$0xff] %vm766, %v765
      $region92: #{mae_vit_forward.3} parent=87 // pred_fallthru
        _
      %v775 = vld [vmem:[#allocation2] sm:$0xff]
      %v776 = vld [vmem:[#allocation2 + $0x8] sm:$0xff]
      %v777 = vld [vmem:[#allocation2 + $0x10] sm:$0xff]
      %v778 = vld [vmem:[#allocation2 + $0x18] sm:$0xff]
      %v779 = vld [vmem:[#allocation2 + $0x20] sm:$0xff]
      %v780 = vld [vmem:[#allocation2 + $0x28] sm:$0xff]
      %v781 = vld [vmem:[#allocation2 + $0x30] sm:$0xff]
      %v782 = vld [vmem:[#allocation2 + $0x38] sm:$0xff]
      %v783 = vpack.c.bf16 %v776, %v775
      %v784 = vpack.c.bf16 %v778, %v777
      %v785 = vpack.c.bf16 %v780, %v779
      %v786 = vpack.c.bf16 %v782, %v781
      %v787 = vld [vmem:[%s708] sm:$0xf]
      %v788 = vld [vmem:[%s708 + $0x4] sm:$0xf]
      %v789 = vld [vmem:[%s711] sm:$0x1]
      %v791 = vlaneseq
      %v792 = vshrl.u32 %v791, 7
      %v793 = vsub.s32 0, %v792
      %v794 = vrot.slane %v789, %v793
      %v798 = vunpack.c.l.b16 %v787
      %v799 = vunpack.c.l.b16 %v788
      %v800 = vpack.c.b16 %v799, %v798
      %vm802 = vcmask 130048
      %v804 = vsel %vm802, %v783, 0
      %v807 = vsel %vm802, %v784, 0
      %v810 = vsel %vm802, %v785, 0
      %v813 = vsel %vm802, %v786, 0
      %815 = vmatprep.subr.bf16.mxu0 0
      %816 = vmatpush1.bf16.msra.mxu0 %v800
      %817 = vmatprep.subr.bf16.mxu0 0
      %818 = vmatpush1.bf16.msra.mxu0 0
      %819 = vmatprep.subr.bf16.mxu0 0
      %820 = vmatpush1.bf16.msra.mxu0 0
      %821 = vmatprep.subr.bf16.mxu0 0
      %822 = vmatpush1.bf16.msra.mxu0 0
      %823 = vmatprep.subr.bf16.mxu0 0
      %824 = vmatpush1.bf16.msra.mxu0 0
      %825 = vmatprep.subr.bf16.mxu0 0
      %826 = vmatpush1.bf16.msra.mxu0 0
      %827 = vmatprep.subr.bf16.mxu0 0
      %828 = vmatpush1.bf16.msra.mxu0 0
      %829 = vmatprep.subr.bf16.mxu0 0
      %830 = vmatpush1.bf16.msra.mxu0 0
      %831 = vmatprep.subr.bf16.mxu0 0
      %832 = vmatpush1.bf16.msra.mxu0 0
      %833 = vmatprep.subr.bf16.mxu0 0
      %834 = vmatpush1.bf16.msra.mxu0 0
      %835 = vmatprep.subr.bf16.mxu0 0
      %836 = vmatpush1.bf16.msra.mxu0 0
      %837 = vmatprep.subr.bf16.mxu0 0
      %838 = vmatpush1.bf16.msra.mxu0 0
      %839 = vmatprep.subr.bf16.mxu0 0
      %840 = vmatpush1.bf16.msra.mxu0 0
      %841 = vmatprep.subr.bf16.mxu0 0
      %842 = vmatpush1.bf16.msra.mxu0 0
      %843 = vmatprep.subr.bf16.mxu0 0
      %844 = vmatpush1.bf16.msra.mxu0 0
      %845 = vmatprep.subr.bf16.mxu0 0
      %846 = vmatpush1.bf16.msra.mxu0 0
      %847 = vmatprep.mubr.bf16.mxu0 0
      %848 = vmatmul.mubr.bf16.gmra.mrb[0].mxu0 %v804
      %v849 = vpop.f32.mrb[0].mxu0
      %v850 = vadd.f32 %v794, %v849
      %v851 = vpop.f32.mrb[0].mxu0
      %v852 = vpop.f32.mrb[0].mxu0
      %v853 = vadd.f32 %v794, %v852
      %v854 = vpop.f32.mrb[0].mxu0
      %855 = vmatprep.mubr.bf16.mxu0 0
      %856 = vmatmul.mubr.bf16.gmra.mrb[0].mxu0 %v807
      %v857 = vpop.f32.mrb[0].mxu0
      %v858 = vadd.f32 %v794, %v857
      %v859 = vpop.f32.mrb[0].mxu0
      %v860 = vpop.f32.mrb[0].mxu0
      %v861 = vadd.f32 %v794, %v860
      %v862 = vpop.f32.mrb[0].mxu0
      %863 = vmatprep.mubr.bf16.mxu0 0
      %864 = vmatmul.mubr.bf16.gmra.mrb[0].mxu0 %v810
      %v865 = vpop.f32.mrb[0].mxu0
      %v866 = vadd.f32 %v794, %v865
      %v867 = vpop.f32.mrb[0].mxu0
      %v868 = vpop.f32.mrb[0].mxu0
      %v869 = vadd.f32 %v794, %v868
      %v870 = vpop.f32.mrb[0].mxu0
      %871 = vmatprep.mubr.bf16.mxu0 0
      %872 = vmatmul.mubr.bf16.gmra.mrb[0].mxu0 %v813
      %v873 = vpop.f32.mrb[0].mxu0
      %v874 = vadd.f32 %v794, %v873
      %v875 = vpop.f32.mrb[0].mxu0
      %v876 = vpop.f32.mrb[0].mxu0
      %v877 = vadd.f32 %v794, %v876
      %v878 = vpop.f32.mrb[0].mxu0
      %879 = vdwg.mxu0
      %v880 = vpack.c.bf16 %v853, %v850
      %v881 = vpack.c.bf16 %v861, %v858
      %v882 = vpack.c.bf16 %v869, %v866
      %v883 = vpack.c.bf16 %v877, %v874
      %v884 = vld [vmem:[%s716] sm:$0xf]
      %v885 = vld [vmem:[%s716 + $0x4] sm:$0xf]
      %890 = vrot.lane.b32.xlu0 %v880, 112
      %v891 = vpop.permute.xlu0 %890
      %892 = vrot.lane.b32.xlu0 %v881, 112
      %v893 = vpop.permute.xlu0 %892
      %894 = vrot.lane.b32.xlu0 %v882, 112
      %v895 = vpop.permute.xlu0 %894
      %896 = vrot.lane.b32.xlu0 %v883, 112
      %v897 = vpop.permute.xlu0 %896
      %vm898 = vcmask 31744
      %v900 = vsel %vm898, %v880, 0
      %v903 = vsel %vm898, %v881, 0
      %v906 = vsel %vm898, %v882, 0
      %v909 = vsel %vm898, %v883, 0
      %v912 = vsel %vm898, %v891, 0
      %v915 = vsel %vm898, %v893, 0
      %v918 = vsel %vm898, %v895, 0
      %v921 = vsel %vm898, %v897, 0
      %923 = vmatprep.subr.bf16.mxu0 0
      %924 = vmatpush1.bf16.xpose.msra.mxu0 %v912
      %925 = vmatprep.subr.bf16.mxu0 0
      %926 = vmatpush1.bf16.xpose.msra.mxu0 %v915
      %927 = vmatprep.subr.bf16.mxu0 0
      %928 = vmatpush1.bf16.xpose.msra.mxu0 %v918
      %929 = vmatprep.subr.bf16.mxu0 0
      %930 = vmatpush1.bf16.xpose.msra.mxu0 %v921
      %931 = vmatprep.subr.bf16.mxu0 0
      %932 = vmatpush1.bf16.xpose.msra.mxu0 0
      %933 = vmatprep.subr.bf16.mxu0 0
      %934 = vmatpush1.bf16.xpose.msra.mxu0 0
      %935 = vmatprep.subr.bf16.mxu0 0
      %936 = vmatpush1.bf16.xpose.msra.mxu0 0
      %937 = vmatprep.subr.bf16.mxu0 0
      %938 = vmatpush1.bf16.xpose.msra.mxu0 0
      %939 = vmatprep.subr.bf16.mxu0 0
      %940 = vmatpush1.bf16.xpose.msra.mxu0 0
      %941 = vmatprep.subr.bf16.mxu0 0
      %942 = vmatpush1.bf16.xpose.msra.mxu0 0
      %943 = vmatprep.subr.bf16.mxu0 0
      %944 = vmatpush1.bf16.xpose.msra.mxu0 0
      %945 = vmatprep.subr.bf16.mxu0 0
      %946 = vmatpush1.bf16.xpose.msra.mxu0 0
      %947 = vmatprep.subr.bf16.mxu0 0
      %948 = vmatpush1.bf16.xpose.msra.mxu0 0
      %949 = vmatprep.subr.bf16.mxu0 0
      %950 = vmatpush1.bf16.xpose.msra.mxu0 0
      %951 = vmatprep.subr.bf16.mxu0 0
      %952 = vmatpush1.bf16.xpose.msra.mxu0 0
      %953 = vmatprep.subr.bf16.mxu0 0
      %954 = vmatpush1.bf16.xpose.msra.mxu0 0
      %955 = vmatprep.mubr.bf16.mxu0 0
      %956 = vmatmul.mubr.bf16.gmra.mrb[0].mxu0 %v900
      %v957 = vpop.f32.mrb[0].mxu0
      %v958 = vadd.f32 0.0, %v957
      %v959 = vpop.f32.mrb[0].mxu0
      %v960 = vpop.f32.mrb[0].mxu0
      %v961 = vadd.f32 0.0, %v960
      %v962 = vpop.f32.mrb[0].mxu0
      %963 = vmatprep.mubr.bf16.mxu0 0
      %964 = vmatmul.mubr.bf16.gmra.mrb[0].mxu0 %v903
      %v965 = vpop.f32.mrb[0].mxu0
      %v966 = vadd.f32 0.0, %v965
      %v967 = vpop.f32.mrb[0].mxu0
      %v968 = vpop.f32.mrb[0].mxu0
      %v969 = vadd.f32 0.0, %v968
      %v970 = vpop.f32.mrb[0].mxu0
      %971 = vmatprep.mubr.bf16.mxu0 0
      %972 = vmatmul.mubr.bf16.gmra.mrb[0].mxu0 %v906
      %v973 = vpop.f32.mrb[0].mxu0
      %v974 = vadd.f32 0.0, %v973
      %v975 = vpop.f32.mrb[0].mxu0
      %v976 = vpop.f32.mrb[0].mxu0
      %v977 = vadd.f32 0.0, %v976
      %v978 = vpop.f32.mrb[0].mxu0
      %979 = vmatprep.mubr.bf16.mxu0 0
      %980 = vmatmul.mubr.bf16.gmra.mrb[0].mxu0 %v909
      %v981 = vpop.f32.mrb[0].mxu0
      %v982 = vadd.f32 0.0, %v981
      %v983 = vpop.f32.mrb[0].mxu0
      %v984 = vpop.f32.mrb[0].mxu0
      %v985 = vadd.f32 0.0, %v984
      %v986 = vpop.f32.mrb[0].mxu0
      %987 = vdwg.mxu0
      %v988 = vmul.f32 %v958, 0.5
      %v989 = vmul.f32 %v961, 0.5
      %v990 = vmul.f32 %v966, 0.5
      %v991 = vmul.f32 %v969, 0.5
      %v992 = vmul.f32 %v974, 0.5
      %v993 = vmul.f32 %v977, 0.5
      %v994 = vmul.f32 %v982, 0.5
      %v995 = vmul.f32 %v985, 0.5
      %vm996 = vcmask 523264
      %v997 = vsel %vm996, %v988, -inf
      %998 = vmax.xlane.f32.xlu0 %v997
      %v999 = vpop.xlane.xlu0 %998
      %v1000 = vsel %vm996, %v989, -inf
      %1001 = vmax.xlane.f32.xlu0 %v1000
      %v1002 = vpop.xlane.xlu0 %1001
      %v1003 = vsel %vm996, %v990, -inf
      %1004 = vmax.xlane.f32.xlu0 %v1003
      %v1005 = vpop.xlane.xlu0 %1004
      %v1006 = vsel %vm996, %v991, -inf
      %1007 = vmax.xlane.f32.xlu0 %v1006
      %v1008 = vpop.xlane.xlu0 %1007
      %v1009 = vsel %vm996, %v992, -inf
      %1010 = vmax.xlane.f32.xlu0 %v1009
      %v1011 = vpop.xlane.xlu0 %1010
      %v1012 = vsel %vm996, %v993, -inf
      %1013 = vmax.xlane.f32.xlu0 %v1012
      %v1014 = vpop.xlane.xlu0 %1013
      %v1015 = vsel %vm996, %v994, -inf
      %1016 = vmax.xlane.f32.xlu0 %v1015
      %v1017 = vpop.xlane.xlu0 %1016
      %v1018 = vsel %vm996, %v995, -inf
      %1019 = vmax.xlane.f32.xlu0 %v1018
      %v1020 = vpop.xlane.xlu0 %1019
      %v1021 = vsub.f32 %v988, %v999
      %v1022 = vsub.f32 %v989, %v1002
      %v1023 = vsub.f32 %v990, %v1005
      %v1024 = vsub.f32 %v991, %v1008
      %v1025 = vsub.f32 %v992, %v1011
      %v1026 = vsub.f32 %v993, %v1014
      %v1027 = vsub.f32 %v994, %v1017
      %v1028 = vsub.f32 %v995, %v1020
      %v1029 = vmul.f32 %v1021, 1.442695
      %v1030 = vpow.pop %v1029
      %v1031 = vmul.f32 %v1022, 1.442695
      %v1032 = vpow.pop %v1031
      %v1033 = vmul.f32 %v1023, 1.442695
      %v1034 = vpow.pop %v1033
      %v1035 = vmul.f32 %v1024, 1.442695
      %v1036 = vpow.pop %v1035
      %v1037 = vmul.f32 %v1025, 1.442695
      %v1038 = vpow.pop %v1037
      %v1039 = vmul.f32 %v1026, 1.442695
      %v1040 = vpow.pop %v1039
      %v1041 = vmul.f32 %v1027, 1.442695
      %v1042 = vpow.pop %v1041
      %v1043 = vmul.f32 %v1028, 1.442695
      %v1044 = vpow.pop %v1043
      %v1045 = vsel %vm996, %v1030, 0.0
      %1046 = vadd.xlane.f32.xlu0 %v1045
      %v1047 = vpop.xlane.xlu0 %1046
      %v1048 = vsel %vm996, %v1032, 0.0
      %1049 = vadd.xlane.f32.xlu0 %v1048
      %v1050 = vpop.xlane.xlu0 %1049
      %v1051 = vsel %vm996, %v1034, 0.0
      %1052 = vadd.xlane.f32.xlu0 %v1051
      %v1053 = vpop.xlane.xlu0 %1052
      %v1054 = vsel %vm996, %v1036, 0.0
      %1055 = vadd.xlane.f32.xlu0 %v1054
      %v1056 = vpop.xlane.xlu0 %1055
      %v1057 = vsel %vm996, %v1038, 0.0
      %1058 = vadd.xlane.f32.xlu0 %v1057
      %v1059 = vpop.xlane.xlu0 %1058
      %v1060 = vsel %vm996, %v1040, 0.0
      %1061 = vadd.xlane.f32.xlu0 %v1060
      %v1062 = vpop.xlane.xlu0 %1061
      %v1063 = vsel %vm996, %v1042, 0.0
      %1064 = vadd.xlane.f32.xlu0 %v1063
      %v1065 = vpop.xlane.xlu0 %1064
      %v1066 = vsel %vm996, %v1044, 0.0
      %1067 = vadd.xlane.f32.xlu0 %v1066
      %v1068 = vpop.xlane.xlu0 %1067
      %v1069 = vrcp.pop %v1047
      %v1070 = vrcp.pop %v1050
      %v1071 = vrcp.pop %v1053
      %v1072 = vrcp.pop %v1056
      %v1073 = vrcp.pop %v1059
      %v1074 = vrcp.pop %v1062
      %v1075 = vrcp.pop %v1065
      %v1076 = vrcp.pop %v1068
      %v1077 = vmul.f32 %v1030, %v1069
      %v1078 = vmul.f32 %v1032, %v1070
      %v1079 = vmul.f32 %v1034, %v1071
      %v1080 = vmul.f32 %v1036, %v1072
      %v1081 = vmul.f32 %v1038, %v1073
      %v1082 = vmul.f32 %v1040, %v1074
      %v1083 = vmul.f32 %v1042, %v1075
      %v1084 = vmul.f32 %v1044, %v1076
      %v1085 = vpack.c.bf16 %v1078, %v1077
      %v1086 = vpack.c.bf16 %v1080, %v1079
      %v1087 = vpack.c.bf16 %v1082, %v1081
      %v1088 = vpack.c.bf16 %v1084, %v1083
      %1089 = vrot.lane.b32.xlu0 %v880, 96
      %v1090 = vpop.permute.xlu0 %1089
      %1091 = vrot.lane.b32.xlu0 %v881, 96
      %v1092 = vpop.permute.xlu0 %1091
      %1093 = vrot.lane.b32.xlu0 %v882, 96
      %v1094 = vpop.permute.xlu0 %1093
      %1095 = vrot.lane.b32.xlu0 %v883, 96
      %v1096 = vpop.permute.xlu0 %1095
      %v1102 = vsel %vm996, %v1085, 0
      %v1105 = vsel %vm996, %v1086, 0
      %v1108 = vsel %vm996, %v1087, 0
      %v1111 = vsel %vm996, %v1088, 0
      %1113 = vmatprep.subr.bf16.mxu0 0
      %1114 = vmatpush1.bf16.msra.mxu0 %v1090
      %1115 = vmatprep.subr.bf16.mxu0 0
      %1116 = vmatpush1.bf16.msra.mxu0 %v1092
      %1117 = vmatprep.subr.bf16.mxu0 0
      %1118 = vmatpush1.bf16.msra.mxu0 %v1094
      %1119 = vmatprep.subr.bf16.mxu0 0
      %1120 = vmatpush1.bf16.msra.mxu0 %v1096
      %1121 = vmatprep.subr.bf16.mxu0 0
      %1122 = vmatpush1.bf16.msra.mxu0 0
      %1123 = vmatprep.subr.bf16.mxu0 0
      %1124 = vmatpush1.bf16.msra.mxu0 0
      %1125 = vmatprep.subr.bf16.mxu0 0
      %1126 = vmatpush1.bf16.msra.mxu0 0
      %1127 = vmatprep.subr.bf16.mxu0 0
      %1128 = vmatpush1.bf16.msra.mxu0 0
      %1129 = vmatprep.subr.bf16.mxu0 0
      %1130 = vmatpush1.bf16.msra.mxu0 0
      %1131 = vmatprep.subr.bf16.mxu0 0
      %1132 = vmatpush1.bf16.msra.mxu0 0
      %1133 = vmatprep.subr.bf16.mxu0 0
      %1134 = vmatpush1.bf16.msra.mxu0 0
      %1135 = vmatprep.subr.bf16.mxu0 0
      %1136 = vmatpush1.bf16.msra.mxu0 0
      %1137 = vmatprep.subr.bf16.mxu0 0
      %1138 = vmatpush1.bf16.msra.mxu0 0
      %1139 = vmatprep.subr.bf16.mxu0 0
      %1140 = vmatpush1.bf16.msra.mxu0 0
      %1141 = vmatprep.subr.bf16.mxu0 0
      %1142 = vmatpush1.bf16.msra.mxu0 0
      %1143 = vmatprep.subr.bf16.mxu0 0
      %1144 = vmatpush1.bf16.msra.mxu0 0
      %1145 = vmatprep.mubr.bf16.mxu0 0
      %1146 = vmatmul.mubr.bf16.gmra.mrb[0].mxu0 %v1102
      %v1147 = vpop.f32.mrb[0].mxu0
      %v1148 = vadd.f32 0.0, %v1147
      %v1149 = vpop.f32.mrb[0].mxu0
      %v1150 = vpop.f32.mrb[0].mxu0
      %v1151 = vadd.f32 0.0, %v1150
      %v1152 = vpop.f32.mrb[0].mxu0
      %1153 = vmatprep.mubr.bf16.mxu0 0
      %1154 = vmatmul.mubr.bf16.gmra.mrb[0].mxu0 %v1105
      %v1155 = vpop.f32.mrb[0].mxu0
      %v1156 = vadd.f32 0.0, %v1155
      %v1157 = vpop.f32.mrb[0].mxu0
      %v1158 = vpop.f32.mrb[0].mxu0
      %v1159 = vadd.f32 0.0, %v1158
      %v1160 = vpop.f32.mrb[0].mxu0
      %1161 = vmatprep.mubr.bf16.mxu0 0
      %1162 = vmatmul.mubr.bf16.gmra.mrb[0].mxu0 %v1108
      %v1163 = vpop.f32.mrb[0].mxu0
      %v1164 = vadd.f32 0.0, %v1163
      %v1165 = vpop.f32.mrb[0].mxu0
      %v1166 = vpop.f32.mrb[0].mxu0
      %v1167 = vadd.f32 0.0, %v1166
      %v1168 = vpop.f32.mrb[0].mxu0
      %1169 = vmatprep.mubr.bf16.mxu0 0
      %1170 = vmatmul.mubr.bf16.gmra.mrb[0].mxu0 %v1111
      %v1171 = vpop.f32.mrb[0].mxu0
      %v1172 = vadd.f32 0.0, %v1171
      %v1173 = vpop.f32.mrb[0].mxu0
      %v1174 = vpop.f32.mrb[0].mxu0
      %v1175 = vadd.f32 0.0, %v1174
      %v1176 = vpop.f32.mrb[0].mxu0
      %1177 = vdwg.mxu0
      %v1178 = vpack.c.bf16 %v1151, %v1148
      %v1179 = vpack.c.bf16 %v1159, %v1156
      %v1180 = vpack.c.bf16 %v1167, %v1164
      %v1181 = vpack.c.bf16 %v1175, %v1172
      %1182 = vrot.lane.b32.xlu0 %v880, 124
      %v1183 = vpop.permute.xlu0 %1182
      %1184 = vrot.lane.b32.xlu0 %v881, 124
      %v1185 = vpop.permute.xlu0 %1184
      %1186 = vrot.lane.b32.xlu0 %v882, 124
      %v1187 = vpop.permute.xlu0 %1186
      %1188 = vrot.lane.b32.xlu0 %v883, 124
      %v1189 = vpop.permute.xlu0 %1188
      %1190 = vrot.lane.b32.xlu0 %v880, 108
      %v1191 = vpop.permute.xlu0 %1190
      %1192 = vrot.lane.b32.xlu0 %v881, 108
      %v1193 = vpop.permute.xlu0 %1192
      %1194 = vrot.lane.b32.xlu0 %v882, 108
      %v1195 = vpop.permute.xlu0 %1194
      %1196 = vrot.lane.b32.xlu0 %v883, 108
      %v1197 = vpop.permute.xlu0 %1196
      %v1199 = vsel %vm898, %v1183, 0
      %v1202 = vsel %vm898, %v1185, 0
      %v1205 = vsel %vm898, %v1187, 0
      %v1208 = vsel %vm898, %v1189, 0
      %v1211 = vsel %vm898, %v1191, 0
      %v1214 = vsel %vm898, %v1193, 0
      %v1217 = vsel %vm898, %v1195, 0
      %v1220 = vsel %vm898, %v1197, 0
      %1222 = vmatprep.subr.bf16.mxu0 0
      %1223 = vmatpush1.bf16.xpose.msra.mxu0 %v1211
      %1224 = vmatprep.subr.bf16.mxu0 0
      %1225 = vmatpush1.bf16.xpose.msra.mxu0 %v1214
      %1226 = vmatprep.subr.bf16.mxu0 0
      %1227 = vmatpush1.bf16.xpose.msra.mxu0 %v1217
      %1228 = vmatprep.subr.bf16.mxu0 0
      %1229 = vmatpush1.bf16.xpose.msra.mxu0 %v1220
      %1230 = vmatprep.subr.bf16.mxu0 0
      %1231 = vmatpush1.bf16.xpose.msra.mxu0 0
      %1232 = vmatprep.subr.bf16.mxu0 0
      %1233 = vmatpush1.bf16.xpose.msra.mxu0 0
      %1234 = vmatprep.subr.bf16.mxu0 0
      %1235 = vmatpush1.bf16.xpose.msra.mxu0 0
      %1236 = vmatprep.subr.bf16.mxu0 0
      %1237 = vmatpush1.bf16.xpose.msra.mxu0 0
      %1238 = vmatprep.subr.bf16.mxu0 0
      %1239 = vmatpush1.bf16.xpose.msra.mxu0 0
      %1240 = vmatprep.subr.bf16.mxu0 0
      %1241 = vmatpush1.bf16.xpose.msra.mxu0 0
      %1242 = vmatprep.subr.bf16.mxu0 0
      %1243 = vmatpush1.bf16.xpose.msra.mxu0 0
      %1244 = vmatprep.subr.bf16.mxu0 0
      %1245 = vmatpush1.bf16.xpose.msra.mxu0 0
      %1246 = vmatprep.subr.bf16.mxu0 0
      %1247 = vmatpush1.bf16.xpose.msra.mxu0 0
      %1248 = vmatprep.subr.bf16.mxu0 0
      %1249 = vmatpush1.bf16.xpose.msra.mxu0 0
      %1250 = vmatprep.subr.bf16.mxu0 0
      %1251 = vmatpush1.bf16.xpose.msra.mxu0 0
      %1252 = vmatprep.subr.bf16.mxu0 0
      %1253 = vmatpush1.bf16.xpose.msra.mxu0 0
      %1254 = vmatprep.mubr.bf16.mxu0 0
      %1255 = vmatmul.mubr.bf16.gmra.mrb[0].mxu0 %v1199
      %v1256 = vpop.f32.mrb[0].mxu0
      %v1257 = vadd.f32 0.0, %v1256
      %v1258 = vpop.f32.mrb[0].mxu0
      %v1259 = vpop.f32.mrb[0].mxu0
      %v1260 = vadd.f32 0.0, %v1259
      %v1261 = vpop.f32.mrb[0].mxu0
      %1262 = vmatprep.mubr.bf16.mxu0 0
      %1263 = vmatmul.mubr.bf16.gmra.mrb[0].mxu0 %v1202
      %v1264 = vpop.f32.mrb[0].mxu0
      %v1265 = vadd.f32 0.0, %v1264
      %v1266 = vpop.f32.mrb[0].mxu0
      %v1267 = vpop.f32.mrb[0].mxu0
      %v1268 = vadd.f32 0.0, %v1267
      %v1269 = vpop.f32.mrb[0].mxu0
      %1270 = vmatprep.mubr.bf16.mxu0 0
      %1271 = vmatmul.mubr.bf16.gmra.mrb[0].mxu0 %v1205
      %v1272 = vpop.f32.mrb[0].mxu0
      %v1273 = vadd.f32 0.0, %v1272
      %v1274 = vpop.f32.mrb[0].mxu0
      %v1275 = vpop.f32.mrb[0].mxu0
      %v1276 = vadd.f32 0.0, %v1275
      %v1277 = vpop.f32.mrb[0].mxu0
      %1278 = vmatprep.mubr.bf16.mxu0 0
      %1279 = vmatmul.mubr.bf16.gmra.mrb[0].mxu0 %v1208
      %v1280 = vpop.f32.mrb[0].mxu0
      %v1281 = vadd.f32 0.0, %v1280
      %v1282 = vpop.f32.mrb[0].mxu0
      %v1283 = vpop.f32.mrb[0].mxu0
      %v1284 = vadd.f32 0.0, %v1283
      %v1285 = vpop.f32.mrb[0].mxu0
      %1286 = vdwg.mxu0
      %v1287 = vmul.f32 %v1257, 0.5
      %v1288 = vmul.f32 %v1260, 0.5
      %v1289 = vmul.f32 %v1265, 0.5
      %v1290 = vmul.f32 %v1268, 0.5
      %v1291 = vmul.f32 %v1273, 0.5
      %v1292 = vmul.f32 %v1276, 0.5
      %v1293 = vmul.f32 %v1281, 0.5
      %v1294 = vmul.f32 %v1284, 0.5
      %v1295 = vsel %vm996, %v1287, -inf
      %1296 = vmax.xlane.f32.xlu0 %v1295
      %v1297 = vpop.xlane.xlu0 %1296
      %v1298 = vsel %vm996, %v1288, -inf
      %1299 = vmax.xlane.f32.xlu0 %v1298
      %v1300 = vpop.xlane.xlu0 %1299
      %v1301 = vsel %vm996, %v1289, -inf
      %1302 = vmax.xlane.f32.xlu0 %v1301
      %v1303 = vpop.xlane.xlu0 %1302
      %v1304 = vsel %vm996, %v1290, -inf
      %1305 = vmax.xlane.f32.xlu0 %v1304
      %v1306 = vpop.xlane.xlu0 %1305
      %v1307 = vsel %vm996, %v1291, -inf
      %1308 = vmax.xlane.f32.xlu0 %v1307
      %v1309 = vpop.xlane.xlu0 %1308
      %v1310 = vsel %vm996, %v1292, -inf
      %1311 = vmax.xlane.f32.xlu0 %v1310
      %v1312 = vpop.xlane.xlu0 %1311
      %v1313 = vsel %vm996, %v1293, -inf
      %1314 = vmax.xlane.f32.xlu0 %v1313
      %v1315 = vpop.xlane.xlu0 %1314
      %v1316 = vsel %vm996, %v1294, -inf
      %1317 = vmax.xlane.f32.xlu0 %v1316
      %v1318 = vpop.xlane.xlu0 %1317
      %v1319 = vsub.f32 %v1287, %v1297
      %v1320 = vsub.f32 %v1288, %v1300
      %v1321 = vsub.f32 %v1289, %v1303
      %v1322 = vsub.f32 %v1290, %v1306
      %v1323 = vsub.f32 %v1291, %v1309
      %v1324 = vsub.f32 %v1292, %v1312
      %v1325 = vsub.f32 %v1293, %v1315
      %v1326 = vsub.f32 %v1294, %v1318
      %v1327 = vmul.f32 %v1319, 1.442695
      %v1328 = vpow.pop %v1327
      %v1329 = vmul.f32 %v1320, 1.442695
      %v1330 = vpow.pop %v1329
      %v1331 = vmul.f32 %v1321, 1.442695
      %v1332 = vpow.pop %v1331
      %v1333 = vmul.f32 %v1322, 1.442695
      %v1334 = vpow.pop %v1333
      %v1335 = vmul.f32 %v1323, 1.442695
      %v1336 = vpow.pop %v1335
      %v1337 = vmul.f32 %v1324, 1.442695
      %v1338 = vpow.pop %v1337
      %v1339 = vmul.f32 %v1325, 1.442695
      %v1340 = vpow.pop %v1339
      %v1341 = vmul.f32 %v1326, 1.442695
      %v1342 = vpow.pop %v1341
      %v1343 = vsel %vm996, %v1328, 0.0
      %1344 = vadd.xlane.f32.xlu0 %v1343
      %v1345 = vpop.xlane.xlu0 %1344
      %v1346 = vsel %vm996, %v1330, 0.0
      %1347 = vadd.xlane.f32.xlu0 %v1346
      %v1348 = vpop.xlane.xlu0 %1347
      %v1349 = vsel %vm996, %v1332, 0.0
      %1350 = vadd.xlane.f32.xlu0 %v1349
      %v1351 = vpop.xlane.xlu0 %1350
      %v1352 = vsel %vm996, %v1334, 0.0
      %1353 = vadd.xlane.f32.xlu0 %v1352
      %v1354 = vpop.xlane.xlu0 %1353
      %v1355 = vsel %vm996, %v1336, 0.0
      %1356 = vadd.xlane.f32.xlu0 %v1355
      %v1357 = vpop.xlane.xlu0 %1356
      %v1358 = vsel %vm996, %v1338, 0.0
      %1359 = vadd.xlane.f32.xlu0 %v1358
      %v1360 = vpop.xlane.xlu0 %1359
      %v1361 = vsel %vm996, %v1340, 0.0
      %1362 = vadd.xlane.f32.xlu0 %v1361
      %v1363 = vpop.xlane.xlu0 %1362
      %v1364 = vsel %vm996, %v1342, 0.0
      %1365 = vadd.xlane.f32.xlu0 %v1364
      %v1366 = vpop.xlane.xlu0 %1365
      %v1367 = vrcp.pop %v1345
      %v1368 = vrcp.pop %v1348
      %v1369 = vrcp.pop %v1351
      %v1370 = vrcp.pop %v1354
      %v1371 = vrcp.pop %v1357
      %v1372 = vrcp.pop %v1360
      %v1373 = vrcp.pop %v1363
      %v1374 = vrcp.pop %v1366
      %v1375 = vmul.f32 %v1328, %v1367
      %v1376 = vmul.f32 %v1330, %v1368
      %v1377 = vmul.f32 %v1332, %v1369
      %v1378 = vmul.f32 %v1334, %v1370
      %v1379 = vmul.f32 %v1336, %v1371
      %v1380 = vmul.f32 %v1338, %v1372
      %v1381 = vmul.f32 %v1340, %v1373
      %v1382 = vmul.f32 %v1342, %v1374
      %v1383 = vpack.c.bf16 %v1376, %v1375
      %v1384 = vpack.c.bf16 %v1378, %v1377
      %v1385 = vpack.c.bf16 %v1380, %v1379
      %v1386 = vpack.c.bf16 %v1382, %v1381
      %1387 = vrot.lane.b32.xlu0 %v880, 92
      %v1388 = vpop.permute.xlu0 %1387
      %1389 = vrot.lane.b32.xlu0 %v881, 92
      %v1390 = vpop.permute.xlu0 %1389
      %1391 = vrot.lane.b32.xlu0 %v882, 92
      %v1392 = vpop.permute.xlu0 %1391
      %1393 = vrot.lane.b32.xlu0 %v883, 92
      %v1394 = vpop.permute.xlu0 %1393
      %v1400 = vsel %vm996, %v1383, 0
      %v1403 = vsel %vm996, %v1384, 0
      %v1406 = vsel %vm996, %v1385, 0
      %v1409 = vsel %vm996, %v1386, 0
      %1411 = vmatprep.subr.bf16.mxu0 0
      %1412 = vmatpush1.bf16.msra.mxu0 %v1388
      %1413 = vmatprep.subr.bf16.mxu0 0
      %1414 = vmatpush1.bf16.msra.mxu0 %v1390
      %1415 = vmatprep.subr.bf16.mxu0 0
      %1416 = vmatpush1.bf16.msra.mxu0 %v1392
      %1417 = vmatprep.subr.bf16.mxu0 0
      %1418 = vmatpush1.bf16.msra.mxu0 %v1394
      %1419 = vmatprep.subr.bf16.mxu0 0
      %1420 = vmatpush1.bf16.msra.mxu0 0
      %1421 = vmatprep.subr.bf16.mxu0 0
      %1422 = vmatpush1.bf16.msra.mxu0 0
      %1423 = vmatprep.subr.bf16.mxu0 0
      %1424 = vmatpush1.bf16.msra.mxu0 0
      %1425 = vmatprep.subr.bf16.mxu0 0
      %1426 = vmatpush1.bf16.msra.mxu0 0
      %1427 = vmatprep.subr.bf16.mxu0 0
      %1428 = vmatpush1.bf16.msra.mxu0 0
      %1429 = vmatprep.subr.bf16.mxu0 0
      %1430 = vmatpush1.bf16.msra.mxu0 0
      %1431 = vmatprep.subr.bf16.mxu0 0
      %1432 = vmatpush1.bf16.msra.mxu0 0
      %1433 = vmatprep.subr.bf16.mxu0 0
      %1434 = vmatpush1.bf16.msra.mxu0 0
      %1435 = vmatprep.subr.bf16.mxu0 0
      %1436 = vmatpush1.bf16.msra.mxu0 0
      %1437 = vmatprep.subr.bf16.mxu0 0
      %1438 = vmatpush1.bf16.msra.mxu0 0
      %1439 = vmatprep.subr.bf16.mxu0 0
      %1440 = vmatpush1.bf16.msra.mxu0 0
      %1441 = vmatprep.subr.bf16.mxu0 0
      %1442 = vmatpush1.bf16.msra.mxu0 0
      %1443 = vmatprep.mubr.bf16.mxu0 0
      %1444 = vmatmul.mubr.bf16.gmra.mrb[0].mxu0 %v1400
      %v1445 = vpop.f32.mrb[0].mxu0
      %v1446 = vadd.f32 0.0, %v1445
      %v1447 = vpop.f32.mrb[0].mxu0
      %v1448 = vpop.f32.mrb[0].mxu0
      %v1449 = vadd.f32 0.0, %v1448
      %v1450 = vpop.f32.mrb[0].mxu0
      %1451 = vmatprep.mubr.bf16.mxu0 0
      %1452 = vmatmul.mubr.bf16.gmra.mrb[0].mxu0 %v1403
      %v1453 = vpop.f32.mrb[0].mxu0
      %v1454 = vadd.f32 0.0, %v1453
      %v1455 = vpop.f32.mrb[0].mxu0
      %v1456 = vpop.f32.mrb[0].mxu0
      %v1457 = vadd.f32 0.0, %v1456
      %v1458 = vpop.f32.mrb[0].mxu0
      %1459 = vmatprep.mubr.bf16.mxu0 0
      %1460 = vmatmul.mubr.bf16.gmra.mrb[0].mxu0 %v1406
      %v1461 = vpop.f32.mrb[0].mxu0
      %v1462 = vadd.f32 0.0, %v1461
      %v1463 = vpop.f32.mrb[0].mxu0
      %v1464 = vpop.f32.mrb[0].mxu0
      %v1465 = vadd.f32 0.0, %v1464
      %v1466 = vpop.f32.mrb[0].mxu0
      %1467 = vmatprep.mubr.bf16.mxu0 0
      %1468 = vmatmul.mubr.bf16.gmra.mrb[0].mxu0 %v1409
      %v1469 = vpop.f32.mrb[0].mxu0
      %v1470 = vadd.f32 0.0, %v1469
      %v1471 = vpop.f32.mrb[0].mxu0
      %v1472 = vpop.f32.mrb[0].mxu0
      %v1473 = vadd.f32 0.0, %v1472
      %v1474 = vpop.f32.mrb[0].mxu0
      %1475 = vdwg.mxu0
      %v1476 = vpack.c.bf16 %v1449, %v1446
      %v1477 = vpack.c.bf16 %v1457, %v1454
      %v1478 = vpack.c.bf16 %v1465, %v1462
      %v1479 = vpack.c.bf16 %v1473, %v1470
      %v1481 = vunpack.c.l.b16 %v884
      %v1482 = vpack.c.b16 %v1481, %v1481
      %v1483 = vrot.slane %v1482, 2
      %v1485 = vsel %vm898, %v1476, 0
      %v1488 = vsel %vm898, %v1477, 0
      %v1491 = vsel %vm898, %v1478, 0
      %v1494 = vsel %vm898, %v1479, 0
      %vm1496 = vcmask 1041408
      %v1498 = vsel %vm1496, %v1483, 0
      %1500 = vmatprep.subr.bf16.mxu0 0
      %1501 = vmatpush1.bf16.msra.mxu0 %v1498
      %1502 = vmatprep.subr.bf16.mxu0 0
      %1503 = vmatpush1.bf16.msra.mxu0 0
      %1504 = vmatprep.subr.bf16.mxu0 0
      %1505 = vmatpush1.bf16.msra.mxu0 0
      %1506 = vmatprep.subr.bf16.mxu0 0
      %1507 = vmatpush1.bf16.msra.mxu0 0
      %1508 = vmatprep.subr.bf16.mxu0 0
      %1509 = vmatpush1.bf16.msra.mxu0 0
      %1510 = vmatprep.subr.bf16.mxu0 0
      %1511 = vmatpush1.bf16.msra.mxu0 0
      %1512 = vmatprep.subr.bf16.mxu0 0
      %1513 = vmatpush1.bf16.msra.mxu0 0
      %1514 = vmatprep.subr.bf16.mxu0 0
      %1515 = vmatpush1.bf16.msra.mxu0 0
      %1516 = vmatprep.subr.bf16.mxu0 0
      %1517 = vmatpush1.bf16.msra.mxu0 0
      %1518 = vmatprep.subr.bf16.mxu0 0
      %1519 = vmatpush1.bf16.msra.mxu0 0
      %1520 = vmatprep.subr.bf16.mxu0 0
      %1521 = vmatpush1.bf16.msra.mxu0 0
      %1522 = vmatprep.subr.bf16.mxu0 0
      %1523 = vmatpush1.bf16.msra.mxu0 0
      %1524 = vmatprep.subr.bf16.mxu0 0
      %1525 = vmatpush1.bf16.msra.mxu0 0
      %1526 = vmatprep.subr.bf16.mxu0 0
      %1527 = vmatpush1.bf16.msra.mxu0 0
      %1528 = vmatprep.subr.bf16.mxu0 0
      %1529 = vmatpush1.bf16.msra.mxu0 0
      %1530 = vmatprep.subr.bf16.mxu0 0
      %1531 = vmatpush1.bf16.msra.mxu0 0
      %1532 = vmatprep.mubr.bf16.mxu0 0
      %1533 = vmatmul.mubr.bf16.gmra.mrb[0].mxu0 %v1485
      %v1534 = vpop.f32.mrb[0].mxu0
      %v1535 = vadd.f32 0.0, %v1534
      %v1536 = vpop.f32.mrb[0].mxu0
      %v1537 = vpop.f32.mrb[0].mxu0
      %v1538 = vadd.f32 0.0, %v1537
      %v1539 = vpop.f32.mrb[0].mxu0
      %1540 = vmatprep.mubr.bf16.mxu0 0
      %1541 = vmatmul.mubr.bf16.gmra.mrb[0].mxu0 %v1488
      %v1542 = vpop.f32.mrb[0].mxu0
      %v1543 = vadd.f32 0.0, %v1542
      %v1544 = vpop.f32.mrb[0].mxu0
      %v1545 = vpop.f32.mrb[0].mxu0
      %v1546 = vadd.f32 0.0, %v1545
      %v1547 = vpop.f32.mrb[0].mxu0
      %1548 = vmatprep.mubr.bf16.mxu0 0
      %1549 = vmatmul.mubr.bf16.gmra.mrb[0].mxu0 %v1491
      %v1550 = vpop.f32.mrb[0].mxu0
      %v1551 = vadd.f32 0.0, %v1550
      %v1552 = vpop.f32.mrb[0].mxu0
      %v1553 = vpop.f32.mrb[0].mxu0
      %v1554 = vadd.f32 0.0, %v1553
      %v1555 = vpop.f32.mrb[0].mxu0
      %1556 = vmatprep.mubr.bf16.mxu0 0
      %1557 = vmatmul.mubr.bf16.gmra.mrb[0].mxu0 %v1494
      %v1558 = vpop.f32.mrb[0].mxu0
      %v1559 = vadd.f32 0.0, %v1558
      %v1560 = vpop.f32.mrb[0].mxu0
      %v1561 = vpop.f32.mrb[0].mxu0
      %v1562 = vadd.f32 0.0, %v1561
      %v1563 = vpop.f32.mrb[0].mxu0
      %1564 = vdwg.mxu0
      %v1566 = vsel %vm898, %v1178, 0
      %v1569 = vsel %vm898, %v1179, 0
      %v1572 = vsel %vm898, %v1180, 0
      %v1575 = vsel %vm898, %v1181, 0
      %v1578 = vsel %vm1496, %v884, 0
      %1580 = vmatprep.subr.bf16.mxu0 0
      %1581 = vmatpush1.bf16.msra.mxu0 %v1578
      %1582 = vmatprep.subr.bf16.mxu0 0
      %1583 = vmatpush1.bf16.msra.mxu0 0
      %1584 = vmatprep.subr.bf16.mxu0 0
      %1585 = vmatpush1.bf16.msra.mxu0 0
      %1586 = vmatprep.subr.bf16.mxu0 0
      %1587 = vmatpush1.bf16.msra.mxu0 0
      %1588 = vmatprep.subr.bf16.mxu0 0
      %1589 = vmatpush1.bf16.msra.mxu0 0
      %1590 = vmatprep.subr.bf16.mxu0 0
      %1591 = vmatpush1.bf16.msra.mxu0 0
      %1592 = vmatprep.subr.bf16.mxu0 0
      %1593 = vmatpush1.bf16.msra.mxu0 0
      %1594 = vmatprep.subr.bf16.mxu0 0
      %1595 = vmatpush1.bf16.msra.mxu0 0
      %1596 = vmatprep.subr.bf16.mxu0 0
      %1597 = vmatpush1.bf16.msra.mxu0 0
      %1598 = vmatprep.subr.bf16.mxu0 0
      %1599 = vmatpush1.bf16.msra.mxu0 0
      %1600 = vmatprep.subr.bf16.mxu0 0
      %1601 = vmatpush1.bf16.msra.mxu0 0
      %1602 = vmatprep.subr.bf16.mxu0 0
      %1603 = vmatpush1.bf16.msra.mxu0 0
      %1604 = vmatprep.subr.bf16.mxu0 0
      %1605 = vmatpush1.bf16.msra.mxu0 0
      %1606 = vmatprep.subr.bf16.mxu0 0
      %1607 = vmatpush1.bf16.msra.mxu0 0
      %1608 = vmatprep.subr.bf16.mxu0 0
      %1609 = vmatpush1.bf16.msra.mxu0 0
      %1610 = vmatprep.subr.bf16.mxu0 0
      %1611 = vmatpush1.bf16.msra.mxu0 0
      %1612 = vmatprep.mubr.bf16.mxu0 0
      %1613 = vmatmul.mubr.bf16.gmra.mrb[0].mxu0 %v1566
      %v1614 = vpop.f32.mrb[0].mxu0
      %v1615 = vadd.f32 %v1535, %v1614
      %v1616 = vpop.f32.mrb[0].mxu0
      %v1617 = vpop.f32.mrb[0].mxu0
      %v1618 = vadd.f32 %v1538, %v1617
      %v1619 = vpop.f32.mrb[0].mxu0
      %1620 = vmatprep.mubr.bf16.mxu0 0
      %1621 = vmatmul.mubr.bf16.gmra.mrb[0].mxu0 %v1569
      %v1622 = vpop.f32.mrb[0].mxu0
      %v1623 = vadd.f32 %v1543, %v1622
      %v1624 = vpop.f32.mrb[0].mxu0
      %v1625 = vpop.f32.mrb[0].mxu0
      %v1626 = vadd.f32 %v1546, %v1625
      %v1627 = vpop.f32.mrb[0].mxu0
      %1628 = vmatprep.mubr.bf16.mxu0 0
      %1629 = vmatmul.mubr.bf16.gmra.mrb[0].mxu0 %v1572
      %v1630 = vpop.f32.mrb[0].mxu0
      %v1631 = vadd.f32 %v1551, %v1630
      %v1632 = vpop.f32.mrb[0].mxu0
      %v1633 = vpop.f32.mrb[0].mxu0
      %v1634 = vadd.f32 %v1554, %v1633
      %v1635 = vpop.f32.mrb[0].mxu0
      %1636 = vmatprep.mubr.bf16.mxu0 0
      %1637 = vmatmul.mubr.bf16.gmra.mrb[0].mxu0 %v1575
      %v1638 = vpop.f32.mrb[0].mxu0
      %v1639 = vadd.f32 %v1559, %v1638
      %v1640 = vpop.f32.mrb[0].mxu0
      %v1641 = vpop.f32.mrb[0].mxu0
      %v1642 = vadd.f32 %v1562, %v1641
      %v1643 = vpop.f32.mrb[0].mxu0
      %1644 = vdwg.mxu0
      %1645 = vrot.lane.b32.xlu0 %v880, 120
      %v1646 = vpop.permute.xlu0 %1645
      %1647 = vrot.lane.b32.xlu0 %v881, 120
      %v1648 = vpop.permute.xlu0 %1647
      %1649 = vrot.lane.b32.xlu0 %v882, 120
      %v1650 = vpop.permute.xlu0 %1649
      %1651 = vrot.lane.b32.xlu0 %v883, 120
      %v1652 = vpop.permute.xlu0 %1651
      %1653 = vrot.lane.b32.xlu0 %v880, 104
      %v1654 = vpop.permute.xlu0 %1653
      %1655 = vrot.lane.b32.xlu0 %v881, 104
      %v1656 = vpop.permute.xlu0 %1655
      %1657 = vrot.lane.b32.xlu0 %v882, 104
      %v1658 = vpop.permute.xlu0 %1657
      %1659 = vrot.lane.b32.xlu0 %v883, 104
      %v1660 = vpop.permute.xlu0 %1659
      %v1662 = vsel %vm898, %v1646, 0
      %v1665 = vsel %vm898, %v1648, 0
      %v1668 = vsel %vm898, %v1650, 0
      %v1671 = vsel %vm898, %v1652, 0
      %v1674 = vsel %vm898, %v1654, 0
      %v1677 = vsel %vm898, %v1656, 0
      %v1680 = vsel %vm898, %v1658, 0
      %v1683 = vsel %vm898, %v1660, 0
      %1685 = vmatprep.subr.bf16.mxu0 0
      %1686 = vmatpush1.bf16.xpose.msra.mxu0 %v1674
      %1687 = vmatprep.subr.bf16.mxu0 0
      %1688 = vmatpush1.bf16.xpose.msra.mxu0 %v1677
      %1689 = vmatprep.subr.bf16.mxu0 0
      %1690 = vmatpush1.bf16.xpose.msra.mxu0 %v1680
      %1691 = vmatprep.subr.bf16.mxu0 0
      %1692 = vmatpush1.bf16.xpose.msra.mxu0 %v1683
      %1693 = vmatprep.subr.bf16.mxu0 0
      %1694 = vmatpush1.bf16.xpose.msra.mxu0 0
      %1695 = vmatprep.subr.bf16.mxu0 0
      %1696 = vmatpush1.bf16.xpose.msra.mxu0 0
      %1697 = vmatprep.subr.bf16.mxu0 0
      %1698 = vmatpush1.bf16.xpose.msra.mxu0 0
      %1699 = vmatprep.subr.bf16.mxu0 0
      %1700 = vmatpush1.bf16.xpose.msra.mxu0 0
      %1701 = vmatprep.subr.bf16.mxu0 0
      %1702 = vmatpush1.bf16.xpose.msra.mxu0 0
      %1703 = vmatprep.subr.bf16.mxu0 0
      %1704 = vmatpush1.bf16.xpose.msra.mxu0 0
      %1705 = vmatprep.subr.bf16.mxu0 0
      %1706 = vmatpush1.bf16.xpose.msra.mxu0 0
      %1707 = vmatprep.subr.bf16.mxu0 0
      %1708 = vmatpush1.bf16.xpose.msra.mxu0 0
      %1709 = vmatprep.subr.bf16.mxu0 0
      %1710 = vmatpush1.bf16.xpose.msra.mxu0 0
      %1711 = vmatprep.subr.bf16.mxu0 0
      %1712 = vmatpush1.bf16.xpose.msra.mxu0 0
      %1713 = vmatprep.subr.bf16.mxu0 0
      %1714 = vmatpush1.bf16.xpose.msra.mxu0 0
      %1715 = vmatprep.subr.bf16.mxu0 0
      %1716 = vmatpush1.bf16.xpose.msra.mxu0 0
      %1717 = vmatprep.mubr.bf16.mxu0 0
      %1718 = vmatmul.mubr.bf16.gmra.mrb[0].mxu0 %v1662
      %v1719 = vpop.f32.mrb[0].mxu0
      %v1720 = vadd.f32 0.0, %v1719
      %v1721 = vpop.f32.mrb[0].mxu0
      %v1722 = vpop.f32.mrb[0].mxu0
      %v1723 = vadd.f32 0.0, %v1722
      %v1724 = vpop.f32.mrb[0].mxu0
      %1725 = vmatprep.mubr.bf16.mxu0 0
      %1726 = vmatmul.mubr.bf16.gmra.mrb[0].mxu0 %v1665
      %v1727 = vpop.f32.mrb[0].mxu0
      %v1728 = vadd.f32 0.0, %v1727
      %v1729 = vpop.f32.mrb[0].mxu0
      %v1730 = vpop.f32.mrb[0].mxu0
      %v1731 = vadd.f32 0.0, %v1730
      %v1732 = vpop.f32.mrb[0].mxu0
      %1733 = vmatprep.mubr.bf16.mxu0 0
      %1734 = vmatmul.mubr.bf16.gmra.mrb[0].mxu0 %v1668
      %v1735 = vpop.f32.mrb[0].mxu0
      %v1736 = vadd.f32 0.0, %v1735
      %v1737 = vpop.f32.mrb[0].mxu0
      %v1738 = vpop.f32.mrb[0].mxu0
      %v1739 = vadd.f32 0.0, %v1738
      %v1740 = vpop.f32.mrb[0].mxu0
      %1741 = vmatprep.mubr.bf16.mxu0 0
      %1742 = vmatmul.mubr.bf16.gmra.mrb[0].mxu0 %v1671
      %v1743 = vpop.f32.mrb[0].mxu0
      %v1744 = vadd.f32 0.0, %v1743
      %v1745 = vpop.f32.mrb[0].mxu0
      %v1746 = vpop.f32.mrb[0].mxu0
      %v1747 = vadd.f32 0.0, %v1746
      %v1748 = vpop.f32.mrb[0].mxu0
      %1749 = vdwg.mxu0
      %v1750 = vmul.f32 %v1720, 0.5
      %v1751 = vmul.f32 %v1723, 0.5
      %v1752 = vmul.f32 %v1728, 0.5
      %v1753 = vmul.f32 %v1731, 0.5
      %v1754 = vmul.f32 %v1736, 0.5
      %v1755 = vmul.f32 %v1739, 0.5
      %v1756 = vmul.f32 %v1744, 0.5
      %v1757 = vmul.f32 %v1747, 0.5
      %v1758 = vsel %vm996, %v1750, -inf
      %1759 = vmax.xlane.f32.xlu0 %v1758
      %v1760 = vpop.xlane.xlu0 %1759
      %v1761 = vsel %vm996, %v1751, -inf
      %1762 = vmax.xlane.f32.xlu0 %v1761
      %v1763 = vpop.xlane.xlu0 %1762
      %v1764 = vsel %vm996, %v1752, -inf
      %1765 = vmax.xlane.f32.xlu0 %v1764
      %v1766 = vpop.xlane.xlu0 %1765
      %v1767 = vsel %vm996, %v1753, -inf
      %1768 = vmax.xlane.f32.xlu0 %v1767
      %v1769 = vpop.xlane.xlu0 %1768
      %v1770 = vsel %vm996, %v1754, -inf
      %1771 = vmax.xlane.f32.xlu0 %v1770
      %v1772 = vpop.xlane.xlu0 %1771
      %v1773 = vsel %vm996, %v1755, -inf
      %1774 = vmax.xlane.f32.xlu0 %v1773
      %v1775 = vpop.xlane.xlu0 %1774
      %v1776 = vsel %vm996, %v1756, -inf
      %1777 = vmax.xlane.f32.xlu0 %v1776
      %v1778 = vpop.xlane.xlu0 %1777
      %v1779 = vsel %vm996, %v1757, -inf
      %1780 = vmax.xlane.f32.xlu0 %v1779
      %v1781 = vpop.xlane.xlu0 %1780
      %v1782 = vsub.f32 %v1750, %v1760
      %v1783 = vsub.f32 %v1751, %v1763
      %v1784 = vsub.f32 %v1752, %v1766
      %v1785 = vsub.f32 %v1753, %v1769
      %v1786 = vsub.f32 %v1754, %v1772
      %v1787 = vsub.f32 %v1755, %v1775
      %v1788 = vsub.f32 %v1756, %v1778
      %v1789 = vsub.f32 %v1757, %v1781
      %v1790 = vmul.f32 %v1782, 1.442695
      %v1791 = vpow.pop %v1790
      %v1792 = vmul.f32 %v1783, 1.442695
      %v1793 = vpow.pop %v1792
      %v1794 = vmul.f32 %v1784, 1.442695
      %v1795 = vpow.pop %v1794
      %v1796 = vmul.f32 %v1785, 1.442695
      %v1797 = vpow.pop %v1796
      %v1798 = vmul.f32 %v1786, 1.442695
      %v1799 = vpow.pop %v1798
      %v1800 = vmul.f32 %v1787, 1.442695
      %v1801 = vpow.pop %v1800
      %v1802 = vmul.f32 %v1788, 1.442695
      %v1803 = vpow.pop %v1802
      %v1804 = vmul.f32 %v1789, 1.442695
      %v1805 = vpow.pop %v1804
      %v1806 = vsel %vm996, %v1791, 0.0
      %1807 = vadd.xlane.f32.xlu0 %v1806
      %v1808 = vpop.xlane.xlu0 %1807
      %v1809 = vsel %vm996, %v1793, 0.0
      %1810 = vadd.xlane.f32.xlu0 %v1809
      %v1811 = vpop.xlane.xlu0 %1810
      %v1812 = vsel %vm996, %v1795, 0.0
      %1813 = vadd.xlane.f32.xlu0 %v1812
      %v1814 = vpop.xlane.xlu0 %1813
      %v1815 = vsel %vm996, %v1797, 0.0
      %1816 = vadd.xlane.f32.xlu0 %v1815
      %v1817 = vpop.xlane.xlu0 %1816
      %v1818 = vsel %vm996, %v1799, 0.0
      %1819 = vadd.xlane.f32.xlu0 %v1818
      %v1820 = vpop.xlane.xlu0 %1819
      %v1821 = vsel %vm996, %v1801, 0.0
      %1822 = vadd.xlane.f32.xlu0 %v1821
      %v1823 = vpop.xlane.xlu0 %1822
      %v1824 = vsel %vm996, %v1803, 0.0
      %1825 = vadd.xlane.f32.xlu0 %v1824
      %v1826 = vpop.xlane.xlu0 %1825
      %v1827 = vsel %vm996, %v1805, 0.0
      %1828 = vadd.xlane.f32.xlu0 %v1827
      %v1829 = vpop.xlane.xlu0 %1828
      %v1830 = vrcp.pop %v1808
      %v1831 = vrcp.pop %v1811
      %v1832 = vrcp.pop %v1814
      %v1833 = vrcp.pop %v1817
      %v1834 = vrcp.pop %v1820
      %v1835 = vrcp.pop %v1823
      %v1836 = vrcp.pop %v1826
      %v1837 = vrcp.pop %v1829
      %v1838 = vmul.f32 %v1791, %v1830
      %v1839 = vmul.f32 %v1793, %v1831
      %v1840 = vmul.f32 %v1795, %v1832
      %v1841 = vmul.f32 %v1797, %v1833
      %v1842 = vmul.f32 %v1799, %v1834
      %v1843 = vmul.f32 %v1801, %v1835
      %v1844 = vmul.f32 %v1803, %v1836
      %v1845 = vmul.f32 %v1805, %v1837
      %v1846 = vpack.c.bf16 %v1839, %v1838
      %v1847 = vpack.c.bf16 %v1841, %v1840
      %v1848 = vpack.c.bf16 %v1843, %v1842
      %v1849 = vpack.c.bf16 %v1845, %v1844
      %1850 = vrot.lane.b32.xlu0 %v880, 88
      %v1851 = vpop.permute.xlu0 %1850
      %1852 = vrot.lane.b32.xlu0 %v881, 88
      %v1853 = vpop.permute.xlu0 %1852
      %1854 = vrot.lane.b32.xlu0 %v882, 88
      %v1855 = vpop.permute.xlu0 %1854
      %1856 = vrot.lane.b32.xlu0 %v883, 88
      %v1857 = vpop.permute.xlu0 %1856
      %v1863 = vsel %vm996, %v1846, 0
      %v1866 = vsel %vm996, %v1847, 0
      %v1869 = vsel %vm996, %v1848, 0
      %v1872 = vsel %vm996, %v1849, 0
      %1874 = vmatprep.subr.bf16.mxu0 0
      %1875 = vmatpush1.bf16.msra.mxu0 %v1851
      %1876 = vmatprep.subr.bf16.mxu0 0
      %1877 = vmatpush1.bf16.msra.mxu0 %v1853
      %1878 = vmatprep.subr.bf16.mxu0 0
      %1879 = vmatpush1.bf16.msra.mxu0 %v1855
      %1880 = vmatprep.subr.bf16.mxu0 0
      %1881 = vmatpush1.bf16.msra.mxu0 %v1857
      %1882 = vmatprep.subr.bf16.mxu0 0
      %1883 = vmatpush1.bf16.msra.mxu0 0
      %1884 = vmatprep.subr.bf16.mxu0 0
      %1885 = vmatpush1.bf16.msra.mxu0 0
      %1886 = vmatprep.subr.bf16.mxu0 0
      %1887 = vmatpush1.bf16.msra.mxu0 0
      %1888 = vmatprep.subr.bf16.mxu0 0
      %1889 = vmatpush1.bf16.msra.mxu0 0
      %1890 = vmatprep.subr.bf16.mxu0 0
      %1891 = vmatpush1.bf16.msra.mxu0 0
      %1892 = vmatprep.subr.bf16.mxu0 0
      %1893 = vmatpush1.bf16.msra.mxu0 0
      %1894 = vmatprep.subr.bf16.mxu0 0
      %1895 = vmatpush1.bf16.msra.mxu0 0
      %1896 = vmatprep.subr.bf16.mxu0 0
      %1897 = vmatpush1.bf16.msra.mxu0 0
      %1898 = vmatprep.subr.bf16.mxu0 0
      %1899 = vmatpush1.bf16.msra.mxu0 0
      %1900 = vmatprep.subr.bf16.mxu0 0
      %1901 = vmatpush1.bf16.msra.mxu0 0
      %1902 = vmatprep.subr.bf16.mxu0 0
      %1903 = vmatpush1.bf16.msra.mxu0 0
      %1904 = vmatprep.subr.bf16.mxu0 0
      %1905 = vmatpush1.bf16.msra.mxu0 0
      %1906 = vmatprep.mubr.bf16.mxu0 0
      %1907 = vmatmul.mubr.bf16.gmra.mrb[0].mxu0 %v1863
      %v1908 = vpop.f32.mrb[0].mxu0
      %v1909 = vadd.f32 0.0, %v1908
      %v1910 = vpop.f32.mrb[0].mxu0
      %v1911 = vpop.f32.mrb[0].mxu0
      %v1912 = vadd.f32 0.0, %v1911
      %v1913 = vpop.f32.mrb[0].mxu0
      %1914 = vmatprep.mubr.bf16.mxu0 0
      %1915 = vmatmul.mubr.bf16.gmra.mrb[0].mxu0 %v1866
      %v1916 = vpop.f32.mrb[0].mxu0
      %v1917 = vadd.f32 0.0, %v1916
      %v1918 = vpop.f32.mrb[0].mxu0
      %v1919 = vpop.f32.mrb[0].mxu0
      %v1920 = vadd.f32 0.0, %v1919
      %v1921 = vpop.f32.mrb[0].mxu0
      %1922 = vmatprep.mubr.bf16.mxu0 0
      %1923 = vmatmul.mubr.bf16.gmra.mrb[0].mxu0 %v1869
      %v1924 = vpop.f32.mrb[0].mxu0
      %v1925 = vadd.f32 0.0, %v1924
      %v1926 = vpop.f32.mrb[0].mxu0
      %v1927 = vpop.f32.mrb[0].mxu0
      %v1928 = vadd.f32 0.0, %v1927
      %v1929 = vpop.f32.mrb[0].mxu0
      %1930 = vmatprep.mubr.bf16.mxu0 0
      %1931 = vmatmul.mubr.bf16.gmra.mrb[0].mxu0 %v1872
      %v1932 = vpop.f32.mrb[0].mxu0
      %v1933 = vadd.f32 0.0, %v1932
      %v1934 = vpop.f32.mrb[0].mxu0
      %v1935 = vpop.f32.mrb[0].mxu0
      %v1936 = vadd.f32 0.0, %v1935
      %v1937 = vpop.f32.mrb[0].mxu0
      %1938 = vdwg.mxu0
      %v1939 = vpack.c.bf16 %v1912, %v1909
      %v1940 = vpack.c.bf16 %v1920, %v1917
      %v1941 = vpack.c.bf16 %v1928, %v1925
      %v1942 = vpack.c.bf16 %v1936, %v1933
      %v1944 = vsel %vm898, %v1939, 0
      %v1947 = vsel %vm898, %v1940, 0
      %v1950 = vsel %vm898, %v1941, 0
      %v1953 = vsel %vm898, %v1942, 0
      %v1956 = vsel %vm1496, %v885, 0
      %1958 = vmatprep.subr.bf16.mxu0 0
      %1959 = vmatpush1.bf16.msra.mxu0 %v1956
      %1960 = vmatprep.subr.bf16.mxu0 0
      %1961 = vmatpush1.bf16.msra.mxu0 0
      %1962 = vmatprep.subr.bf16.mxu0 0
      %1963 = vmatpush1.bf16.msra.mxu0 0
      %1964 = vmatprep.subr.bf16.mxu0 0
      %1965 = vmatpush1.bf16.msra.mxu0 0
      %1966 = vmatprep.subr.bf16.mxu0 0
      %1967 = vmatpush1.bf16.msra.mxu0 0
      %1968 = vmatprep.subr.bf16.mxu0 0
      %1969 = vmatpush1.bf16.msra.mxu0 0
      %1970 = vmatprep.subr.bf16.mxu0 0
      %1971 = vmatpush1.bf16.msra.mxu0 0
      %1972 = vmatprep.subr.bf16.mxu0 0
      %1973 = vmatpush1.bf16.msra.mxu0 0
      %1974 = vmatprep.subr.bf16.mxu0 0
      %1975 = vmatpush1.bf16.msra.mxu0 0
      %1976 = vmatprep.subr.bf16.mxu0 0
      %1977 = vmatpush1.bf16.msra.mxu0 0
      %1978 = vmatprep.subr.bf16.mxu0 0
      %1979 = vmatpush1.bf16.msra.mxu0 0
      %1980 = vmatprep.subr.bf16.mxu0 0
      %1981 = vmatpush1.bf16.msra.mxu0 0
      %1982 = vmatprep.subr.bf16.mxu0 0
      %1983 = vmatpush1.bf16.msra.mxu0 0
      %1984 = vmatprep.subr.bf16.mxu0 0
      %1985 = vmatpush1.bf16.msra.mxu0 0
      %1986 = vmatprep.subr.bf16.mxu0 0
      %1987 = vmatpush1.bf16.msra.mxu0 0
      %1988 = vmatprep.subr.bf16.mxu0 0
      %1989 = vmatpush1.bf16.msra.mxu0 0
      %1990 = vmatprep.mubr.bf16.mxu0 0
      %1991 = vmatmul.mubr.bf16.gmra.mrb[0].mxu0 %v1944
      %v1992 = vpop.f32.mrb[0].mxu0
      %v1993 = vadd.f32 0.0, %v1992
      %v1994 = vpop.f32.mrb[0].mxu0
      %v1995 = vpop.f32.mrb[0].mxu0
      %v1996 = vadd.f32 0.0, %v1995
      %v1997 = vpop.f32.mrb[0].mxu0
      %1998 = vmatprep.mubr.bf16.mxu0 0
      %1999 = vmatmul.mubr.bf16.gmra.mrb[0].mxu0 %v1947
      %v2000 = vpop.f32.mrb[0].mxu0
      %v2001 = vadd.f32 0.0, %v2000
      %v2002 = vpop.f32.mrb[0].mxu0
      %v2003 = vpop.f32.mrb[0].mxu0
      %v2004 = vadd.f32 0.0, %v2003
      %v2005 = vpop.f32.mrb[0].mxu0
      %2006 = vmatprep.mubr.bf16.mxu0 0
      %2007 = vmatmul.mubr.bf16.gmra.mrb[0].mxu0 %v1950
      %v2008 = vpop.f32.mrb[0].mxu0
      %v2009 = vadd.f32 0.0, %v2008
      %v2010 = vpop.f32.mrb[0].mxu0
      %v2011 = vpop.f32.mrb[0].mxu0
      %v2012 = vadd.f32 0.0, %v2011
      %v2013 = vpop.f32.mrb[0].mxu0
      %2014 = vmatprep.mubr.bf16.mxu0 0
      %2015 = vmatmul.mubr.bf16.gmra.mrb[0].mxu0 %v1953
      %v2016 = vpop.f32.mrb[0].mxu0
      %v2017 = vadd.f32 0.0, %v2016
      %v2018 = vpop.f32.mrb[0].mxu0
      %v2019 = vpop.f32.mrb[0].mxu0
      %v2020 = vadd.f32 0.0, %v2019
      %v2021 = vpop.f32.mrb[0].mxu0
      %2022 = vdwg.mxu0
      %v2023 = vadd.f32 %v1615, %v1993
      %v2024 = vadd.f32 %v1618, %v1996
      %v2025 = vadd.f32 %v1623, %v2001
      %v2026 = vadd.f32 %v1626, %v2004
      %v2027 = vadd.f32 %v1631, %v2009
      %v2028 = vadd.f32 %v1634, %v2012
      %v2029 = vadd.f32 %v1639, %v2017
      %v2030 = vadd.f32 %v1642, %v2020
      %2031 = vrot.lane.b32.xlu0 %v880, 116
      %v2032 = vpop.permute.xlu0 %2031
      %2033 = vrot.lane.b32.xlu0 %v881, 116
      %v2034 = vpop.permute.xlu0 %2033
      %2035 = vrot.lane.b32.xlu0 %v882, 116
      %v2036 = vpop.permute.xlu0 %2035
      %2037 = vrot.lane.b32.xlu0 %v883, 116
      %v2038 = vpop.permute.xlu0 %2037
      %2039 = vrot.lane.b32.xlu0 %v880, 100
      %v2040 = vpop.permute.xlu0 %2039
      %2041 = vrot.lane.b32.xlu0 %v881, 100
      %v2042 = vpop.permute.xlu0 %2041
      %2043 = vrot.lane.b32.xlu0 %v882, 100
      %v2044 = vpop.permute.xlu0 %2043
      %2045 = vrot.lane.b32.xlu0 %v883, 100
      %v2046 = vpop.permute.xlu0 %2045
      %v2048 = vsel %vm898, %v2032, 0
      %v2051 = vsel %vm898, %v2034, 0
      %v2054 = vsel %vm898, %v2036, 0
      %v2057 = vsel %vm898, %v2038, 0
      %v2060 = vsel %vm898, %v2040, 0
      %v2063 = vsel %vm898, %v2042, 0
      %v2066 = vsel %vm898, %v2044, 0
      %v2069 = vsel %vm898, %v2046, 0
      %2071 = vmatprep.subr.bf16.mxu0 0
      %2072 = vmatpush1.bf16.xpose.msra.mxu0 %v2060
      %2073 = vmatprep.subr.bf16.mxu0 0
      %2074 = vmatpush1.bf16.xpose.msra.mxu0 %v2063
      %2075 = vmatprep.subr.bf16.mxu0 0
      %2076 = vmatpush1.bf16.xpose.msra.mxu0 %v2066
      %2077 = vmatprep.subr.bf16.mxu0 0
      %2078 = vmatpush1.bf16.xpose.msra.mxu0 %v2069
      %2079 = vmatprep.subr.bf16.mxu0 0
      %2080 = vmatpush1.bf16.xpose.msra.mxu0 0
      %2081 = vmatprep.subr.bf16.mxu0 0
      %2082 = vmatpush1.bf16.xpose.msra.mxu0 0
      %2083 = vmatprep.subr.bf16.mxu0 0
      %2084 = vmatpush1.bf16.xpose.msra.mxu0 0
      %2085 = vmatprep.subr.bf16.mxu0 0
      %2086 = vmatpush1.bf16.xpose.msra.mxu0 0
      %2087 = vmatprep.subr.bf16.mxu0 0
      %2088 = vmatpush1.bf16.xpose.msra.mxu0 0
      %2089 = vmatprep.subr.bf16.mxu0 0
      %2090 = vmatpush1.bf16.xpose.msra.mxu0 0
      %2091 = vmatprep.subr.bf16.mxu0 0
      %2092 = vmatpush1.bf16.xpose.msra.mxu0 0
      %2093 = vmatprep.subr.bf16.mxu0 0
      %2094 = vmatpush1.bf16.xpose.msra.mxu0 0
      %2095 = vmatprep.subr.bf16.mxu0 0
      %2096 = vmatpush1.bf16.xpose.msra.mxu0 0
      %2097 = vmatprep.subr.bf16.mxu0 0
      %2098 = vmatpush1.bf16.xpose.msra.mxu0 0
      %2099 = vmatprep.subr.bf16.mxu0 0
      %2100 = vmatpush1.bf16.xpose.msra.mxu0 0
      %2101 = vmatprep.subr.bf16.mxu0 0
      %2102 = vmatpush1.bf16.xpose.msra.mxu0 0
      %2103 = vmatprep.mubr.bf16.mxu0 0
      %2104 = vmatmul.mubr.bf16.gmra.mrb[0].mxu0 %v2048
      %v2105 = vpop.f32.mrb[0].mxu0
      %v2106 = vadd.f32 0.0, %v2105
      %v2107 = vpop.f32.mrb[0].mxu0
      %v2108 = vpop.f32.mrb[0].mxu0
      %v2109 = vadd.f32 0.0, %v2108
      %v2110 = vpop.f32.mrb[0].mxu0
      %2111 = vmatprep.mubr.bf16.mxu0 0
      %2112 = vmatmul.mubr.bf16.gmra.mrb[0].mxu0 %v2051
      %v2113 = vpop.f32.mrb[0].mxu0
      %v2114 = vadd.f32 0.0, %v2113
      %v2115 = vpop.f32.mrb[0].mxu0
      %v2116 = vpop.f32.mrb[0].mxu0
      %v2117 = vadd.f32 0.0, %v2116
      %v2118 = vpop.f32.mrb[0].mxu0
      %2119 = vmatprep.mubr.bf16.mxu0 0
      %2120 = vmatmul.mubr.bf16.gmra.mrb[0].mxu0 %v2054
      %v2121 = vpop.f32.mrb[0].mxu0
      %v2122 = vadd.f32 0.0, %v2121
      %v2123 = vpop.f32.mrb[0].mxu0
      %v2124 = vpop.f32.mrb[0].mxu0
      %v2125 = vadd.f32 0.0, %v2124
      %v2126 = vpop.f32.mrb[0].mxu0
      %2127 = vmatprep.mubr.bf16.mxu0 0
      %2128 = vmatmul.mubr.bf16.gmra.mrb[0].mxu0 %v2057
      %v2129 = vpop.f32.mrb[0].mxu0
      %v2130 = vadd.f32 0.0, %v2129
      %v2131 = vpop.f32.mrb[0].mxu0
      %v2132 = vpop.f32.mrb[0].mxu0
      %v2133 = vadd.f32 0.0, %v2132
      %v2134 = vpop.f32.mrb[0].mxu0
      %2135 = vdwg.mxu0
      %v2136 = vmul.f32 %v2106, 0.5
      %v2137 = vmul.f32 %v2109, 0.5
      %v2138 = vmul.f32 %v2114, 0.5
      %v2139 = vmul.f32 %v2117, 0.5
      %v2140 = vmul.f32 %v2122, 0.5
      %v2141 = vmul.f32 %v2125, 0.5
      %v2142 = vmul.f32 %v2130, 0.5
      %v2143 = vmul.f32 %v2133, 0.5
      %v2144 = vsel %vm996, %v2136, -inf
      %2145 = vmax.xlane.f32.xlu0 %v2144
      %v2146 = vpop.xlane.xlu0 %2145
      %v2147 = vsel %vm996, %v2137, -inf
      %2148 = vmax.xlane.f32.xlu0 %v2147
      %v2149 = vpop.xlane.xlu0 %2148
      %v2150 = vsel %vm996, %v2138, -inf
      %2151 = vmax.xlane.f32.xlu0 %v2150
      %v2152 = vpop.xlane.xlu0 %2151
      %v2153 = vsel %vm996, %v2139, -inf
      %2154 = vmax.xlane.f32.xlu0 %v2153
      %v2155 = vpop.xlane.xlu0 %2154
      %v2156 = vsel %vm996, %v2140, -inf
      %2157 = vmax.xlane.f32.xlu0 %v2156
      %v2158 = vpop.xlane.xlu0 %2157
      %v2159 = vsel %vm996, %v2141, -inf
      %2160 = vmax.xlane.f32.xlu0 %v2159
      %v2161 = vpop.xlane.xlu0 %2160
      %v2162 = vsel %vm996, %v2142, -inf
      %2163 = vmax.xlane.f32.xlu0 %v2162
      %v2164 = vpop.xlane.xlu0 %2163
      %v2165 = vsel %vm996, %v2143, -inf
      %2166 = vmax.xlane.f32.xlu0 %v2165
      %v2167 = vpop.xlane.xlu0 %2166
      %v2168 = vsub.f32 %v2136, %v2146
      %v2169 = vsub.f32 %v2137, %v2149
      %v2170 = vsub.f32 %v2138, %v2152
      %v2171 = vsub.f32 %v2139, %v2155
      %v2172 = vsub.f32 %v2140, %v2158
      %v2173 = vsub.f32 %v2141, %v2161
      %v2174 = vsub.f32 %v2142, %v2164
      %v2175 = vsub.f32 %v2143, %v2167
      %v2176 = vmul.f32 %v2168, 1.442695
      %v2177 = vpow.pop %v2176
      %v2178 = vmul.f32 %v2169, 1.442695
      %v2179 = vpow.pop %v2178
      %v2180 = vmul.f32 %v2170, 1.442695
      %v2181 = vpow.pop %v2180
      %v2182 = vmul.f32 %v2171, 1.442695
      %v2183 = vpow.pop %v2182
      %v2184 = vmul.f32 %v2172, 1.442695
      %v2185 = vpow.pop %v2184
      %v2186 = vmul.f32 %v2173, 1.442695
      %v2187 = vpow.pop %v2186
      %v2188 = vmul.f32 %v2174, 1.442695
      %v2189 = vpow.pop %v2188
      %v2190 = vmul.f32 %v2175, 1.442695
      %v2191 = vpow.pop %v2190
      %v2192 = vsel %vm996, %v2177, 0.0
      %2193 = vadd.xlane.f32.xlu0 %v2192
      %v2194 = vpop.xlane.xlu0 %2193
      %v2195 = vsel %vm996, %v2179, 0.0
      %2196 = vadd.xlane.f32.xlu0 %v2195
      %v2197 = vpop.xlane.xlu0 %2196
      %v2198 = vsel %vm996, %v2181, 0.0
      %2199 = vadd.xlane.f32.xlu0 %v2198
      %v2200 = vpop.xlane.xlu0 %2199
      %v2201 = vsel %vm996, %v2183, 0.0
      %2202 = vadd.xlane.f32.xlu0 %v2201
      %v2203 = vpop.xlane.xlu0 %2202
      %v2204 = vsel %vm996, %v2185, 0.0
      %2205 = vadd.xlane.f32.xlu0 %v2204
      %v2206 = vpop.xlane.xlu0 %2205
      %v2207 = vsel %vm996, %v2187, 0.0
      %2208 = vadd.xlane.f32.xlu0 %v2207
      %v2209 = vpop.xlane.xlu0 %2208
      %v2210 = vsel %vm996, %v2189, 0.0
      %2211 = vadd.xlane.f32.xlu0 %v2210
      %v2212 = vpop.xlane.xlu0 %2211
      %v2213 = vsel %vm996, %v2191, 0.0
      %2214 = vadd.xlane.f32.xlu0 %v2213
      %v2215 = vpop.xlane.xlu0 %2214
      %v2216 = vrcp.pop %v2194
      %v2217 = vrcp.pop %v2197
      %v2218 = vrcp.pop %v2200
      %v2219 = vrcp.pop %v2203
      %v2220 = vrcp.pop %v2206
      %v2221 = vrcp.pop %v2209
      %v2222 = vrcp.pop %v2212
      %v2223 = vrcp.pop %v2215
      %v2224 = vmul.f32 %v2177, %v2216
      %v2225 = vmul.f32 %v2179, %v2217
      %v2226 = vmul.f32 %v2181, %v2218
      %v2227 = vmul.f32 %v2183, %v2219
      %v2228 = vmul.f32 %v2185, %v2220
      %v2229 = vmul.f32 %v2187, %v2221
      %v2230 = vmul.f32 %v2189, %v2222
      %v2231 = vmul.f32 %v2191, %v2223
      %v2232 = vpack.c.bf16 %v2225, %v2224
      %v2233 = vpack.c.bf16 %v2227, %v2226
      %v2234 = vpack.c.bf16 %v2229, %v2228
      %v2235 = vpack.c.bf16 %v2231, %v2230
      %2236 = vrot.lane.b32.xlu0 %v880, 84
      %v2237 = vpop.permute.xlu0 %2236
      %2238 = vrot.lane.b32.xlu0 %v881, 84
      %v2239 = vpop.permute.xlu0 %2238
      %2240 = vrot.lane.b32.xlu0 %v882, 84
      %v2241 = vpop.permute.xlu0 %2240
      %2242 = vrot.lane.b32.xlu0 %v883, 84
      %v2243 = vpop.permute.xlu0 %2242
      %v2249 = vsel %vm996, %v2232, 0
      %v2252 = vsel %vm996, %v2233, 0
      %v2255 = vsel %vm996, %v2234, 0
      %v2258 = vsel %vm996, %v2235, 0
      %2260 = vmatprep.subr.bf16.mxu0 0
      %2261 = vmatpush1.bf16.msra.mxu0 %v2237
      %2262 = vmatprep.subr.bf16.mxu0 0
      %2263 = vmatpush1.bf16.msra.mxu0 %v2239
      %2264 = vmatprep.subr.bf16.mxu0 0
      %2265 = vmatpush1.bf16.msra.mxu0 %v2241
      %2266 = vmatprep.subr.bf16.mxu0 0
      %2267 = vmatpush1.bf16.msra.mxu0 %v2243
      %2268 = vmatprep.subr.bf16.mxu0 0
      %2269 = vmatpush1.bf16.msra.mxu0 0
      %2270 = vmatprep.subr.bf16.mxu0 0
      %2271 = vmatpush1.bf16.msra.mxu0 0
      %2272 = vmatprep.subr.bf16.mxu0 0
      %2273 = vmatpush1.bf16.msra.mxu0 0
      %2274 = vmatprep.subr.bf16.mxu0 0
      %2275 = vmatpush1.bf16.msra.mxu0 0
      %2276 = vmatprep.subr.bf16.mxu0 0
      %2277 = vmatpush1.bf16.msra.mxu0 0
      %2278 = vmatprep.subr.bf16.mxu0 0
      %2279 = vmatpush1.bf16.msra.mxu0 0
      %2280 = vmatprep.subr.bf16.mxu0 0
      %2281 = vmatpush1.bf16.msra.mxu0 0
      %2282 = vmatprep.subr.bf16.mxu0 0
      %2283 = vmatpush1.bf16.msra.mxu0 0
      %2284 = vmatprep.subr.bf16.mxu0 0
      %2285 = vmatpush1.bf16.msra.mxu0 0
      %2286 = vmatprep.subr.bf16.mxu0 0
      %2287 = vmatpush1.bf16.msra.mxu0 0
      %2288 = vmatprep.subr.bf16.mxu0 0
      %2289 = vmatpush1.bf16.msra.mxu0 0
      %2290 = vmatprep.subr.bf16.mxu0 0
      %2291 = vmatpush1.bf16.msra.mxu0 0
      %2292 = vmatprep.mubr.bf16.mxu0 0
      %2293 = vmatmul.mubr.bf16.gmra.mrb[0].mxu0 %v2249
      %v2294 = vpop.f32.mrb[0].mxu0
      %v2295 = vadd.f32 0.0, %v2294
      %v2296 = vpop.f32.mrb[0].mxu0
      %v2297 = vpop.f32.mrb[0].mxu0
      %v2298 = vadd.f32 0.0, %v2297
      %v2299 = vpop.f32.mrb[0].mxu0
      %2300 = vmatprep.mubr.bf16.mxu0 0
      %2301 = vmatmul.mubr.bf16.gmra.mrb[0].mxu0 %v2252
      %v2302 = vpop.f32.mrb[0].mxu0
      %v2303 = vadd.f32 0.0, %v2302
      %v2304 = vpop.f32.mrb[0].mxu0
      %v2305 = vpop.f32.mrb[0].mxu0
      %v2306 = vadd.f32 0.0, %v2305
      %v2307 = vpop.f32.mrb[0].mxu0
      %2308 = vmatprep.mubr.bf16.mxu0 0
      %2309 = vmatmul.mubr.bf16.gmra.mrb[0].mxu0 %v2255
      %v2310 = vpop.f32.mrb[0].mxu0
      %v2311 = vadd.f32 0.0, %v2310
      %v2312 = vpop.f32.mrb[0].mxu0
      %v2313 = vpop.f32.mrb[0].mxu0
      %v2314 = vadd.f32 0.0, %v2313
      %v2315 = vpop.f32.mrb[0].mxu0
      %2316 = vmatprep.mubr.bf16.mxu0 0
      %2317 = vmatmul.mubr.bf16.gmra.mrb[0].mxu0 %v2258
      %v2318 = vpop.f32.mrb[0].mxu0
      %v2319 = vadd.f32 0.0, %v2318
      %v2320 = vpop.f32.mrb[0].mxu0
      %v2321 = vpop.f32.mrb[0].mxu0
      %v2322 = vadd.f32 0.0, %v2321
      %v2323 = vpop.f32.mrb[0].mxu0
      %2324 = vdwg.mxu0
      %v2325 = vpack.c.bf16 %v2298, %v2295
      %v2326 = vpack.c.bf16 %v2306, %v2303
      %v2327 = vpack.c.bf16 %v2314, %v2311
      %v2328 = vpack.c.bf16 %v2322, %v2319
      %v2330 = vunpack.c.l.b16 %v885
      %v2331 = vpack.c.b16 %v2330, %v2330
      %v2332 = vrot.slane %v2331, 2
      %v2334 = vsel %vm898, %v2325, 0
      %v2337 = vsel %vm898, %v2326, 0
      %v2340 = vsel %vm898, %v2327, 0
      %v2343 = vsel %vm898, %v2328, 0
      %v2346 = vsel %vm1496, %v2332, 0
      %2348 = vmatprep.subr.bf16.mxu0 0
      %2349 = vmatpush1.bf16.msra.mxu0 %v2346
      %2350 = vmatprep.subr.bf16.mxu0 0
      %2351 = vmatpush1.bf16.msra.mxu0 0
      %2352 = vmatprep.subr.bf16.mxu0 0
      %2353 = vmatpush1.bf16.msra.mxu0 0
      %2354 = vmatprep.subr.bf16.mxu0 0
      %2355 = vmatpush1.bf16.msra.mxu0 0
      %2356 = vmatprep.subr.bf16.mxu0 0
      %2357 = vmatpush1.bf16.msra.mxu0 0
      %2358 = vmatprep.subr.bf16.mxu0 0
      %2359 = vmatpush1.bf16.msra.mxu0 0
      %2360 = vmatprep.subr.bf16.mxu0 0
      %2361 = vmatpush1.bf16.msra.mxu0 0
      %2362 = vmatprep.subr.bf16.mxu0 0
      %2363 = vmatpush1.bf16.msra.mxu0 0
      %2364 = vmatprep.subr.bf16.mxu0 0
      %2365 = vmatpush1.bf16.msra.mxu0 0
      %2366 = vmatprep.subr.bf16.mxu0 0
      %2367 = vmatpush1.bf16.msra.mxu0 0
      %2368 = vmatprep.subr.bf16.mxu0 0
      %2369 = vmatpush1.bf16.msra.mxu0 0
      %2370 = vmatprep.subr.bf16.mxu0 0
      %2371 = vmatpush1.bf16.msra.mxu0 0
      %2372 = vmatprep.subr.bf16.mxu0 0
      %2373 = vmatpush1.bf16.msra.mxu0 0
      %2374 = vmatprep.subr.bf16.mxu0 0
      %2375 = vmatpush1.bf16.msra.mxu0 0
      %2376 = vmatprep.subr.bf16.mxu0 0
      %2377 = vmatpush1.bf16.msra.mxu0 0
      %2378 = vmatprep.subr.bf16.mxu0 0
      %2379 = vmatpush1.bf16.msra.mxu0 0
      %2380 = vmatprep.mubr.bf16.mxu0 0
      %2381 = vmatmul.mubr.bf16.gmra.mrb[0].mxu0 %v2334
      %v2382 = vpop.f32.mrb[0].mxu0
      %v2383 = vadd.f32 0.0, %v2382
      %v2384 = vpop.f32.mrb[0].mxu0
      %v2385 = vpop.f32.mrb[0].mxu0
      %v2386 = vadd.f32 0.0, %v2385
      %v2387 = vpop.f32.mrb[0].mxu0
      %2388 = vmatprep.mubr.bf16.mxu0 0
      %2389 = vmatmul.mubr.bf16.gmra.mrb[0].mxu0 %v2337
      %v2390 = vpop.f32.mrb[0].mxu0
      %v2391 = vadd.f32 0.0, %v2390
      %v2392 = vpop.f32.mrb[0].mxu0
      %v2393 = vpop.f32.mrb[0].mxu0
      %v2394 = vadd.f32 0.0, %v2393
      %v2395 = vpop.f32.mrb[0].mxu0
      %2396 = vmatprep.mubr.bf16.mxu0 0
      %2397 = vmatmul.mubr.bf16.gmra.mrb[0].mxu0 %v2340
      %v2398 = vpop.f32.mrb[0].mxu0
      %v2399 = vadd.f32 0.0, %v2398
      %v2400 = vpop.f32.mrb[0].mxu0
      %v2401 = vpop.f32.mrb[0].mxu0
      %v2402 = vadd.f32 0.0, %v2401
      %v2403 = vpop.f32.mrb[0].mxu0
      %2404 = vmatprep.mubr.bf16.mxu0 0
      %2405 = vmatmul.mubr.bf16.gmra.mrb[0].mxu0 %v2343
      %v2406 = vpop.f32.mrb[0].mxu0
      %v2407 = vadd.f32 0.0, %v2406
      %v2408 = vpop.f32.mrb[0].mxu0
      %v2409 = vpop.f32.mrb[0].mxu0
      %v2410 = vadd.f32 0.0, %v2409
      %v2411 = vpop.f32.mrb[0].mxu0
      %2412 = vdwg.mxu0
      %v2413 = vadd.f32 %v2023, %v2383
      %v2414 = vadd.f32 %v2024, %v2386
      %v2415 = vadd.f32 %v2025, %v2391
      %v2416 = vadd.f32 %v2026, %v2394
      %v2417 = vadd.f32 %v2027, %v2399
      %v2418 = vadd.f32 %v2028, %v2402
      %v2419 = vadd.f32 %v2029, %v2407
      %v2420 = vadd.f32 %v2030, %v2410
      %v2421 = vld [vmem:[%s719] sm:$0x1]
      %v2423 = vlaneseq
      %v2424 = vshrl.u32 %v2423, 7
      %v2425 = vsub.s32 0, %v2424
      %v2426 = vrot.slane %v2421, %v2425
      %v2428 = vadd.f32 %v2413, %v2426
      %v2429 = vadd.f32 %v2414, %v2426
      %v2430 = vadd.f32 %v2415, %v2426
      %v2431 = vadd.f32 %v2416, %v2426
      %v2432 = vadd.f32 %v2417, %v2426
      %v2433 = vadd.f32 %v2418, %v2426
      %v2434 = vadd.f32 %v2419, %v2426
      %v2435 = vadd.f32 %v2420, %v2426
      %v2436 = vadd.f32 %v775, %v2428
      %v2437 = vadd.f32 %v776, %v2429
      %v2438 = vadd.f32 %v777, %v2430
      %v2439 = vadd.f32 %v778, %v2431
      %v2440 = vadd.f32 %v779, %v2432
      %v2441 = vadd.f32 %v780, %v2433
      %v2442 = vadd.f32 %v781, %v2434
      %v2443 = vadd.f32 %v782, %v2435
      %v2444 = vld [vmem:[%s722] sm:$0x1]
      %v2445 = vld [vmem:[%s725] sm:$0x1]
      %v2446 = vsel %vm802, %v2436, 0.0
      %2447 = vadd.xlane.f32.xlu0 %v2446
      %v2448 = vpop.xlane.xlu0 %2447
      %v2449 = vsel %vm802, %v2437, 0.0
      %2450 = vadd.xlane.f32.xlu0 %v2449
      %v2451 = vpop.xlane.xlu0 %2450
      %v2452 = vsel %vm802, %v2438, 0.0
      %2453 = vadd.xlane.f32.xlu0 %v2452
      %v2454 = vpop.xlane.xlu0 %2453
      %v2455 = vsel %vm802, %v2439, 0.0
      %2456 = vadd.xlane.f32.xlu0 %v2455
      %v2457 = vpop.xlane.xlu0 %2456
      %v2458 = vsel %vm802, %v2440, 0.0
      %2459 = vadd.xlane.f32.xlu0 %v2458
      %v2460 = vpop.xlane.xlu0 %2459
      %v2461 = vsel %vm802, %v2441, 0.0
      %2462 = vadd.xlane.f32.xlu0 %v2461
      %v2463 = vpop.xlane.xlu0 %2462
      %v2464 = vsel %vm802, %v2442, 0.0
      %2465 = vadd.xlane.f32.xlu0 %v2464
      %v2466 = vpop.xlane.xlu0 %2465
      %v2467 = vsel %vm802, %v2443, 0.0
      %2468 = vadd.xlane.f32.xlu0 %v2467
      %v2469 = vpop.xlane.xlu0 %2468
      %v2470 = vrcp.pop 16.0
      %v2471 = vmul.f32 %v2448, %v2470
      %v2472 = vmul.f32 %v2451, %v2470
      %v2473 = vmul.f32 %v2454, %v2470
      %v2474 = vmul.f32 %v2457, %v2470
      %v2475 = vmul.f32 %v2460, %v2470
      %v2476 = vmul.f32 %v2463, %v2470
      %v2477 = vmul.f32 %v2466, %v2470
      %v2478 = vmul.f32 %v2469, %v2470
      %v2479 = vsub.f32 %v2436, %v2471
      %v2480 = vsub.f32 %v2437, %v2472
      %v2481 = vsub.f32 %v2438, %v2473
      %v2482 = vsub.f32 %v2439, %v2474
      %v2483 = vsub.f32 %v2440, %v2475
      %v2484 = vsub.f32 %v2441, %v2476
      %v2485 = vsub.f32 %v2442, %v2477
      %v2486 = vsub.f32 %v2443, %v2478
      %v2487 = vmul.f32 %v2479, %v2479
      %v2488 = vmul.f32 %v2480, %v2480
      %v2489 = vmul.f32 %v2481, %v2481
      %v2490 = vmul.f32 %v2482, %v2482
      %v2491 = vmul.f32 %v2483, %v2483
      %v2492 = vmul.f32 %v2484, %v2484
      %v2493 = vmul.f32 %v2485, %v2485
      %v2494 = vmul.f32 %v2486, %v2486
      %v2495 = vsel %vm802, %v2487, 0.0
      %2496 = vadd.xlane.f32.xlu0 %v2495
      %v2497 = vpop.xlane.xlu0 %2496
      %v2498 = vsel %vm802, %v2488, 0.0
      %2499 = vadd.xlane.f32.xlu0 %v2498
      %v2500 = vpop.xlane.xlu0 %2499
      %v2501 = vsel %vm802, %v2489, 0.0
      %2502 = vadd.xlane.f32.xlu0 %v2501
      %v2503 = vpop.xlane.xlu0 %2502
      %v2504 = vsel %vm802, %v2490, 0.0
      %2505 = vadd.xlane.f32.xlu0 %v2504
      %v2506 = vpop.xlane.xlu0 %2505
      %v2507 = vsel %vm802, %v2491, 0.0
      %2508 = vadd.xlane.f32.xlu0 %v2507
      %v2509 = vpop.xlane.xlu0 %2508
      %v2510 = vsel %vm802, %v2492, 0.0
      %2511 = vadd.xlane.f32.xlu0 %v2510
      %v2512 = vpop.xlane.xlu0 %2511
      %v2513 = vsel %vm802, %v2493, 0.0
      %2514 = vadd.xlane.f32.xlu0 %v2513
      %v2515 = vpop.xlane.xlu0 %2514
      %v2516 = vsel %vm802, %v2494, 0.0
      %2517 = vadd.xlane.f32.xlu0 %v2516
      %v2518 = vpop.xlane.xlu0 %2517
      %v2519 = vmul.f32 %v2497, %v2470
      %v2520 = vmul.f32 %v2500, %v2470
      %v2521 = vmul.f32 %v2503, %v2470
      %v2522 = vmul.f32 %v2506, %v2470
      %v2523 = vmul.f32 %v2509, %v2470
      %v2524 = vmul.f32 %v2512, %v2470
      %v2525 = vmul.f32 %v2515, %v2470
      %v2526 = vmul.f32 %v2518, %v2470
      %v2527 = vadd.f32 %v2519, 1e-05
      %v2528 = vadd.f32 %v2520, 1e-05
      %v2529 = vadd.f32 %v2521, 1e-05
      %v2530 = vadd.f32 %v2522, 1e-05
      %v2531 = vadd.f32 %v2523, 1e-05
      %v2532 = vadd.f32 %v2524, 1e-05
      %v2533 = vadd.f32 %v2525, 1e-05
      %v2534 = vadd.f32 %v2526, 1e-05
      %v2535 = vrsqrt.pop %v2527
      %v2536 = vrsqrt.pop %v2528
      %v2537 = vrsqrt.pop %v2529
      %v2538 = vrsqrt.pop %v2530
      %v2539 = vrsqrt.pop %v2531
      %v2540 = vrsqrt.pop %v2532
      %v2541 = vrsqrt.pop %v2533
      %v2542 = vrsqrt.pop %v2534
      %v2543 = vmul.f32 %v2479, %v2535
      %v2544 = vmul.f32 %v2480, %v2536
      %v2545 = vmul.f32 %v2481, %v2537
      %v2546 = vmul.f32 %v2482, %v2538
      %v2547 = vmul.f32 %v2483, %v2539
      %v2548 = vmul.f32 %v2484, %v2540
      %v2549 = vmul.f32 %v2485, %v2541
      %v2550 = vmul.f32 %v2486, %v2542
      %v2552 = vlaneseq
      %v2553 = vshrl.u32 %v2552, 7
      %v2554 = vsub.s32 0, %v2553
      %v2555 = vrot.slane %v2444, %v2554
      %v2557 = vmul.f32 %v2543, %v2555
      %v2558 = vmul.f32 %v2544, %v2555
      %v2559 = vmul.f32 %v2545, %v2555
      %v2560 = vmul.f32 %v2546, %v2555
      %v2561 = vmul.f32 %v2547, %v2555
      %v2562 = vmul.f32 %v2548, %v2555
      %v2563 = vmul.f32 %v2549, %v2555
      %v2564 = vmul.f32 %v2550, %v2555
      %v2566 = vlaneseq
      %v2567 = vshrl.u32 %v2566, 7
      %v2568 = vsub.s32 0, %v2567
      %v2569 = vrot.slane %v2445, %v2568
      %v2571 = vadd.f32 %v2557, %v2569
      %v2572 = vadd.f32 %v2558, %v2569
      %v2573 = vadd.f32 %v2559, %v2569
      %v2574 = vadd.f32 %v2560, %v2569
      %v2575 = vadd.f32 %v2561, %v2569
      %v2576 = vadd.f32 %v2562, %v2569
      %v2577 = vadd.f32 %v2563, %v2569
      %v2578 = vadd.f32 %v2564, %v2569
      %v2579 = vpack.c.bf16 %v2572, %v2571
      %v2580 = vpack.c.bf16 %v2574, %v2573
      %v2581 = vpack.c.bf16 %v2576, %v2575
      %v2582 = vpack.c.bf16 %v2578, %v2577
      %v2583 = vld [vmem:[%s730] sm:$0xf]
      %v2584 = vld [vmem:[%s730 + $0x4] sm:$0xf]
      %v2585 = vld [vmem:[%s733] sm:$0x1]
      %v2587 = vlaneseq
      %v2588 = vshrl.u32 %v2587, 7
      %v2589 = vsub.s32 0, %v2588
      %v2590 = vrot.slane %v2585, %v2589
      %v2594 = vunpack.c.l.b16 %v2583
      %v2595 = vunpack.c.l.b16 %v2584
      %v2596 = vpack.c.b16 %v2595, %v2594
      %v2599 = vsel %vm802, %v2579, 0
      %v2602 = vsel %vm802, %v2580, 0
      %v2605 = vsel %vm802, %v2581, 0
      %v2608 = vsel %vm802, %v2582, 0
      %2610 = vmatprep.subr.bf16.mxu0 0
      %2611 = vmatpush1.bf16.msra.mxu0 %v2596
      %2612 = vmatprep.subr.bf16.mxu0 0
      %2613 = vmatpush1.bf16.msra.mxu0 0
      %2614 = vmatprep.subr.bf16.mxu0 0
      %2615 = vmatpush1.bf16.msra.mxu0 0
      %2616 = vmatprep.subr.bf16.mxu0 0
      %2617 = vmatpush1.bf16.msra.mxu0 0
      %2618 = vmatprep.subr.bf16.mxu0 0
      %2619 = vmatpush1.bf16.msra.mxu0 0
      %2620 = vmatprep.subr.bf16.mxu0 0
      %2621 = vmatpush1.bf16.msra.mxu0 0
      %2622 = vmatprep.subr.bf16.mxu0 0
      %2623 = vmatpush1.bf16.msra.mxu0 0
      %2624 = vmatprep.subr.bf16.mxu0 0
      %2625 = vmatpush1.bf16.msra.mxu0 0
      %2626 = vmatprep.subr.bf16.mxu0 0
      %2627 = vmatpush1.bf16.msra.mxu0 0
      %2628 = vmatprep.subr.bf16.mxu0 0
      %2629 = vmatpush1.bf16.msra.mxu0 0
      %2630 = vmatprep.subr.bf16.mxu0 0
      %2631 = vmatpush1.bf16.msra.mxu0 0
      %2632 = vmatprep.subr.bf16.mxu0 0
      %2633 = vmatpush1.bf16.msra.mxu0 0
      %2634 = vmatprep.subr.bf16.mxu0 0
      %2635 = vmatpush1.bf16.msra.mxu0 0
      %2636 = vmatprep.subr.bf16.mxu0 0
      %2637 = vmatpush1.bf16.msra.mxu0 0
      %2638 = vmatprep.subr.bf16.mxu0 0
      %2639 = vmatpush1.bf16.msra.mxu0 0
      %2640 = vmatprep.subr.bf16.mxu0 0
      %2641 = vmatpush1.bf16.msra.mxu0 0
      %2642 = vmatprep.mubr.bf16.mxu0 0
      %2643 = vmatmul.mubr.bf16.gmra.mrb[0].mxu0 %v2599
      %v2644 = vpop.f32.mrb[0].mxu0
      %v2645 = vadd.f32 %v2590, %v2644
      %v2646 = vpop.f32.mrb[0].mxu0
      %v2647 = vpop.f32.mrb[0].mxu0
      %v2648 = vadd.f32 %v2590, %v2647
      %v2649 = vpop.f32.mrb[0].mxu0
      %2650 = vmatprep.mubr.bf16.mxu0 0
      %2651 = vmatmul.mubr.bf16.gmra.mrb[0].mxu0 %v2602
      %v2652 = vpop.f32.mrb[0].mxu0
      %v2653 = vadd.f32 %v2590, %v2652
      %v2654 = vpop.f32.mrb[0].mxu0
      %v2655 = vpop.f32.mrb[0].mxu0
      %v2656 = vadd.f32 %v2590, %v2655
      %v2657 = vpop.f32.mrb[0].mxu0
      %2658 = vmatprep.mubr.bf16.mxu0 0
      %2659 = vmatmul.mubr.bf16.gmra.mrb[0].mxu0 %v2605
      %v2660 = vpop.f32.mrb[0].mxu0
      %v2661 = vadd.f32 %v2590, %v2660
      %v2662 = vpop.f32.mrb[0].mxu0
      %v2663 = vpop.f32.mrb[0].mxu0
      %v2664 = vadd.f32 %v2590, %v2663
      %v2665 = vpop.f32.mrb[0].mxu0
      %2666 = vmatprep.mubr.bf16.mxu0 0
      %2667 = vmatmul.mubr.bf16.gmra.mrb[0].mxu0 %v2608
      %v2668 = vpop.f32.mrb[0].mxu0
      %v2669 = vadd.f32 %v2590, %v2668
      %v2670 = vpop.f32.mrb[0].mxu0
      %v2671 = vpop.f32.mrb[0].mxu0
      %v2672 = vadd.f32 %v2590, %v2671
      %v2673 = vpop.f32.mrb[0].mxu0
      %2674 = vdwg.mxu0
      %v2675 = vmax.f32 %v2645, 0.0
      %v2676 = vmax.f32 %v2648, 0.0
      %v2677 = vmax.f32 %v2653, 0.0
      %v2678 = vmax.f32 %v2656, 0.0
      %v2679 = vmax.f32 %v2661, 0.0
      %v2680 = vmax.f32 %v2664, 0.0
      %v2681 = vmax.f32 %v2669, 0.0
      %v2682 = vmax.f32 %v2672, 0.0
      %v2683 = vpack.c.bf16 %v2676, %v2675
      %v2684 = vpack.c.bf16 %v2678, %v2677
      %v2685 = vpack.c.bf16 %v2680, %v2679
      %v2686 = vpack.c.bf16 %v2682, %v2681
      %v2687 = vld [vmem:[%s738] sm:$0xf]
      %v2688 = vld [vmem:[%s738 + $0x4] sm:$0xf]
      %v2689 = vld [vmem:[%s738 + $0x8] sm:$0xf]
      %v2690 = vld [vmem:[%s738 + $0xc] sm:$0xf]
      %v2691 = vld [vmem:[%s738 + $0x10] sm:$0xf]
      %v2692 = vld [vmem:[%s738 + $0x14] sm:$0xf]
      %v2693 = vld [vmem:[%s738 + $0x18] sm:$0xf]
      %v2694 = vld [vmem:[%s738 + $0x1c] sm:$0xf]
      %v2695 = vld [vmem:[%s741] sm:$0x1]
      %v2697 = vlaneseq
      %v2698 = vshrl.u32 %v2697, 7
      %v2699 = vsub.s32 0, %v2698
      %v2700 = vrot.slane %v2695, %v2699
      %v2710 = vunpack.c.l.b16 %v2687
      %v2711 = vunpack.c.l.b16 %v2688
      %v2712 = vunpack.c.l.b16 %v2689
      %v2713 = vunpack.c.l.b16 %v2690
      %v2714 = vunpack.c.l.b16 %v2691
      %v2715 = vunpack.c.l.b16 %v2692
      %v2716 = vunpack.c.l.b16 %v2693
      %v2717 = vunpack.c.l.b16 %v2694
      %v2718 = vpack.c.b16 %v2711, %v2710
      %v2719 = vpack.c.b16 %v2713, %v2712
      %v2720 = vpack.c.b16 %v2715, %v2714
      %v2721 = vpack.c.b16 %v2717, %v2716
      %v2727 = vsel %vm996, %v2683, 0
      %v2730 = vsel %vm996, %v2684, 0
      %v2733 = vsel %vm996, %v2685, 0
      %v2736 = vsel %vm996, %v2686, 0
      %2738 = vmatprep.subr.bf16.mxu0 0
      %2739 = vmatpush1.bf16.msra.mxu0 %v2718
      %2740 = vmatprep.subr.bf16.mxu0 0
      %2741 = vmatpush1.bf16.msra.mxu0 %v2719
      %2742 = vmatprep.subr.bf16.mxu0 0
      %2743 = vmatpush1.bf16.msra.mxu0 %v2720
      %2744 = vmatprep.subr.bf16.mxu0 0
      %2745 = vmatpush1.bf16.msra.mxu0 %v2721
      %2746 = vmatprep.subr.bf16.mxu0 0
      %2747 = vmatpush1.bf16.msra.mxu0 0
      %2748 = vmatprep.subr.bf16.mxu0 0
      %2749 = vmatpush1.bf16.msra.mxu0 0
      %2750 = vmatprep.subr.bf16.mxu0 0
      %2751 = vmatpush1.bf16.msra.mxu0 0
      %2752 = vmatprep.subr.bf16.mxu0 0
      %2753 = vmatpush1.bf16.msra.mxu0 0
      %2754 = vmatprep.subr.bf16.mxu0 0
      %2755 = vmatpush1.bf16.msra.mxu0 0
      %2756 = vmatprep.subr.bf16.mxu0 0
      %2757 = vmatpush1.bf16.msra.mxu0 0
      %2758 = vmatprep.subr.bf16.mxu0 0
      %2759 = vmatpush1.bf16.msra.mxu0 0
      %2760 = vmatprep.subr.bf16.mxu0 0
      %2761 = vmatpush1.bf16.msra.mxu0 0
      %2762 = vmatprep.subr.bf16.mxu0 0
      %2763 = vmatpush1.bf16.msra.mxu0 0
      %2764 = vmatprep.subr.bf16.mxu0 0
      %2765 = vmatpush1.bf16.msra.mxu0 0
      %2766 = vmatprep.subr.bf16.mxu0 0
      %2767 = vmatpush1.bf16.msra.mxu0 0
      %2768 = vmatprep.subr.bf16.mxu0 0
      %2769 = vmatpush1.bf16.msra.mxu0 0
      %2770 = vmatprep.mubr.bf16.mxu0 0
      %2771 = vmatmul.mubr.bf16.gmra.mrb[0].mxu0 %v2727
      %v2772 = vpop.f32.mrb[0].mxu0
      %v2773 = vadd.f32 %v2700, %v2772
      %v2774 = vpop.f32.mrb[0].mxu0
      %v2775 = vpop.f32.mrb[0].mxu0
      %v2776 = vadd.f32 %v2700, %v2775
      %v2777 = vpop.f32.mrb[0].mxu0
      %2778 = vmatprep.mubr.bf16.mxu0 0
      %2779 = vmatmul.mubr.bf16.gmra.mrb[0].mxu0 %v2730
      %v2780 = vpop.f32.mrb[0].mxu0
      %v2781 = vadd.f32 %v2700, %v2780
      %v2782 = vpop.f32.mrb[0].mxu0
      %v2783 = vpop.f32.mrb[0].mxu0
      %v2784 = vadd.f32 %v2700, %v2783
      %v2785 = vpop.f32.mrb[0].mxu0
      %2786 = vmatprep.mubr.bf16.mxu0 0
      %2787 = vmatmul.mubr.bf16.gmra.mrb[0].mxu0 %v2733
      %v2788 = vpop.f32.mrb[0].mxu0
      %v2789 = vadd.f32 %v2700, %v2788
      %v2790 = vpop.f32.mrb[0].mxu0
      %v2791 = vpop.f32.mrb[0].mxu0
      %v2792 = vadd.f32 %v2700, %v2791
      %v2793 = vpop.f32.mrb[0].mxu0
      %2794 = vmatprep.mubr.bf16.mxu0 0
      %2795 = vmatmul.mubr.bf16.gmra.mrb[0].mxu0 %v2736
      %v2796 = vpop.f32.mrb[0].mxu0
      %v2797 = vadd.f32 %v2700, %v2796
      %v2798 = vpop.f32.mrb[0].mxu0
      %v2799 = vpop.f32.mrb[0].mxu0
      %v2800 = vadd.f32 %v2700, %v2799
      %v2801 = vpop.f32.mrb[0].mxu0
      %2802 = vdwg.mxu0
      %v2803 = vadd.f32 %v2571, %v2773
      %v2804 = vadd.f32 %v2572, %v2776
      %v2805 = vadd.f32 %v2573, %v2781
      %v2806 = vadd.f32 %v2574, %v2784
      %v2807 = vadd.f32 %v2575, %v2789
      %v2808 = vadd.f32 %v2576, %v2792
      %v2809 = vadd.f32 %v2577, %v2797
      %v2810 = vadd.f32 %v2578, %v2800
      %v2811 = vld [vmem:[%s744] sm:$0x1]
      %v2812 = vld [vmem:[%s747] sm:$0x1]
      %v2813 = vsel %vm802, %v2803, 0.0
      %2814 = vadd.xlane.f32.xlu0 %v2813
      %v2815 = vpop.xlane.xlu0 %2814
      %v2816 = vsel %vm802, %v2804, 0.0
      %2817 = vadd.xlane.f32.xlu0 %v2816
      %v2818 = vpop.xlane.xlu0 %2817
      %v2819 = vsel %vm802, %v2805, 0.0
      %2820 = vadd.xlane.f32.xlu0 %v2819
      %v2821 = vpop.xlane.xlu0 %2820
      %v2822 = vsel %vm802, %v2806, 0.0
      %2823 = vadd.xlane.f32.xlu0 %v2822
      %v2824 = vpop.xlane.xlu0 %2823
      %v2825 = vsel %vm802, %v2807, 0.0
      %2826 = vadd.xlane.f32.xlu0 %v2825
      %v2827 = vpop.xlane.xlu0 %2826
      %v2828 = vsel %vm802, %v2808, 0.0
      %2829 = vadd.xlane.f32.xlu0 %v2828
      %v2830 = vpop.xlane.xlu0 %2829
      %v2831 = vsel %vm802, %v2809, 0.0
      %2832 = vadd.xlane.f32.xlu0 %v2831
      %v2833 = vpop.xlane.xlu0 %2832
      %v2834 = vsel %vm802, %v2810, 0.0
      %2835 = vadd.xlane.f32.xlu0 %v2834
      %v2836 = vpop.xlane.xlu0 %2835
      %v2837 = vmul.f32 %v2815, %v2470
      %v2838 = vmul.f32 %v2818, %v2470
      %v2839 = vmul.f32 %v2821, %v2470
      %v2840 = vmul.f32 %v2824, %v2470
      %v2841 = vmul.f32 %v2827, %v2470
      %v2842 = vmul.f32 %v2830, %v2470
      %v2843 = vmul.f32 %v2833, %v2470
      %v2844 = vmul.f32 %v2836, %v2470
      %v2845 = vsub.f32 %v2803, %v2837
      %v2846 = vsub.f32 %v2804, %v2838
      %v2847 = vsub.f32 %v2805, %v2839
      %v2848 = vsub.f32 %v2806, %v2840
      %v2849 = vsub.f32 %v2807, %v2841
      %v2850 = vsub.f32 %v2808, %v2842
      %v2851 = vsub.f32 %v2809, %v2843
      %v2852 = vsub.f32 %v2810, %v2844
      %v2853 = vmul.f32 %v2845, %v2845
      %v2854 = vmul.f32 %v2846, %v2846
      %v2855 = vmul.f32 %v2847, %v2847
      %v2856 = vmul.f32 %v2848, %v2848
      %v2857 = vmul.f32 %v2849, %v2849
      %v2858 = vmul.f32 %v2850, %v2850
      %v2859 = vmul.f32 %v2851, %v2851
      %v2860 = vmul.f32 %v2852, %v2852
      %v2861 = vsel %vm802, %v2853, 0.0
      %2862 = vadd.xlane.f32.xlu0 %v2861
      %v2863 = vpop.xlane.xlu0 %2862
      %v2864 = vsel %vm802, %v2854, 0.0
      %2865 = vadd.xlane.f32.xlu0 %v2864
      %v2866 = vpop.xlane.xlu0 %2865
      %v2867 = vsel %vm802, %v2855, 0.0
      %2868 = vadd.xlane.f32.xlu0 %v2867
      %v2869 = vpop.xlane.xlu0 %2868
      %v2870 = vsel %vm802, %v2856, 0.0
      %2871 = vadd.xlane.f32.xlu0 %v2870
      %v2872 = vpop.xlane.xlu0 %2871
      %v2873 = vsel %vm802, %v2857, 0.0
      %2874 = vadd.xlane.f32.xlu0 %v2873
      %v2875 = vpop.xlane.xlu0 %2874
      %v2876 = vsel %vm802, %v2858, 0.0
      %2877 = vadd.xlane.f32.xlu0 %v2876
      %v2878 = vpop.xlane.xlu0 %2877
      %v2879 = vsel %vm802, %v2859, 0.0
      %2880 = vadd.xlane.f32.xlu0 %v2879
      %v2881 = vpop.xlane.xlu0 %2880
      %v2882 = vsel %vm802, %v2860, 0.0
      %2883 = vadd.xlane.f32.xlu0 %v2882
      %v2884 = vpop.xlane.xlu0 %2883
      %v2885 = vmul.f32 %v2863, %v2470
      %v2886 = vmul.f32 %v2866, %v2470
      %v2887 = vmul.f32 %v2869, %v2470
      %v2888 = vmul.f32 %v2872, %v2470
      %v2889 = vmul.f32 %v2875, %v2470
      %v2890 = vmul.f32 %v2878, %v2470
      %v2891 = vmul.f32 %v2881, %v2470
      %v2892 = vmul.f32 %v2884, %v2470
      %v2893 = vadd.f32 %v2885, 1e-05
      %v2894 = vadd.f32 %v2886, 1e-05
      %v2895 = vadd.f32 %v2887, 1e-05
      %v2896 = vadd.f32 %v2888, 1e-05
      %v2897 = vadd.f32 %v2889, 1e-05
      %v2898 = vadd.f32 %v2890, 1e-05
      %v2899 = vadd.f32 %v2891, 1e-05
      %v2900 = vadd.f32 %v2892, 1e-05
      %v2901 = vrsqrt.pop %v2893
      %v2902 = vrsqrt.pop %v2894
      %v2903 = vrsqrt.pop %v2895
      %v2904 = vrsqrt.pop %v2896
      %v2905 = vrsqrt.pop %v2897
      %v2906 = vrsqrt.pop %v2898
      %v2907 = vrsqrt.pop %v2899
      %v2908 = vrsqrt.pop %v2900
      %v2909 = vmul.f32 %v2845, %v2901
      %v2910 = vmul.f32 %v2846, %v2902
      %v2911 = vmul.f32 %v2847, %v2903
      %v2912 = vmul.f32 %v2848, %v2904
      %v2913 = vmul.f32 %v2849, %v2905
      %v2914 = vmul.f32 %v2850, %v2906
      %v2915 = vmul.f32 %v2851, %v2907
      %v2916 = vmul.f32 %v2852, %v2908
      %v2918 = vlaneseq
      %v2919 = vshrl.u32 %v2918, 7
      %v2920 = vsub.s32 0, %v2919
      %v2921 = vrot.slane %v2811, %v2920
      %v2923 = vmul.f32 %v2909, %v2921
      %v2924 = vmul.f32 %v2910, %v2921
      %v2925 = vmul.f32 %v2911, %v2921
      %v2926 = vmul.f32 %v2912, %v2921
      %v2927 = vmul.f32 %v2913, %v2921
      %v2928 = vmul.f32 %v2914, %v2921
      %v2929 = vmul.f32 %v2915, %v2921
      %v2930 = vmul.f32 %v2916, %v2921
      %v2932 = vlaneseq
      %v2933 = vshrl.u32 %v2932, 7
      %v2934 = vsub.s32 0, %v2933
      %v2935 = vrot.slane %v2812, %v2934
      %v2937 = vadd.f32 %v2923, %v2935
      %v2938 = vadd.f32 %v2924, %v2935
      %v2939 = vadd.f32 %v2925, %v2935
      %v2940 = vadd.f32 %v2926, %v2935
      %v2941 = vadd.f32 %v2927, %v2935
      %v2942 = vadd.f32 %v2928, %v2935
      %v2943 = vadd.f32 %v2929, %v2935
      %v2944 = vadd.f32 %v2930, %v2935
      %2945 = vst.msk [vmem:[#allocation2] sm:$0xff] %vm802, %v2937
      %2946 = vst.msk [vmem:[#allocation2 + $0x8] sm:$0xff] %vm802, %v2938
      %2947 = vst.msk [vmem:[#allocation2 + $0x10] sm:$0xff] %vm802, %v2939
      %2948 = vst.msk [vmem:[#allocation2 + $0x18] sm:$0xff] %vm802, %v2940
      %2949 = vst.msk [vmem:[#allocation2 + $0x20] sm:$0xff] %vm802, %v2941
      %2950 = vst.msk [vmem:[#allocation2 + $0x28] sm:$0xff] %vm802, %v2942
      %2951 = vst.msk [vmem:[#allocation2 + $0x30] sm:$0xff] %vm802, %v2943
      %2952 = vst.msk [vmem:[#allocation2 + $0x38] sm:$0xff] %vm802, %v2944
      // Predicated region
      $region93: #{mae_vit_forward.3} parent=87 // pred_check
        %p2953 = pneg %p754
      $region94: #{mae_vit_forward.3} parent=87 // pred_check_branch
        %2955 = sbr.rel (%p2953) target = $region96
      $region95: #{mae_vit_forward.3} parent=87 // pred_region
        %v2956 = vpack.c.bf16 %v2938, %v2937
        %v2957 = vpack.c.bf16 %v2940, %v2939
        %v2958 = vpack.c.bf16 %v2942, %v2941
        %v2959 = vpack.c.bf16 %v2944, %v2943
        %v2960 = vld [vmem:[%s15] sm:$0xf]
        %v2961 = vld [vmem:[%s15 + $0x4] sm:$0xf]
        %v2962 = vld [vmem:[%s16] sm:$0x1]
        %v2964 = vlaneseq
        %v2965 = vshrl.u32 %v2964, 7
        %v2966 = vsub.s32 0, %v2965
        %v2967 = vrot.slane %v2962, %v2966
        %v2971 = vunpack.c.l.b16 %v2960
        %v2972 = vunpack.c.l.b16 %v2961
        %v2973 = vpack.c.b16 %v2972, %v2971
        %v2976 = vsel %vm802, %v2956, 0
        %v2979 = vsel %vm802, %v2957, 0
        %v2982 = vsel %vm802, %v2958, 0
        %v2985 = vsel %vm802, %v2959, 0
        %2987 = vmatprep.subr.bf16.mxu0 0
        %2988 = vmatpush1.bf16.msra.mxu0 %v2973
        %2989 = vmatprep.subr.bf16.mxu0 0
        %2990 = vmatpush1.bf16.msra.mxu0 0
        %2991 = vmatprep.subr.bf16.mxu0 0
        %2992 = vmatpush1.bf16.msra.mxu0 0
        %2993 = vmatprep.subr.bf16.mxu0 0
        %2994 = vmatpush1.bf16.msra.mxu0 0
        %2995 = vmatprep.subr.bf16.mxu0 0
        %2996 = vmatpush1.bf16.msra.mxu0 0
        %2997 = vmatprep.subr.bf16.mxu0 0
        %2998 = vmatpush1.bf16.msra.mxu0 0
        %2999 = vmatprep.subr.bf16.mxu0 0
        %3000 = vmatpush1.bf16.msra.mxu0 0
        %3001 = vmatprep.subr.bf16.mxu0 0
        %3002 = vmatpush1.bf16.msra.mxu0 0
        %3003 = vmatprep.subr.bf16.mxu0 0
        %3004 = vmatpush1.bf16.msra.mxu0 0
        %3005 = vmatprep.subr.bf16.mxu0 0
        %3006 = vmatpush1.bf16.msra.mxu0 0
        %3007 = vmatprep.subr.bf16.mxu0 0
        %3008 = vmatpush1.bf16.msra.mxu0 0
        %3009 = vmatprep.subr.bf16.mxu0 0
        %3010 = vmatpush1.bf16.msra.mxu0 0
        %3011 = vmatprep.subr.bf16.mxu0 0
        %3012 = vmatpush1.bf16.msra.mxu0 0
        %3013 = vmatprep.subr.bf16.mxu0 0
        %3014 = vmatpush1.bf16.msra.mxu0 0
        %3015 = vmatprep.subr.bf16.mxu0 0
        %3016 = vmatpush1.bf16.msra.mxu0 0
        %3017 = vmatprep.subr.bf16.mxu0 0
        %3018 = vmatpush1.bf16.msra.mxu0 0
        %3019 = vmatprep.mubr.bf16.mxu0 0
        %3020 = vmatmul.mubr.bf16.gmra.mrb[0].mxu0 %v2976
        %v3021 = vpop.f32.mrb[0].mxu0
        %v3022 = vadd.f32 %v2967, %v3021
        %v3023 = vpop.f32.mrb[0].mxu0
        %v3024 = vpop.f32.mrb[0].mxu0
        %v3025 = vadd.f32 %v2967, %v3024
        %v3026 = vpop.f32.mrb[0].mxu0
        %3027 = vmatprep.mubr.bf16.mxu0 0
        %3028 = vmatmul.mubr.bf16.gmra.mrb[0].mxu0 %v2979
        %v3029 = vpop.f32.mrb[0].mxu0
        %v3030 = vadd.f32 %v2967, %v3029
        %v3031 = vpop.f32.mrb[0].mxu0
        %v3032 = vpop.f32.mrb[0].mxu0
        %v3033 = vadd.f32 %v2967, %v3032
        %v3034 = vpop.f32.mrb[0].mxu0
        %3035 = vmatprep.mubr.bf16.mxu0 0
        %3036 = vmatmul.mubr.bf16.gmra.mrb[0].mxu0 %v2982
        %v3037 = vpop.f32.mrb[0].mxu0
        %v3038 = vadd.f32 %v2967, %v3037
        %v3039 = vpop.f32.mrb[0].mxu0
        %v3040 = vpop.f32.mrb[0].mxu0
        %v3041 = vadd.f32 %v2967, %v3040
        %v3042 = vpop.f32.mrb[0].mxu0
        %3043 = vmatprep.mubr.bf16.mxu0 0
        %3044 = vmatmul.mubr.bf16.gmra.mrb[0].mxu0 %v2985
        %v3045 = vpop.f32.mrb[0].mxu0
        %v3046 = vadd.f32 %v2967, %v3045
        %v3047 = vpop.f32.mrb[0].mxu0
        %v3048 = vpop.f32.mrb[0].mxu0
        %v3049 = vadd.f32 %v2967, %v3048
        %v3050 = vpop.f32.mrb[0].mxu0
        %3051 = vdwg.mxu0
        %vm3052 = vcmask 64512
        %3053 = vst.msk [vmem:[%s752] sm:$0xff] %vm3052, %v3022
        %3054 = vst.msk [vmem:[%s752 + $0x8] sm:$0xff] %vm3052, %v3025
        %3055 = vst.msk [vmem:[%s752 + $0x10] sm:$0xff] %vm3052, %v3030
        %3056 = vst.msk [vmem:[%s752 + $0x18] sm:$0xff] %vm3052, %v3033
        %3057 = vst.msk [vmem:[%s752 + $0x20] sm:$0xff] %vm3052, %v3038
        %3058 = vst.msk [vmem:[%s752 + $0x28] sm:$0xff] %vm3052, %v3041
        %3059 = vst.msk [vmem:[%s752 + $0x30] sm:$0xff] %vm3052, %v3046
        %3060 = vst.msk [vmem:[%s752 + $0x38] sm:$0xff] %vm3052, %v3049
      $region96: #{mae_vit_forward.3} parent=87 // pred_fallthru
        _
      %p3061 = scmp.lt.s32.totalorder %s32, 1
      %s3062 = scalar_select %p3061, %s32, 1
      %s3063 = smul.addr %s3062, 8
      %s3064 = smul.addr %s3063, 8
      %s3065 = scalar_lea.vmem %s17, %s3064
      // Predicated region
      $region97: #{mae_vit_forward.3} parent=87 // pred_check
        %p3066 = pneg %p480
      $region98: #{mae_vit_forward.3} parent=87 // pred_check_branch
        %3068 = sbr.rel (%p3066) target = $region100
      $region99: #{mae_vit_forward.3} parent=87 // pred_region
        _
      $region100: #{mae_vit_forward.3} parent=87 // pred_fallthru
        _
    $region88: #{mae_vit_forward.3} parent=5 // pred_fallthru
      _
    %p3069 = scmp.le.s32.totalorder 2, %s23
    // Predicated region
    $region101: #{mae_vit_forward.3} parent=5 // pred_check
      %p3070 = pneg %p3069
    $region102: #{mae_vit_forward.3} parent=5 // pred_check_branch
      %3072 = sbr.rel (%p3070) target = $region104
    $region103: #{mae_vit_forward.3} parent=5 // pred_region
      %s3073 = ssub.s32 %s23, 2
      // Predicated region
      $region105: #{mae_vit_forward.3} parent=103 // pred_check
        %p3074 = pneg %p486
      $region106: #{mae_vit_forward.3} parent=103 // pred_check_branch
        %3076 = sbr.rel (%p3074) target = $region108
      $region107: #{mae_vit_forward.3} parent=103 // pred_region
        %p3077 = scmp.lt.s32.totalorder %s34, 1
        %s3078 = scalar_select %p3077, %s34, 1
        %s3079 = smul.addr %s3078, 8
        %s3080 = smul.addr %s3079, 8
        %s3081 = scalar_lea.vmem %s17, %s3080
      $region108: #{mae_vit_forward.3} parent=103 // pred_fallthru
        _
    $region104: #{mae_vit_forward.3} parent=5 // pred_fallthru
      _
  $region6: #{mae_vit_forward.3} parent=0 // loop_footer
    %s27 = sadd.s32 1, %s23
  $region7: #{mae_vit_forward.3} parent=0 // loop_footer_branch
    %22 = sbr.rel target = $region3
  $region8: #{mae_vit_forward.3} parent=0 // loop_exit
    _

</llo_original>
